<compile_context>
chip_gen: v6e
topology: v6e:2x2x1
jax: 0.10.0
libtpu: 0.0.40
codegen_flags: <defaults>
</compile_context>

<pallas_src>
import math

import jax
import jax.numpy as jnp
from jax import lax
from jax.experimental import pallas as pl
from jax.experimental.pallas import tpu as pltpu
from jax.scipy.linalg import block_diag

# ----------------------------- hyper-parameters ------------------------------
DIM = 32           # atom feature dim (module default 64; small demo size)
CUTOFF = 5.0
WIDTH = 1.0
N_CONV = 3
OUTPUT_DIM = 1     # lane-dense readout below assumes output_dim == 1 (module default)
HIDDEN = 64        # atom_dense_layer1 output dim (fixed to 64 in the module)
TYPE_NUM = 100     # AtomEmbedding default type_num
PACK = 4           # molecules packed per 128-lane vreg (PACK * DIM == 128)
LANES = PACK * DIM

# RBFLayer(low=0, high=cutoff, gap=width, dim=1)
N_CENTERS = int(math.ceil((CUTOFF - 0.0) / WIDTH))              # 5
_CENTERS = jnp.linspace(0.0, CUTOFF, N_CENTERS).astype(jnp.float32)
RBF_GAP = CUTOFF / (N_CENTERS - 1)                              # 1.25 (linspace spacing)
FAN_OUT = N_CENTERS                                             # _fan_out = dim*n_centers


def _softplus(x, beta, threshold):
    """torch.nn.Softplus(beta, threshold) semantics."""
    scaled = beta * x
    safe = jnp.minimum(scaled, threshold)
    return jnp.where(scaled > threshold, x, (1.0 / beta) * jnp.log1p(jnp.exp(safe)))


# --------------------------------- kernel ------------------------------------
# Packed constant layouts (built host-side in pack_params):
#   w_ref  (15, 128, 128): [0:3]  RBF->linear1, zero-padded block-diag per layer
#                          [3:6]  cfconv linear2, block-diag per layer
#                          [6:9]  node_layer1 W, block-diag per layer
#                          [9:12] node_layer2 W, block-diag per layer
#                          [12:15] node_layer3 W, block-diag per layer
#   b_ref  (20, 128):      [0:3] bc1  [3:6] bc2  [6:9] b2  [9:12] b3
#                          [12:15] filter-at-distance-0 (self-loop correction)
#                          [15] tiled RBF centers   [16:20] one-hot spread matrix
#   wd1_ref (128, 256), wd2_ref (256, 128), bh_ref (2, 256): readout head.
def schnet_kernel(emb_ref, dist_ref, w_ref, b_ref, wd1_ref, wd2_ref, bh_ref, out_ref):
    G, N, PD = emb_ref.shape                     # G groups of P molecules, N atoms
    P = dist_ref.shape[3]
    rows_n = G * N
    rows_e = G * N * N

    node = emb_ref[...].reshape(rows_n, PD)      # lanes = (molecule p, feature d)

    # ---- Gaussian RBF, fully lane-dense -------------------------------------
    # Packed distances (edges, P) are spread onto 128 lanes with a tiny one-hot
    # matmul (K=4); the Gaussian and the linear1 matmul below then run at 100%
    # lane utilization.  Padding columns (>= P*F) carry exp(0)=1 but only ever
    # multiply all-zero rows of w_ref[l].
    dist_p = dist_ref[...].reshape(rows_e, P)
    spread = b_ref[16:16 + P, :]                 # (P, 128) one-hot spread matrix
    centers = b_ref[15:16, :]                    # (1, 128) tiled RBF centers
    d_lane = jnp.dot(dist_p, spread, preferred_element_type=jnp.float32)
    radial = d_lane - centers
    gauss = jnp.exp((-1.0 / RBF_GAP) * radial * radial)         # (rows_e, 128)

    # --------------------------- n_conv Interaction layers -------------------
    for l in range(N_CONV):
        # CFConv edge filter (node independent): RBF -> Linear -> Softplus -> Linear.
        h = jnp.dot(gauss, w_ref[l], preferred_element_type=jnp.float32) + b_ref[l:l + 1, :]
        h = _softplus(h, 0.5, 14.0)
        h = jnp.dot(h, w_ref[3 + l], preferred_element_type=jnp.float32) + b_ref[3 + l:4 + l, :]

        new_node = jnp.dot(node, w_ref[6 + l], preferred_element_type=jnp.float32)

        # message passing: cf[g,v] = sum_{u != v} new_node[g,u] * h(dist[g,u,v]);
        # the u==v term is removed with the precomputed filter at distance 0.
        msg = h.reshape(G, N, N, PD) * new_node.reshape(G, N, 1, PD)
        cf = jnp.sum(msg, axis=1).reshape(rows_n, PD)
        cf = cf - new_node * b_ref[12 + l:13 + l, :]

        cf = jnp.dot(cf, w_ref[9 + l], preferred_element_type=jnp.float32) + b_ref[6 + l:7 + l, :]
        cf = _softplus(cf, 0.5, 14.0)
        node = node + jnp.dot(cf, w_ref[12 + l], preferred_element_type=jnp.float32) \
                    + b_ref[9 + l:10 + l, :]

    # -------- readout: Linear(D,64) -> ShiftSoftplus -> mean_nodes -> Linear ---
    atom = jnp.dot(node, wd1_ref[...], preferred_element_type=jnp.float32) + bh_ref[0:1, :]
    atom = _softplus(atom, 1.0, 20.0) - math.log(2.0)            # ShiftSoftplus
    # dgl.mean_nodes commutes with the final linear layer.
    atom_mean = jnp.mean(atom.reshape(G, N, -1), axis=1)         # (G, P*HIDDEN)
    # wd2_ref maps the (p*H + h) lanes of group g to output column p -> (G, 128)
    res = jnp.dot(atom_mean, wd2_ref[...], preferred_element_type=jnp.float32)
    out_ref[0] = res + bh_ref[1:2, 0:PD]                         # unmasked 128-lane store


# ------------------------------ wrapper / glue --------------------------------
def pack_params(params):
    """Fuse/expand the per-layer parameters into 5 packed constant arrays."""
    P, D, F, H = PACK, DIM, FAN_OUT, HIDDEN
    PD = P * D
    centers = _CENTERS.reshape(1, F)

    wexp, wc2bd, w1bd, w2bd, w3bd = [], [], [], [], []
    bc1t, bc2t, b2t, b3t, hself = [], [], [], [], []
    for l in range(N_CONV):
        # RBF->linear1 block-diag, zero padded to 128x128 so the Gaussian stage
        # can stay lane dense (rows >= P*F are zero).
        blk = block_diag(*([params["wc1"][l]] * P))               # (P*F, PD)
        wexp.append(jnp.zeros((PD, PD), jnp.float32).at[:P * F, :].set(blk))
        wc2bd.append(block_diag(*([params["wc2"][l]] * P)))
        w1bd.append(block_diag(*([params["w1"][l]] * P)))
        w2bd.append(block_diag(*([params["w2"][l]] * P)))
        w3bd.append(block_diag(*([params["w3"][l]] * P)))
        bc1t.append(jnp.tile(params["bc1"][l], (1, P)))
        bc2t.append(jnp.tile(params["bc2"][l], (1, P)))
        b2t.append(jnp.tile(params["b2"][l], (1, P)))
        b3t.append(jnp.tile(params["b3"][l], (1, P)))
        # CFConv filter evaluated at distance 0 (self-loop correction); pure
        # function of the weights, so precomputed here instead of in-kernel.
        g0 = jnp.exp((-1.0 / RBF_GAP) * centers * centers)        # (1, F)
        hs = _softplus(g0 @ params["wc1"][l] + params["bc1"][l], 0.5, 14.0)
        hs = hs @ params["wc2"][l] + params["bc2"][l]             # (1, D)
        hself.append(jnp.tile(hs, (1, P)))

    wstack = jnp.stack(wexp + wc2bd + w1bd + w2bd + w3bd, axis=0)  # (15, PD, PD)

    ct_row = jnp.zeros((1, PD), jnp.float32).at[0, :P * F].set(jnp.tile(centers[0], P))
    spread = jnp.zeros((P, PD), jnp.float32)
    for p in range(P):
        spread = spread.at[p, p * F:(p + 1) * F].set(1.0)
    bstack = jnp.concatenate(bc1t + bc2t + b2t + b3t + hself + [ct_row, spread],
                             axis=0)                               # (20, PD)

    wd1_bd = block_diag(*([params["wd1"]] * P))                    # (PD, P*H)
    wd2_pad = jnp.zeros((P * H, PD), jnp.float32)
    for p in range(P):
        wd2_pad = wd2_pad.at[p * H:(p + 1) * H, p].set(params["wd2"][:, 0])
    bd1t = jnp.tile(params["bd1"], (1, P))                         # (1, P*H)
    out_bias = jnp.zeros((1, P * H), jnp.float32).at[0, :P].set(params["bd2"][0, 0])
    bhead = jnp.concatenate([bd1t, out_bias], axis=0)              # (2, P*H)

    return dict(wstack=wstack, bstack=bstack, wd1_bd=wd1_bd,
                wd2_pad=wd2_pad, bhead=bhead)


def schnet_forward(atom_types, pos, params, block_graphs=8):
    B, N = atom_types.shape
    P = PACK
    BB = block_graphs
    assert DIM * P == LANES == 128, "lane packing assumes PACK * DIM == 128"
    assert BB % P == 0, "molecule block must be a multiple of the lane-packing factor"
    assert B % BB == 0, "batch must be a multiple of the molecule block size"
    G = BB // P                                  # molecule groups per grid step
    nblk = B // BB                               # grid length

    # Glue: embedding lookup + pairwise distances (dgl builds these on ful_g),
    # then host-side layout plumbing to pack P molecules per 128-lane row.
    emb = params["embedding"][atom_types].astype(jnp.float32)               # (B, N, D)
    emb_p = emb.reshape(B // P, P, N, DIM).transpose(0, 2, 1, 3).reshape(B // P, N, LANES)
    diff = pos[:, :, None, :] - pos[:, None, :, :]
    dist = jnp.sqrt(jnp.sum(diff * diff, axis=-1))                          # (B, N, N)
    dist_p = dist.reshape(B // P, P, N, N).transpose(0, 2, 3, 1)            # (B//P, N, N, P)

    packed = pack_params(params)

    def const_spec(arr):
        nd = arr.ndim
        return pl.BlockSpec(arr.shape, lambda i, _nd=nd: (0,) * _nd)

    in_specs = [
        pl.BlockSpec((G, N, LANES), lambda i: (i, 0, 0)),       # packed node embeddings
        pl.BlockSpec((G, N, N, P), lambda i: (i, 0, 0, 0)),     # packed pairwise distances
        const_spec(packed["wstack"]),                           # all 128x128 weights
        const_spec(packed["bstack"]),                           # biases / self-filter / centers
        const_spec(packed["wd1_bd"]),                           # atom_dense_layer1 (block-diag)
        const_spec(packed["wd2_pad"]),                          # atom_dense_layer2 (column-packed)
        const_spec(packed["bhead"]),                            # head biases
    ]
    out_spec = pl.BlockSpec((1, G, LANES), lambda i: (i, 0, 0))

    out = pl.pallas_call(
        schnet_kernel,
        out_shape=jax.ShapeDtypeStruct((nblk, G, LANES), jnp.float32),
        grid=(nblk,),
        in_specs=in_specs,
        out_specs=out_spec,
        compiler_params=pltpu.CompilerParams(
            dimension_semantics=("parallel",),
            vmem_limit_bytes=32 * 1024 * 1024),
    )(emb_p, dist_p, packed["wstack"], packed["bstack"],
      packed["wd1_bd"], packed["wd2_pad"], packed["bhead"])

    # column p of group g of block i is molecule (i*G + g)*P + p
    return out[:, :, :P].reshape(B, OUTPUT_DIM)


# ------------------------ pure-JAX reference (for check) ----------------------
def schnet_reference(atom_types, pos, params):
    emb = params["embedding"][atom_types]
    diff = pos[:, :, None, :] - pos[:, None, :, :]
    dist = jnp.sqrt(jnp.sum(diff * diff, axis=-1))
    rbf = jnp.exp((-1.0 / RBF_GAP) * (dist[..., None] - _CENTERS) ** 2)        # (B,N,N,F)
    N = pos.shape[1]
    mask = (1.0 - jnp.eye(N, dtype=jnp.float32))[None, :, :, None]
    node = emb
    for l in range(N_CONV):
        new_node = node @ params["w1"][l]
        h = _softplus(rbf @ params["wc1"][l] + params["bc1"][l], 0.5, 14.0)
        h = h @ params["wc2"][l] + params["bc2"][l]
        msg = new_node[:, :, None, :] * h * mask
        cf = msg.sum(axis=1)
        cf = _softplus(cf @ params["w2"][l] + params["b2"][l], 0.5, 14.0)
        node = node + cf @ params["w3"][l] + params["b3"][l]
    atom = _softplus(node @ params["wd1"] + params["bd1"], 1.0, 20.0) - math.log(2.0)
    res = atom @ params["wd2"] + params["bd2"]
    return res.mean(axis=1)


# ----------------------------- deterministic init ------------------------------
def init_params(key):
    ks = jax.random.split(key, 16)

    def rnd(k, shape, scale=0.1):
        return (scale * jax.random.normal(k, shape)).astype(jnp.float32)

    emb = rnd(ks[0], (TYPE_NUM, DIM)).at[0].set(0.0)      # padding_idx=0
    return {
        "embedding": emb,
        "w1":  rnd(ks[1], (N_CONV, DIM, DIM)),
        "wc1": rnd(ks[2], (N_CONV, FAN_OUT, DIM)),
        "bc1": rnd(ks[3], (N_CONV, 1, DIM)),
        "wc2": rnd(ks[4], (N_CONV, DIM, DIM)),
        "bc2": rnd(ks[5], (N_CONV, 1, DIM)),
        "w2":  rnd(ks[6], (N_CONV, DIM, DIM)),
        "b2":  rnd(ks[7], (N_CONV, 1, DIM)),
        "w3":  rnd(ks[8], (N_CONV, DIM, DIM)),
        "b3":  rnd(ks[9], (N_CONV, 1, DIM)),
        "wd1": rnd(ks[10], (DIM, HIDDEN)),
        "bd1": rnd(ks[11], (1, HIDDEN)),
        "wd2": rnd(ks[12], (HIDDEN, OUTPUT_DIM)),
        "bd2": rnd(ks[13], (1, OUTPUT_DIM)),
    }


if __name__ == "__main__":
    key = jax.random.PRNGKey(0)
    kp, ka, kx = jax.random.split(key, 3)
    params = init_params(kp)

    B, N = 32, 8                                 # 32 molecules, 8 atoms each
    BB = 8                                       # molecules per grid step -> grid=(4,)
                                                 # (>= 2 'parallel' steps per v7x TC)
    atom_types = jax.random.randint(ka, (B, N), 1, TYPE_NUM)
    pos = (4.0 * jax.random.uniform(kx, (B, N, 3))).astype(jnp.float32)

    out = schnet_forward(atom_types, pos, params, block_graphs=BB)
    jax.block_until_ready(out)

    ref = schnet_reference(atom_types, pos, params)
    assert out.shape == (B, OUTPUT_DIM)
    assert jnp.allclose(out, ref, rtol=1e-3, atol=1e-3), (out, ref)

    print("KERNEL_OK")
</pallas_src>

<mosaic_0001>
module attributes {stable_mosaic.version = 11 : i64} {
  func.func @schnet_kernel(%arg0: i32, %arg1: memref<2x8x128xf32, #tpu.memory_space<vmem>>, %arg2: memref<2x8x8x4xf32, #tpu.memory_space<vmem>>, %arg3: memref<15x128x128xf32, #tpu.memory_space<vmem>>, %arg4: memref<20x128xf32, #tpu.memory_space<vmem>>, %arg5: memref<128x256xf32, #tpu.memory_space<vmem>>, %arg6: memref<256x128xf32, #tpu.memory_space<vmem>>, %arg7: memref<2x256xf32, #tpu.memory_space<vmem>>, %arg8: memref<1x2x128xf32, #tpu.memory_space<vmem>>) attributes {dimension_semantics = [#tpu.dimension_semantics<parallel>], iteration_bounds = array<i64: 4>, scalar_prefetch = 0 : i64, scratch_operands = 0 : i64, tpu.core_type = #tpu.core_type<tc>, window_params = [{transform_indices = @transform_0, window_bounds = array<i64: 2, 8, 128>}, {transform_indices = @transform_1, window_bounds = array<i64: 2, 8, 8, 4>}, {pipeline_mode = #tpu.pipeline_mode<synchronous>, transform_indices = @transform_2, window_bounds = array<i64: 15, 128, 128>}, {pipeline_mode = #tpu.pipeline_mode<synchronous>, transform_indices = @transform_3, window_bounds = array<i64: 20, 128>}, {pipeline_mode = #tpu.pipeline_mode<synchronous>, transform_indices = @transform_4, window_bounds = array<i64: 128, 256>}, {pipeline_mode = #tpu.pipeline_mode<synchronous>, transform_indices = @transform_5, window_bounds = array<i64: 256, 128>}, {pipeline_mode = #tpu.pipeline_mode<synchronous>, transform_indices = @transform_6, window_bounds = array<i64: 2, 256>}, {transform_indices = @transform_7, window_bounds = array<i64: 1, 2, 128>}]} {
    %c0 = arith.constant 0 : index
    %c0_0 = arith.constant 0 : index
    %c0_1 = arith.constant 0 : index
    %0 = vector.load %arg1[%c0, %c0_0, %c0_1] : memref<2x8x128xf32, #tpu.memory_space<vmem>>, vector<2x8x128xf32>
    %1 = vector.shape_cast %0 : vector<2x8x128xf32> to vector<16x128xf32>
    %c0_2 = arith.constant 0 : index
    %c0_3 = arith.constant 0 : index
    %c0_4 = arith.constant 0 : index
    %c0_5 = arith.constant 0 : index
    %2 = vector.load %arg2[%c0_2, %c0_3, %c0_4, %c0_5] : memref<2x8x8x4xf32, #tpu.memory_space<vmem>>, vector<2x8x8x4xf32>
    %3 = vector.shape_cast %2 : vector<2x8x8x4xf32> to vector<128x4xf32>
    %c16 = arith.constant 16 : index
    %c0_6 = arith.constant 0 : index
    %4 = vector.load %arg4[%c16, %c0_6] : memref<20x128xf32, #tpu.memory_space<vmem>>, vector<4x128xf32>
    %c15 = arith.constant 15 : index
    %c0_7 = arith.constant 0 : index
    %5 = vector.load %arg4[%c15, %c0_7] : memref<20x128xf32, #tpu.memory_space<vmem>>, vector<1x128xf32>
    %cst = arith.constant dense<0.000000e+00> : vector<128x128xf32>
    %6 = tpu.matmul %3, %4, %cst {dimension_numbers = #tpu.dot_dimension_numbers<[1], [0], [0], [1], [0, 0, 1, 1], [], []>} : vector<128x4xf32>, vector<4x128xf32>, vector<128x128xf32> -> vector<128x128xf32>
    %7 = vector.broadcast %5 : vector<1x128xf32> to vector<128x128xf32>
    %8 = arith.subf %6, %7 : vector<128x128xf32>
    %cst_8 = arith.constant -8.000000e-01 : f32
    %9 = vector.broadcast %cst_8 : f32 to vector<128x128xf32>
    %10 = arith.mulf %9, %8 : vector<128x128xf32>
    %11 = arith.mulf %10, %8 : vector<128x128xf32>
    %12 = math.exp %11 : vector<128x128xf32>
    %c0_9 = arith.constant 0 : index
    %c0_10 = arith.constant 0 : index
    %c0_11 = arith.constant 0 : index
    %13 = vector.load %arg3[%c0_9, %c0_10, %c0_11] : memref<15x128x128xf32, #tpu.memory_space<vmem>>, vector<1x128x128xf32>
    %14 = vector.shape_cast %13 : vector<1x128x128xf32> to vector<128x128xf32>
    %cst_12 = arith.constant dense<0.000000e+00> : vector<128x128xf32>
    %15 = tpu.matmul %12, %14, %cst_12 {dimension_numbers = #tpu.dot_dimension_numbers<[1], [0], [0], [1], [0, 0, 1, 1], [], []>} : vector<128x128xf32>, vector<128x128xf32>, vector<128x128xf32> -> vector<128x128xf32>
    %c0_13 = arith.constant 0 : index
    %c0_14 = arith.constant 0 : index
    %16 = vector.load %arg4[%c0_13, %c0_14] : memref<20x128xf32, #tpu.memory_space<vmem>>, vector<1x128xf32>
    %17 = vector.broadcast %16 : vector<1x128xf32> to vector<128x128xf32>
    %18 = arith.addf %15, %17 : vector<128x128xf32>
    %cst_15 = arith.constant 5.000000e-01 : f32
    %19 = vector.broadcast %cst_15 : f32 to vector<128x128xf32>
    %20 = arith.mulf %19, %18 : vector<128x128xf32>
    %cst_16 = arith.constant 1.400000e+01 : f32
    %21 = vector.broadcast %cst_16 : f32 to vector<128x128xf32>
    %22 = arith.minimumf %20, %21 : vector<128x128xf32>
    %cst_17 = arith.constant 1.400000e+01 : f32
    %23 = vector.broadcast %cst_17 : f32 to vector<128x128xf32>
    %24 = arith.cmpf ogt, %20, %23 : vector<128x128xf32>
    %25 = math.exp %22 : vector<128x128xf32>
    %26 = math.log1p %25 : vector<128x128xf32>
    %cst_18 = arith.constant 2.000000e+00 : f32
    %27 = vector.broadcast %cst_18 : f32 to vector<128x128xf32>
    %28 = arith.mulf %27, %26 : vector<128x128xf32>
    %29 = arith.select %24, %18, %28 : vector<128x128xi1>, vector<128x128xf32>
    %c3 = arith.constant 3 : index
    %c0_19 = arith.constant 0 : index
    %c0_20 = arith.constant 0 : index
    %30 = vector.load %arg3[%c3, %c0_19, %c0_20] : memref<15x128x128xf32, #tpu.memory_space<vmem>>, vector<1x128x128xf32>
    %31 = vector.shape_cast %30 : vector<1x128x128xf32> to vector<128x128xf32>
    %cst_21 = arith.constant dense<0.000000e+00> : vector<128x128xf32>
    %32 = tpu.matmul %29, %31, %cst_21 {dimension_numbers = #tpu.dot_dimension_numbers<[1], [0], [0], [1], [0, 0, 1, 1], [], []>} : vector<128x128xf32>, vector<128x128xf32>, vector<128x128xf32> -> vector<128x128xf32>
    %c3_22 = arith.constant 3 : index
    %c0_23 = arith.constant 0 : index
    %33 = vector.load %arg4[%c3_22, %c0_23] : memref<20x128xf32, #tpu.memory_space<vmem>>, vector<1x128xf32>
    %34 = vector.broadcast %33 : vector<1x128xf32> to vector<128x128xf32>
    %35 = arith.addf %32, %34 : vector<128x128xf32>
    %c6 = arith.constant 6 : index
    %c0_24 = arith.constant 0 : index
    %c0_25 = arith.constant 0 : index
    %36 = vector.load %arg3[%c6, %c0_24, %c0_25] : memref<15x128x128xf32, #tpu.memory_space<vmem>>, vector<1x128x128xf32>
    %37 = vector.shape_cast %36 : vector<1x128x128xf32> to vector<128x128xf32>
    %cst_26 = arith.constant dense<0.000000e+00> : vector<16x128xf32>
    %38 = tpu.matmul %1, %37, %cst_26 {dimension_numbers = #tpu.dot_dimension_numbers<[1], [0], [0], [1], [0, 0, 1, 1], [], []>} : vector<16x128xf32>, vector<128x128xf32>, vector<16x128xf32> -> vector<16x128xf32>
    %39 = vector.shape_cast %35 : vector<128x128xf32> to vector<2x8x8x128xf32>
    %40 = vector.shape_cast %38 : vector<16x128xf32> to vector<2x8x1x128xf32>
    %41 = vector.broadcast %40 : vector<2x8x1x128xf32> to vector<2x8x8x128xf32>
    %42 = arith.mulf %39, %41 : vector<2x8x8x128xf32>
    %cst_27 = arith.constant dense<0.000000e+00> : vector<2x8x128xf32>
    %43 = vector.multi_reduction <add>, %42, %cst_27 [1] : vector<2x8x8x128xf32> to vector<2x8x128xf32>
    %44 = vector.shape_cast %43 : vector<2x8x128xf32> to vector<16x128xf32>
    %c12 = arith.constant 12 : index
    %c0_28 = arith.constant 0 : index
    %45 = vector.load %arg4[%c12, %c0_28] : memref<20x128xf32, #tpu.memory_space<vmem>>, vector<1x128xf32>
    %46 = vector.broadcast %45 : vector<1x128xf32> to vector<16x128xf32>
    %47 = arith.mulf %38, %46 : vector<16x128xf32>
    %48 = arith.subf %44, %47 : vector<16x128xf32>
    %c9 = arith.constant 9 : index
    %c0_29 = arith.constant 0 : index
    %c0_30 = arith.constant 0 : index
    %49 = vector.load %arg3[%c9, %c0_29, %c0_30] : memref<15x128x128xf32, #tpu.memory_space<vmem>>, vector<1x128x128xf32>
    %50 = vector.shape_cast %49 : vector<1x128x128xf32> to vector<128x128xf32>
    %cst_31 = arith.constant dense<0.000000e+00> : vector<16x128xf32>
    %51 = tpu.matmul %48, %50, %cst_31 {dimension_numbers = #tpu.dot_dimension_numbers<[1], [0], [0], [1], [0, 0, 1, 1], [], []>} : vector<16x128xf32>, vector<128x128xf32>, vector<16x128xf32> -> vector<16x128xf32>
    %c6_32 = arith.constant 6 : index
    %c0_33 = arith.constant 0 : index
    %52 = vector.load %arg4[%c6_32, %c0_33] : memref<20x128xf32, #tpu.memory_space<vmem>>, vector<1x128xf32>
    %53 = vector.broadcast %52 : vector<1x128xf32> to vector<16x128xf32>
    %54 = arith.addf %51, %53 : vector<16x128xf32>
    %cst_34 = arith.constant 5.000000e-01 : f32
    %55 = vector.broadcast %cst_34 : f32 to vector<16x128xf32>
    %56 = arith.mulf %55, %54 : vector<16x128xf32>
    %cst_35 = arith.constant 1.400000e+01 : f32
    %57 = vector.broadcast %cst_35 : f32 to vector<16x128xf32>
    %58 = arith.minimumf %56, %57 : vector<16x128xf32>
    %cst_36 = arith.constant 1.400000e+01 : f32
    %59 = vector.broadcast %cst_36 : f32 to vector<16x128xf32>
    %60 = arith.cmpf ogt, %56, %59 : vector<16x128xf32>
    %61 = math.exp %58 : vector<16x128xf32>
    %62 = math.log1p %61 : vector<16x128xf32>
    %cst_37 = arith.constant 2.000000e+00 : f32
    %63 = vector.broadcast %cst_37 : f32 to vector<16x128xf32>
    %64 = arith.mulf %63, %62 : vector<16x128xf32>
    %65 = arith.select %60, %54, %64 : vector<16x128xi1>, vector<16x128xf32>
    %c12_38 = arith.constant 12 : index
    %c0_39 = arith.constant 0 : index
    %c0_40 = arith.constant 0 : index
    %66 = vector.load %arg3[%c12_38, %c0_39, %c0_40] : memref<15x128x128xf32, #tpu.memory_space<vmem>>, vector<1x128x128xf32>
    %67 = vector.shape_cast %66 : vector<1x128x128xf32> to vector<128x128xf32>
    %cst_41 = arith.constant dense<0.000000e+00> : vector<16x128xf32>
    %68 = tpu.matmul %65, %67, %cst_41 {dimension_numbers = #tpu.dot_dimension_numbers<[1], [0], [0], [1], [0, 0, 1, 1], [], []>} : vector<16x128xf32>, vector<128x128xf32>, vector<16x128xf32> -> vector<16x128xf32>
    %69 = arith.addf %1, %68 : vector<16x128xf32>
    %c9_42 = arith.constant 9 : index
    %c0_43 = arith.constant 0 : index
    %70 = vector.load %arg4[%c9_42, %c0_43] : memref<20x128xf32, #tpu.memory_space<vmem>>, vector<1x128xf32>
    %71 = vector.broadcast %70 : vector<1x128xf32> to vector<16x128xf32>
    %72 = arith.addf %69, %71 : vector<16x128xf32>
    %c1 = arith.constant 1 : index
    %c0_44 = arith.constant 0 : index
    %c0_45 = arith.constant 0 : index
    %73 = vector.load %arg3[%c1, %c0_44, %c0_45] : memref<15x128x128xf32, #tpu.memory_space<vmem>>, vector<1x128x128xf32>
    %74 = vector.shape_cast %73 : vector<1x128x128xf32> to vector<128x128xf32>
    %cst_46 = arith.constant dense<0.000000e+00> : vector<128x128xf32>
    %75 = tpu.matmul %12, %74, %cst_46 {dimension_numbers = #tpu.dot_dimension_numbers<[1], [0], [0], [1], [0, 0, 1, 1], [], []>} : vector<128x128xf32>, vector<128x128xf32>, vector<128x128xf32> -> vector<128x128xf32>
    %c1_47 = arith.constant 1 : index
    %c0_48 = arith.constant 0 : index
    %76 = vector.load %arg4[%c1_47, %c0_48] : memref<20x128xf32, #tpu.memory_space<vmem>>, vector<1x128xf32>
    %77 = vector.broadcast %76 : vector<1x128xf32> to vector<128x128xf32>
    %78 = arith.addf %75, %77 : vector<128x128xf32>
    %cst_49 = arith.constant 5.000000e-01 : f32
    %79 = vector.broadcast %cst_49 : f32 to vector<128x128xf32>
    %80 = arith.mulf %79, %78 : vector<128x128xf32>
    %cst_50 = arith.constant 1.400000e+01 : f32
    %81 = vector.broadcast %cst_50 : f32 to vector<128x128xf32>
    %82 = arith.minimumf %80, %81 : vector<128x128xf32>
    %cst_51 = arith.constant 1.400000e+01 : f32
    %83 = vector.broadcast %cst_51 : f32 to vector<128x128xf32>
    %84 = arith.cmpf ogt, %80, %83 : vector<128x128xf32>
    %85 = math.exp %82 : vector<128x128xf32>
    %86 = math.log1p %85 : vector<128x128xf32>
    %cst_52 = arith.constant 2.000000e+00 : f32
    %87 = vector.broadcast %cst_52 : f32 to vector<128x128xf32>
    %88 = arith.mulf %87, %86 : vector<128x128xf32>
    %89 = arith.select %84, %78, %88 : vector<128x128xi1>, vector<128x128xf32>
    %c4 = arith.constant 4 : index
    %c0_53 = arith.constant 0 : index
    %c0_54 = arith.constant 0 : index
    %90 = vector.load %arg3[%c4, %c0_53, %c0_54] : memref<15x128x128xf32, #tpu.memory_space<vmem>>, vector<1x128x128xf32>
    %91 = vector.shape_cast %90 : vector<1x128x128xf32> to vector<128x128xf32>
    %cst_55 = arith.constant dense<0.000000e+00> : vector<128x128xf32>
    %92 = tpu.matmul %89, %91, %cst_55 {dimension_numbers = #tpu.dot_dimension_numbers<[1], [0], [0], [1], [0, 0, 1, 1], [], []>} : vector<128x128xf32>, vector<128x128xf32>, vector<128x128xf32> -> vector<128x128xf32>
    %c4_56 = arith.constant 4 : index
    %c0_57 = arith.constant 0 : index
    %93 = vector.load %arg4[%c4_56, %c0_57] : memref<20x128xf32, #tpu.memory_space<vmem>>, vector<1x128xf32>
    %94 = vector.broadcast %93 : vector<1x128xf32> to vector<128x128xf32>
    %95 = arith.addf %92, %94 : vector<128x128xf32>
    %c7 = arith.constant 7 : index
    %c0_58 = arith.constant 0 : index
    %c0_59 = arith.constant 0 : index
    %96 = vector.load %arg3[%c7, %c0_58, %c0_59] : memref<15x128x128xf32, #tpu.memory_space<vmem>>, vector<1x128x128xf32>
    %97 = vector.shape_cast %96 : vector<1x128x128xf32> to vector<128x128xf32>
    %cst_60 = arith.constant dense<0.000000e+00> : vector<16x128xf32>
    %98 = tpu.matmul %72, %97, %cst_60 {dimension_numbers = #tpu.dot_dimension_numbers<[1], [0], [0], [1], [0, 0, 1, 1], [], []>} : vector<16x128xf32>, vector<128x128xf32>, vector<16x128xf32> -> vector<16x128xf32>
    %99 = vector.shape_cast %95 : vector<128x128xf32> to vector<2x8x8x128xf32>
    %100 = vector.shape_cast %98 : vector<16x128xf32> to vector<2x8x1x128xf32>
    %101 = vector.broadcast %100 : vector<2x8x1x128xf32> to vector<2x8x8x128xf32>
    %102 = arith.mulf %99, %101 : vector<2x8x8x128xf32>
    %cst_61 = arith.constant dense<0.000000e+00> : vector<2x8x128xf32>
    %103 = vector.multi_reduction <add>, %102, %cst_61 [1] : vector<2x8x8x128xf32> to vector<2x8x128xf32>
    %104 = vector.shape_cast %103 : vector<2x8x128xf32> to vector<16x128xf32>
    %c13 = arith.constant 13 : index
    %c0_62 = arith.constant 0 : index
    %105 = vector.load %arg4[%c13, %c0_62] : memref<20x128xf32, #tpu.memory_space<vmem>>, vector<1x128xf32>
    %106 = vector.broadcast %105 : vector<1x128xf32> to vector<16x128xf32>
    %107 = arith.mulf %98, %106 : vector<16x128xf32>
    %108 = arith.subf %104, %107 : vector<16x128xf32>
    %c10 = arith.constant 10 : index
    %c0_63 = arith.constant 0 : index
    %c0_64 = arith.constant 0 : index
    %109 = vector.load %arg3[%c10, %c0_63, %c0_64] : memref<15x128x128xf32, #tpu.memory_space<vmem>>, vector<1x128x128xf32>
    %110 = vector.shape_cast %109 : vector<1x128x128xf32> to vector<128x128xf32>
    %cst_65 = arith.constant dense<0.000000e+00> : vector<16x128xf32>
    %111 = tpu.matmul %108, %110, %cst_65 {dimension_numbers = #tpu.dot_dimension_numbers<[1], [0], [0], [1], [0, 0, 1, 1], [], []>} : vector<16x128xf32>, vector<128x128xf32>, vector<16x128xf32> -> vector<16x128xf32>
    %c7_66 = arith.constant 7 : index
    %c0_67 = arith.constant 0 : index
    %112 = vector.load %arg4[%c7_66, %c0_67] : memref<20x128xf32, #tpu.memory_space<vmem>>, vector<1x128xf32>
    %113 = vector.broadcast %112 : vector<1x128xf32> to vector<16x128xf32>
    %114 = arith.addf %111, %113 : vector<16x128xf32>
    %cst_68 = arith.constant 5.000000e-01 : f32
    %115 = vector.broadcast %cst_68 : f32 to vector<16x128xf32>
    %116 = arith.mulf %115, %114 : vector<16x128xf32>
    %cst_69 = arith.constant 1.400000e+01 : f32
    %117 = vector.broadcast %cst_69 : f32 to vector<16x128xf32>
    %118 = arith.minimumf %116, %117 : vector<16x128xf32>
    %cst_70 = arith.constant 1.400000e+01 : f32
    %119 = vector.broadcast %cst_70 : f32 to vector<16x128xf32>
    %120 = arith.cmpf ogt, %116, %119 : vector<16x128xf32>
    %121 = math.exp %118 : vector<16x128xf32>
    %122 = math.log1p %121 : vector<16x128xf32>
    %cst_71 = arith.constant 2.000000e+00 : f32
    %123 = vector.broadcast %cst_71 : f32 to vector<16x128xf32>
    %124 = arith.mulf %123, %122 : vector<16x128xf32>
    %125 = arith.select %120, %114, %124 : vector<16x128xi1>, vector<16x128xf32>
    %c13_72 = arith.constant 13 : index
    %c0_73 = arith.constant 0 : index
    %c0_74 = arith.constant 0 : index
    %126 = vector.load %arg3[%c13_72, %c0_73, %c0_74] : memref<15x128x128xf32, #tpu.memory_space<vmem>>, vector<1x128x128xf32>
    %127 = vector.shape_cast %126 : vector<1x128x128xf32> to vector<128x128xf32>
    %cst_75 = arith.constant dense<0.000000e+00> : vector<16x128xf32>
    %128 = tpu.matmul %125, %127, %cst_75 {dimension_numbers = #tpu.dot_dimension_numbers<[1], [0], [0], [1], [0, 0, 1, 1], [], []>} : vector<16x128xf32>, vector<128x128xf32>, vector<16x128xf32> -> vector<16x128xf32>
    %129 = arith.addf %72, %128 : vector<16x128xf32>
    %c10_76 = arith.constant 10 : index
    %c0_77 = arith.constant 0 : index
    %130 = vector.load %arg4[%c10_76, %c0_77] : memref<20x128xf32, #tpu.memory_space<vmem>>, vector<1x128xf32>
    %131 = vector.broadcast %130 : vector<1x128xf32> to vector<16x128xf32>
    %132 = arith.addf %129, %131 : vector<16x128xf32>
    %c2 = arith.constant 2 : index
    %c0_78 = arith.constant 0 : index
    %c0_79 = arith.constant 0 : index
    %133 = vector.load %arg3[%c2, %c0_78, %c0_79] : memref<15x128x128xf32, #tpu.memory_space<vmem>>, vector<1x128x128xf32>
    %134 = vector.shape_cast %133 : vector<1x128x128xf32> to vector<128x128xf32>
    %cst_80 = arith.constant dense<0.000000e+00> : vector<128x128xf32>
    %135 = tpu.matmul %12, %134, %cst_80 {dimension_numbers = #tpu.dot_dimension_numbers<[1], [0], [0], [1], [0, 0, 1, 1], [], []>} : vector<128x128xf32>, vector<128x128xf32>, vector<128x128xf32> -> vector<128x128xf32>
    %c2_81 = arith.constant 2 : index
    %c0_82 = arith.constant 0 : index
    %136 = vector.load %arg4[%c2_81, %c0_82] : memref<20x128xf32, #tpu.memory_space<vmem>>, vector<1x128xf32>
    %137 = vector.broadcast %136 : vector<1x128xf32> to vector<128x128xf32>
    %138 = arith.addf %135, %137 : vector<128x128xf32>
    %cst_83 = arith.constant 5.000000e-01 : f32
    %139 = vector.broadcast %cst_83 : f32 to vector<128x128xf32>
    %140 = arith.mulf %139, %138 : vector<128x128xf32>
    %cst_84 = arith.constant 1.400000e+01 : f32
    %141 = vector.broadcast %cst_84 : f32 to vector<128x128xf32>
    %142 = arith.minimumf %140, %141 : vector<128x128xf32>
    %cst_85 = arith.constant 1.400000e+01 : f32
    %143 = vector.broadcast %cst_85 : f32 to vector<128x128xf32>
    %144 = arith.cmpf ogt, %140, %143 : vector<128x128xf32>
    %145 = math.exp %142 : vector<128x128xf32>
    %146 = math.log1p %145 : vector<128x128xf32>
    %cst_86 = arith.constant 2.000000e+00 : f32
    %147 = vector.broadcast %cst_86 : f32 to vector<128x128xf32>
    %148 = arith.mulf %147, %146 : vector<128x128xf32>
    %149 = arith.select %144, %138, %148 : vector<128x128xi1>, vector<128x128xf32>
    %c5 = arith.constant 5 : index
    %c0_87 = arith.constant 0 : index
    %c0_88 = arith.constant 0 : index
    %150 = vector.load %arg3[%c5, %c0_87, %c0_88] : memref<15x128x128xf32, #tpu.memory_space<vmem>>, vector<1x128x128xf32>
    %151 = vector.shape_cast %150 : vector<1x128x128xf32> to vector<128x128xf32>
    %cst_89 = arith.constant dense<0.000000e+00> : vector<128x128xf32>
    %152 = tpu.matmul %149, %151, %cst_89 {dimension_numbers = #tpu.dot_dimension_numbers<[1], [0], [0], [1], [0, 0, 1, 1], [], []>} : vector<128x128xf32>, vector<128x128xf32>, vector<128x128xf32> -> vector<128x128xf32>
    %c5_90 = arith.constant 5 : index
    %c0_91 = arith.constant 0 : index
    %153 = vector.load %arg4[%c5_90, %c0_91] : memref<20x128xf32, #tpu.memory_space<vmem>>, vector<1x128xf32>
    %154 = vector.broadcast %153 : vector<1x128xf32> to vector<128x128xf32>
    %155 = arith.addf %152, %154 : vector<128x128xf32>
    %c8 = arith.constant 8 : index
    %c0_92 = arith.constant 0 : index
    %c0_93 = arith.constant 0 : index
    %156 = vector.load %arg3[%c8, %c0_92, %c0_93] : memref<15x128x128xf32, #tpu.memory_space<vmem>>, vector<1x128x128xf32>
    %157 = vector.shape_cast %156 : vector<1x128x128xf32> to vector<128x128xf32>
    %cst_94 = arith.constant dense<0.000000e+00> : vector<16x128xf32>
    %158 = tpu.matmul %132, %157, %cst_94 {dimension_numbers = #tpu.dot_dimension_numbers<[1], [0], [0], [1], [0, 0, 1, 1], [], []>} : vector<16x128xf32>, vector<128x128xf32>, vector<16x128xf32> -> vector<16x128xf32>
    %159 = vector.shape_cast %155 : vector<128x128xf32> to vector<2x8x8x128xf32>
    %160 = vector.shape_cast %158 : vector<16x128xf32> to vector<2x8x1x128xf32>
    %161 = vector.broadcast %160 : vector<2x8x1x128xf32> to vector<2x8x8x128xf32>
    %162 = arith.mulf %159, %161 : vector<2x8x8x128xf32>
    %cst_95 = arith.constant dense<0.000000e+00> : vector<2x8x128xf32>
    %163 = vector.multi_reduction <add>, %162, %cst_95 [1] : vector<2x8x8x128xf32> to vector<2x8x128xf32>
    %164 = vector.shape_cast %163 : vector<2x8x128xf32> to vector<16x128xf32>
    %c14 = arith.constant 14 : index
    %c0_96 = arith.constant 0 : index
    %165 = vector.load %arg4[%c14, %c0_96] : memref<20x128xf32, #tpu.memory_space<vmem>>, vector<1x128xf32>
    %166 = vector.broadcast %165 : vector<1x128xf32> to vector<16x128xf32>
    %167 = arith.mulf %158, %166 : vector<16x128xf32>
    %168 = arith.subf %164, %167 : vector<16x128xf32>
    %c11 = arith.constant 11 : index
    %c0_97 = arith.constant 0 : index
    %c0_98 = arith.constant 0 : index
    %169 = vector.load %arg3[%c11, %c0_97, %c0_98] : memref<15x128x128xf32, #tpu.memory_space<vmem>>, vector<1x128x128xf32>
    %170 = vector.shape_cast %169 : vector<1x128x128xf32> to vector<128x128xf32>
    %cst_99 = arith.constant dense<0.000000e+00> : vector<16x128xf32>
    %171 = tpu.matmul %168, %170, %cst_99 {dimension_numbers = #tpu.dot_dimension_numbers<[1], [0], [0], [1], [0, 0, 1, 1], [], []>} : vector<16x128xf32>, vector<128x128xf32>, vector<16x128xf32> -> vector<16x128xf32>
    %c8_100 = arith.constant 8 : index
    %c0_101 = arith.constant 0 : index
    %172 = vector.load %arg4[%c8_100, %c0_101] : memref<20x128xf32, #tpu.memory_space<vmem>>, vector<1x128xf32>
    %173 = vector.broadcast %172 : vector<1x128xf32> to vector<16x128xf32>
    %174 = arith.addf %171, %173 : vector<16x128xf32>
    %cst_102 = arith.constant 5.000000e-01 : f32
    %175 = vector.broadcast %cst_102 : f32 to vector<16x128xf32>
    %176 = arith.mulf %175, %174 : vector<16x128xf32>
    %cst_103 = arith.constant 1.400000e+01 : f32
    %177 = vector.broadcast %cst_103 : f32 to vector<16x128xf32>
    %178 = arith.minimumf %176, %177 : vector<16x128xf32>
    %cst_104 = arith.constant 1.400000e+01 : f32
    %179 = vector.broadcast %cst_104 : f32 to vector<16x128xf32>
    %180 = arith.cmpf ogt, %176, %179 : vector<16x128xf32>
    %181 = math.exp %178 : vector<16x128xf32>
    %182 = math.log1p %181 : vector<16x128xf32>
    %cst_105 = arith.constant 2.000000e+00 : f32
    %183 = vector.broadcast %cst_105 : f32 to vector<16x128xf32>
    %184 = arith.mulf %183, %182 : vector<16x128xf32>
    %185 = arith.select %180, %174, %184 : vector<16x128xi1>, vector<16x128xf32>
    %c14_106 = arith.constant 14 : index
    %c0_107 = arith.constant 0 : index
    %c0_108 = arith.constant 0 : index
    %186 = vector.load %arg3[%c14_106, %c0_107, %c0_108] : memref<15x128x128xf32, #tpu.memory_space<vmem>>, vector<1x128x128xf32>
    %187 = vector.shape_cast %186 : vector<1x128x128xf32> to vector<128x128xf32>
    %cst_109 = arith.constant dense<0.000000e+00> : vector<16x128xf32>
    %188 = tpu.matmul %185, %187, %cst_109 {dimension_numbers = #tpu.dot_dimension_numbers<[1], [0], [0], [1], [0, 0, 1, 1], [], []>} : vector<16x128xf32>, vector<128x128xf32>, vector<16x128xf32> -> vector<16x128xf32>
    %189 = arith.addf %132, %188 : vector<16x128xf32>
    %c11_110 = arith.constant 11 : index
    %c0_111 = arith.constant 0 : index
    %190 = vector.load %arg4[%c11_110, %c0_111] : memref<20x128xf32, #tpu.memory_space<vmem>>, vector<1x128xf32>
    %191 = vector.broadcast %190 : vector<1x128xf32> to vector<16x128xf32>
    %192 = arith.addf %189, %191 : vector<16x128xf32>
    %c0_112 = arith.constant 0 : index
    %c0_113 = arith.constant 0 : index
    %193 = vector.load %arg5[%c0_112, %c0_113] : memref<128x256xf32, #tpu.memory_space<vmem>>, vector<128x256xf32>
    %cst_114 = arith.constant dense<0.000000e+00> : vector<16x256xf32>
    %194 = tpu.matmul %192, %193, %cst_114 {dimension_numbers = #tpu.dot_dimension_numbers<[1], [0], [0], [1], [0, 0, 1, 1], [], []>} : vector<16x128xf32>, vector<128x256xf32>, vector<16x256xf32> -> vector<16x256xf32>
    %c0_115 = arith.constant 0 : index
    %c0_116 = arith.constant 0 : index
    %195 = vector.load %arg7[%c0_115, %c0_116] : memref<2x256xf32, #tpu.memory_space<vmem>>, vector<1x256xf32>
    %196 = vector.broadcast %195 : vector<1x256xf32> to vector<16x256xf32>
    %197 = arith.addf %194, %196 : vector<16x256xf32>
    %cst_117 = arith.constant 1.000000e+00 : f32
    %198 = vector.broadcast %cst_117 : f32 to vector<16x256xf32>
    %199 = arith.mulf %198, %197 : vector<16x256xf32>
    %cst_118 = arith.constant 2.000000e+01 : f32
    %200 = vector.broadcast %cst_118 : f32 to vector<16x256xf32>
    %201 = arith.minimumf %199, %200 : vector<16x256xf32>
    %cst_119 = arith.constant 2.000000e+01 : f32
    %202 = vector.broadcast %cst_119 : f32 to vector<16x256xf32>
    %203 = arith.cmpf ogt, %199, %202 : vector<16x256xf32>
    %204 = math.exp %201 : vector<16x256xf32>
    %205 = math.log1p %204 : vector<16x256xf32>
    %cst_120 = arith.constant 1.000000e+00 : f32
    %206 = vector.broadcast %cst_120 : f32 to vector<16x256xf32>
    %207 = arith.mulf %206, %205 : vector<16x256xf32>
    %208 = arith.select %203, %197, %207 : vector<16x256xi1>, vector<16x256xf32>
    %cst_121 = arith.constant 0.693147182 : f32
    %209 = vector.broadcast %cst_121 : f32 to vector<16x256xf32>
    %210 = arith.subf %208, %209 : vector<16x256xf32>
    %211 = vector.shape_cast %210 : vector<16x256xf32> to vector<2x8x256xf32>
    %cst_122 = arith.constant dense<0.000000e+00> : vector<2x256xf32>
    %212 = vector.multi_reduction <add>, %211, %cst_122 [1] : vector<2x8x256xf32> to vector<2x256xf32>
    %cst_123 = arith.constant 8.000000e+00 : f32
    %213 = vector.broadcast %cst_123 : f32 to vector<2x256xf32>
    %214 = arith.divf %212, %213 : vector<2x256xf32>
    %c0_124 = arith.constant 0 : index
    %c0_125 = arith.constant 0 : index
    %215 = vector.load %arg6[%c0_124, %c0_125] : memref<256x128xf32, #tpu.memory_space<vmem>>, vector<256x128xf32>
    %cst_126 = arith.constant dense<0.000000e+00> : vector<2x128xf32>
    %216 = tpu.matmul %214, %215, %cst_126 {dimension_numbers = #tpu.dot_dimension_numbers<[1], [0], [0], [1], [0, 0, 1, 1], [], []>} : vector<2x256xf32>, vector<256x128xf32>, vector<2x128xf32> -> vector<2x128xf32>
    %c1_127 = arith.constant 1 : index
    %c0_128 = arith.constant 0 : index
    %217 = vector.load %arg7[%c1_127, %c0_128] : memref<2x256xf32, #tpu.memory_space<vmem>>, vector<1x128xf32>
    %218 = vector.broadcast %217 : vector<1x128xf32> to vector<2x128xf32>
    %219 = arith.addf %216, %218 : vector<2x128xf32>
    %c0_129 = arith.constant 0 : index
    %c0_130 = arith.constant 0 : index
    %c0_131 = arith.constant 0 : index
    %220 = vector.load %arg8[%c0_129, %c0_130, %c0_131] : memref<1x2x128xf32, #tpu.memory_space<vmem>>, vector<1x2x128xf32>
    %221 = vector.shape_cast %220 : vector<1x2x128xf32> to vector<2x128xf32>
    %222 = vector.shape_cast %219 : vector<2x128xf32> to vector<1x2x128xf32>
    tpu.vector_store %arg8[%c0_129, %c0_130, %c0_131], %222 {strides = array<i32>} : memref<1x2x128xf32, #tpu.memory_space<vmem>>, vector<1x2x128xf32>,
    return
  }
  func.func @transform_0(%arg0: i32) -> (i32, i32, i32) {
    %c0_i32 = arith.constant 0 : i32
    %c0_i32_0 = arith.constant 0 : i32
    %c0_i32_1 = arith.constant 0 : i32
    return %arg0, %c0_i32, %c0_i32_0 : i32, i32, i32
  }
  func.func @transform_1(%arg0: i32) -> (i32, i32, i32, i32) {
    %c0_i32 = arith.constant 0 : i32
    %c0_i32_0 = arith.constant 0 : i32
    %c0_i32_1 = arith.constant 0 : i32
    %c0_i32_2 = arith.constant 0 : i32
    return %arg0, %c0_i32, %c0_i32_0, %c0_i32_1 : i32, i32, i32, i32
  }
  func.func @transform_2(%arg0: i32) -> (i32, i32, i32) {
    %c0_i32 = arith.constant 0 : i32
    %c0_i32_0 = arith.constant 0 : i32
    %c0_i32_1 = arith.constant 0 : i32
    %c0_i32_2 = arith.constant 0 : i32
    return %c0_i32, %c0_i32_0, %c0_i32_1 : i32, i32, i32
  }
  func.func @transform_3(%arg0: i32) -> (i32, i32) {
    %c0_i32 = arith.constant 0 : i32
    %c0_i32_0 = arith.constant 0 : i32
    %c0_i32_1 = arith.constant 0 : i32
    return %c0_i32, %c0_i32_0 : i32, i32
  }
  func.func @transform_4(%arg0: i32) -> (i32, i32) {
    %c0_i32 = arith.constant 0 : i32
    %c0_i32_0 = arith.constant 0 : i32
    %c0_i32_1 = arith.constant 0 : i32
    return %c0_i32, %c0_i32_0 : i32, i32
  }
  func.func @transform_5(%arg0: i32) -> (i32, i32) {
    %c0_i32 = arith.constant 0 : i32
    %c0_i32_0 = arith.constant 0 : i32
    %c0_i32_1 = arith.constant 0 : i32
    return %c0_i32, %c0_i32_0 : i32, i32
  }
  func.func @transform_6(%arg0: i32) -> (i32, i32) {
    %c0_i32 = arith.constant 0 : i32
    %c0_i32_0 = arith.constant 0 : i32
    %c0_i32_1 = arith.constant 0 : i32
    return %c0_i32, %c0_i32_0 : i32, i32
  }
  func.func @transform_7(%arg0: i32) -> (i32, i32, i32) {
    %c0_i32 = arith.constant 0 : i32
    %c0_i32_0 = arith.constant 0 : i32
    %c0_i32_1 = arith.constant 0 : i32
    return %arg0, %c0_i32, %c0_i32_0 : i32, i32, i32
  }
}

</mosaic_0001>

<llo_original>
// kernel: tpu_custom_call.1
$region0: #{tpu_custom_call.1}
  #allocation0 [shape = 'u32[]', space=smem, size = 0x4, offset = 0x4, fixed_abs, tag = 'smem constant byte address 0x4 - core index']
  #allocation1 [shape = 'u32[144,128]{1,0:T(1,128)}', space=vmem, size = 0x12000, scoped, tag = 'internal scratch']
  %s0 = inlined_call_operand.vmem [shape: f32[8,8,128], index: 0, kind: input, shape index: {}]
  %s1 = inlined_call_operand.vmem [shape: f32[8,8,8,4], index: 1, kind: input, shape index: {}]
  %s2 = inlined_call_operand.hbm [shape: f32[15,128,128], index: 2, kind: input, shape index: {}]
  %s3 = inlined_call_operand.vmem [shape: f32[20,128], index: 3, kind: input, shape index: {}]
  %s4 = inlined_call_operand.vmem [shape: f32[128,256], index: 4, kind: input, shape index: {}]
  %s5 = inlined_call_operand.vmem [shape: f32[256,128], index: 5, kind: input, shape index: {}]
  %s6 = inlined_call_operand.vmem [shape: f32[2,256], index: 6, kind: input, shape index: {}]
  %s7 = inlined_call_operand.hbm [shape: f32[4,2,128], index: 7, kind: output, shape index: {}]
  %s8 = sld [smem:[#allocation0]]
  $region65: #{tpu_custom_call.1} parent=0
    _
  %s10 = ssub.s32 1, %s8
  %s11 = scalar_select 0, %s10, %s8
  $region1: #{tpu_custom_call.1} parent=0
    #allocation2 [shape = 'u8[983040]{0}', space=vmem, size = 0xf0000, scoped, tag = 'input window, operand 2, single buffered']
    #allocation3 [shape = 's32[2]{0}', space=sflag, size = 0x8, scoped, tag = 'scoped memory for tpu_custom_call.1']
    #allocation4 [shape = 's32[2]{0}', space=sflag, size = 0x8, scoped, tag = 'scoped memory for tpu_custom_call.1']
    #allocation5 [shape = 'u8[2048]{0}', space=vmem, size = 0x800, scoped, tag = 'output window, operand 0']
    %12 = vsyncpa [#allocation3], 0
    %13 = vsyncpa [#allocation4], 0
    %s14 = scalar_lea.sflag [#allocation4], 1
    %15 = vsyncpa %s14, 0
    loop: start=0, step=1, limit=6
    $region2: #{tpu_custom_call.1} parent=1 // loop_pre_header
      _
    $region3: #{tpu_custom_call.1} parent=1 // loop_header
      %s17 = sphi 0, %s21
      %p18 = scmp.ge.s32.totalorder %s17, 6
      %s27 = sphi 0, %s29
      %s30 = sphi 0, %s27
      %s31 = sphi 0, %s30
      %s47 = sphi 0, %s31
      %s53 = sphi 0, %s55
      %s56 = sphi 0, %s53
      %s57 = sphi 0, %s56
      %s73 = sphi 0, %s57
      %s77 = sphi 0, %s77
      %s79 = sphi 0, %s77
      %s80 = sphi 0, %s79
      %s94 = sphi 0, %s80
      %s98 = sphi 0, %s98
      %s100 = sphi 0, %s98
      %s101 = sphi 0, %s100
      %s115 = sphi 0, %s101
      %s119 = sphi 0, %s119
      %s121 = sphi 0, %s119
      %s122 = sphi 0, %s121
      %s136 = sphi 0, %s122
      %s140 = sphi 0, %s140
      %s142 = sphi 0, %s140
      %s143 = sphi 0, %s142
      %s157 = sphi 0, %s143
      %s161 = sphi 0, %s161
      %s163 = sphi 0, %s161
      %s164 = sphi 0, %s163
      %s178 = sphi 0, %s164
      %s184 = sphi 0, %s186
      %s187 = sphi 0, %s184
      %s188 = sphi 0, %s187
      %s204 = sphi 0, %s188
    $region4: #{tpu_custom_call.1} parent=1 // loop_header_branch
      %20 = sbr.rel (%p18) target = $region8
    $region5: #{tpu_custom_call.1} parent=1 // loop_body
      %s22 = ssub.s32 %s17, 1
      %s23 = ssub.s32 %s17, 2
      %s24 = sadd.s32 %s17, 1
      %s25 = ssub.s32 %s17, %s24
      %p26 = scmp.eq.s32.totalorder %s25, 0
      %s28 = sadd.s32 %s27, 1
      %s29 = scalar_select %p26, %s27, %s28
      %p32 = pneg %p26
      %p33 = scmp.eq.s32.totalorder %s17, 3
      %p34 = por %p32, %p33
      %p35 = scmp.ne.s32.totalorder %s27, %s30
      %p36 = scmp.eq.s32.totalorder %s17, 0
      %p37 = por %p35, %p36
      %p38 = scmp.ne.s32.totalorder %s27, %s30
      %p39 = scmp.eq.s32.totalorder %s22, 3
      %p40 = por %p38, %p39
      %p41 = scmp.ne.s32.totalorder %s30, %s31
      %p42 = scmp.eq.s32.totalorder %s22, 0
      %p43 = por %p41, %p42
      %p44 = scmp.ne.s32.totalorder %s30, %s31
      %p45 = scmp.eq.s32.totalorder %s23, 3
      %p46 = por %p44, %p45
      %p48 = scmp.ne.s32.totalorder %s31, %s47
      %p49 = scmp.eq.s32.totalorder %s23, 0
      %p50 = por %p48, %p49
      %s51 = ssub.s32 %s17, %s24
      %p52 = scmp.eq.s32.totalorder %s51, 0
      %s54 = sadd.s32 %s53, 1
      %s55 = scalar_select %p52, %s53, %s54
      %p58 = pneg %p52
      %p59 = scmp.eq.s32.totalorder %s17, 3
      %p60 = por %p58, %p59
      %p61 = scmp.ne.s32.totalorder %s53, %s56
      %p62 = scmp.eq.s32.totalorder %s17, 0
      %p63 = por %p61, %p62
      %p64 = scmp.ne.s32.totalorder %s53, %s56
      %p65 = scmp.eq.s32.totalorder %s22, 3
      %p66 = por %p64, %p65
      %p67 = scmp.ne.s32.totalorder %s56, %s57
      %p68 = scmp.eq.s32.totalorder %s22, 0
      %p69 = por %p67, %p68
      %p70 = scmp.ne.s32.totalorder %s56, %s57
      %p71 = scmp.eq.s32.totalorder %s23, 3
      %p72 = por %p70, %p71
      %p74 = scmp.ne.s32.totalorder %s57, %s73
      %p75 = scmp.eq.s32.totalorder %s23, 0
      %p76 = por %p74, %p75
      %s78 = sadd.s32 %s77, 1
      %p81 = scmp.eq.s32.totalorder %s17, 3
      %p82 = scmp.ne.s32.totalorder %s77, %s79
      %p83 = scmp.eq.s32.totalorder %s17, 0
      %p84 = por %p82, %p83
      %p85 = scmp.ne.s32.totalorder %s77, %s79
      %p86 = scmp.eq.s32.totalorder %s22, 3
      %p87 = por %p85, %p86
      %p88 = scmp.ne.s32.totalorder %s79, %s80
      %p89 = scmp.eq.s32.totalorder %s22, 0
      %p90 = por %p88, %p89
      %p91 = scmp.ne.s32.totalorder %s79, %s80
      %p92 = scmp.eq.s32.totalorder %s23, 3
      %p93 = por %p91, %p92
      %p95 = scmp.ne.s32.totalorder %s80, %s94
      %p96 = scmp.eq.s32.totalorder %s23, 0
      %p97 = por %p95, %p96
      %s99 = sadd.s32 %s98, 1
      %p102 = scmp.eq.s32.totalorder %s17, 3
      %p103 = scmp.ne.s32.totalorder %s98, %s100
      %p104 = scmp.eq.s32.totalorder %s17, 0
      %p105 = por %p103, %p104
      %p106 = scmp.ne.s32.totalorder %s98, %s100
      %p107 = scmp.eq.s32.totalorder %s22, 3
      %p108 = por %p106, %p107
      %p109 = scmp.ne.s32.totalorder %s100, %s101
      %p110 = scmp.eq.s32.totalorder %s22, 0
      %p111 = por %p109, %p110
      %p112 = scmp.ne.s32.totalorder %s100, %s101
      %p113 = scmp.eq.s32.totalorder %s23, 3
      %p114 = por %p112, %p113
      %p116 = scmp.ne.s32.totalorder %s101, %s115
      %p117 = scmp.eq.s32.totalorder %s23, 0
      %p118 = por %p116, %p117
      %s120 = sadd.s32 %s119, 1
      %p123 = scmp.eq.s32.totalorder %s17, 3
      %p124 = scmp.ne.s32.totalorder %s119, %s121
      %p125 = scmp.eq.s32.totalorder %s17, 0
      %p126 = por %p124, %p125
      %p127 = scmp.ne.s32.totalorder %s119, %s121
      %p128 = scmp.eq.s32.totalorder %s22, 3
      %p129 = por %p127, %p128
      %p130 = scmp.ne.s32.totalorder %s121, %s122
      %p131 = scmp.eq.s32.totalorder %s22, 0
      %p132 = por %p130, %p131
      %p133 = scmp.ne.s32.totalorder %s121, %s122
      %p134 = scmp.eq.s32.totalorder %s23, 3
      %p135 = por %p133, %p134
      %p137 = scmp.ne.s32.totalorder %s122, %s136
      %p138 = scmp.eq.s32.totalorder %s23, 0
      %p139 = por %p137, %p138
      %s141 = sadd.s32 %s140, 1
      %p144 = scmp.eq.s32.totalorder %s17, 3
      %p145 = scmp.ne.s32.totalorder %s140, %s142
      %p146 = scmp.eq.s32.totalorder %s17, 0
      %p147 = por %p145, %p146
      %p148 = scmp.ne.s32.totalorder %s140, %s142
      %p149 = scmp.eq.s32.totalorder %s22, 3
      %p150 = por %p148, %p149
      %p151 = scmp.ne.s32.totalorder %s142, %s143
      %p152 = scmp.eq.s32.totalorder %s22, 0
      %p153 = por %p151, %p152
      %p154 = scmp.ne.s32.totalorder %s142, %s143
      %p155 = scmp.eq.s32.totalorder %s23, 3
      %p156 = por %p154, %p155
      %p158 = scmp.ne.s32.totalorder %s143, %s157
      %p159 = scmp.eq.s32.totalorder %s23, 0
      %p160 = por %p158, %p159
      %s162 = sadd.s32 %s161, 1
      %p165 = scmp.eq.s32.totalorder %s17, 3
      %p166 = scmp.ne.s32.totalorder %s161, %s163
      %p167 = scmp.eq.s32.totalorder %s17, 0
      %p168 = por %p166, %p167
      %p169 = scmp.ne.s32.totalorder %s161, %s163
      %p170 = scmp.eq.s32.totalorder %s22, 3
      %p171 = por %p169, %p170
      %p172 = scmp.ne.s32.totalorder %s163, %s164
      %p173 = scmp.eq.s32.totalorder %s22, 0
      %p174 = por %p172, %p173
      %p175 = scmp.ne.s32.totalorder %s163, %s164
      %p176 = scmp.eq.s32.totalorder %s23, 3
      %p177 = por %p175, %p176
      %p179 = scmp.ne.s32.totalorder %s164, %s178
      %p180 = scmp.eq.s32.totalorder %s23, 0
      %p181 = por %p179, %p180
      %s182 = ssub.s32 %s17, %s24
      %p183 = scmp.eq.s32.totalorder %s182, 0
      %s185 = sadd.s32 %s184, 1
      %s186 = scalar_select %p183, %s184, %s185
      %p189 = pneg %p183
      %p190 = scmp.eq.s32.totalorder %s17, 3
      %p191 = por %p189, %p190
      %p192 = scmp.ne.s32.totalorder %s184, %s187
      %p193 = scmp.eq.s32.totalorder %s17, 0
      %p194 = por %p192, %p193
      %p195 = scmp.ne.s32.totalorder %s184, %s187
      %p196 = scmp.eq.s32.totalorder %s22, 3
      %p197 = por %p195, %p196
      %p198 = scmp.ne.s32.totalorder %s187, %s188
      %p199 = scmp.eq.s32.totalorder %s22, 0
      %p200 = por %p198, %p199
      %p201 = scmp.ne.s32.totalorder %s187, %s188
      %p202 = scmp.eq.s32.totalorder %s23, 3
      %p203 = por %p201, %p202
      %p205 = scmp.ne.s32.totalorder %s188, %s204
      %p206 = scmp.eq.s32.totalorder %s23, 0
      %p207 = por %p205, %p206
      %p208 = scmp.le.s32.totalorder 1, %s17
      %p209 = scmp.lt.s32.totalorder %s17, 5
      %p210 = pnand %p208, %p209
      %p211 = pneg %p210
      // Predicated region
      $region9: #{tpu_custom_call.1} parent=5 // pred_check
        _
      $region10: #{tpu_custom_call.1} parent=5 // pred_check_branch
        %213 = sbr.rel (%p210) target = $region12
      $region11: #{tpu_custom_call.1} parent=5 // pred_region
        %s214 = ssub.s32 %s17, 1
        // Predicated region
        $region13: #{tpu_custom_call.1} parent=11 // pred_check
          %p215 = pneg %p90
        $region14: #{tpu_custom_call.1} parent=11 // pred_check_branch
          %217 = sbr.rel (%p215) target = $region16
        $region15: #{tpu_custom_call.1} parent=11 // pred_region
          %s219 = ssub.s32 30720, 30720
          %220 = vsyncadd [#allocation3], %s219
          %s221 = sshll.u32 [#allocation2], 4
          %s222 = int_to_ptr.vmem [resolvable:$true] %s221
          %227 = dma.hbm_to_vmem [thread:$0]  %s2, 30720, %s222, [#allocation3], 128, 128, 8
        $region16: #{tpu_custom_call.1} parent=11 // pred_fallthru
          _
        // Predicated region
        $region17: #{tpu_custom_call.1} parent=11 // pred_check
          %p228 = pneg %p111
        $region18: #{tpu_custom_call.1} parent=11 // pred_check_branch
          %230 = sbr.rel (%p228) target = $region20
        $region19: #{tpu_custom_call.1} parent=11 // pred_region
          _
        $region20: #{tpu_custom_call.1} parent=11 // pred_fallthru
          _
        // Predicated region
        $region21: #{tpu_custom_call.1} parent=11 // pred_check
          %p231 = pneg %p132
        $region22: #{tpu_custom_call.1} parent=11 // pred_check_branch
          %233 = sbr.rel (%p231) target = $region24
        $region23: #{tpu_custom_call.1} parent=11 // pred_region
          _
        $region24: #{tpu_custom_call.1} parent=11 // pred_fallthru
          _
        // Predicated region
        $region25: #{tpu_custom_call.1} parent=11 // pred_check
          %p234 = pneg %p153
        $region26: #{tpu_custom_call.1} parent=11 // pred_check_branch
          %236 = sbr.rel (%p234) target = $region28
        $region27: #{tpu_custom_call.1} parent=11 // pred_region
          _
        $region28: #{tpu_custom_call.1} parent=11 // pred_fallthru
          _
        // Predicated region
        $region29: #{tpu_custom_call.1} parent=11 // pred_check
          %p237 = pneg %p174
        $region30: #{tpu_custom_call.1} parent=11 // pred_check_branch
          %239 = sbr.rel (%p237) target = $region32
        $region31: #{tpu_custom_call.1} parent=11 // pred_region
          _
        $region32: #{tpu_custom_call.1} parent=11 // pred_fallthru
          _
      $region12: #{tpu_custom_call.1} parent=5 // pred_fallthru
        _
      %p240 = scmp.lt.s32.totalorder %s17, 4
      // Predicated region
      $region33: #{tpu_custom_call.1} parent=5 // pred_check
        %p241 = pneg %p240
      $region34: #{tpu_custom_call.1} parent=5 // pred_check_branch
        %243 = sbr.rel (%p241) target = $region36
      $region35: #{tpu_custom_call.1} parent=5 // pred_region
        // Predicated region
        $region37: #{tpu_custom_call.1} parent=35 // pred_check
          %p244 = pneg %p37
        $region38: #{tpu_custom_call.1} parent=35 // pred_check_branch
          %246 = sbr.rel (%p244) target = $region40
        $region39: #{tpu_custom_call.1} parent=35 // pred_region
          %s247 = smul.u32 2, %s17
          %p248 = scmp.lt.s32.totalorder %s247, 7
          %s249 = scalar_select %p248, %s247, 7
          %s250 = smul.addr %s249, 8
          %s251 = scalar_lea.vmem %s0, %s250
          %s252 = smul.u32 2, %s17
        $region40: #{tpu_custom_call.1} parent=35 // pred_fallthru
          _
        // Predicated region
        $region41: #{tpu_custom_call.1} parent=35 // pred_check
          %p253 = pneg %p63
        $region42: #{tpu_custom_call.1} parent=35 // pred_check_branch
          %255 = sbr.rel (%p253) target = $region44
        $region43: #{tpu_custom_call.1} parent=35 // pred_region
          %s256 = smul.u32 2, %s17
          %p257 = scmp.lt.s32.totalorder %s256, 7
          %s258 = scalar_select %p257, %s256, 7
          %s259 = smul.addr %s258, 8
          %s260 = smul.addr %s259, 8
          %s261 = scalar_lea.vmem %s1, %s260
          %s262 = smul.u32 2, %s17
        $region44: #{tpu_custom_call.1} parent=35 // pred_fallthru
          _
      $region36: #{tpu_custom_call.1} parent=5 // pred_fallthru
        _
      %p263 = scmp.le.s32.totalorder 1, %s17
      %p264 = scmp.lt.s32.totalorder %s17, 5
      %p265 = pnand %p263, %p264
      %p266 = pneg %p265
      // Predicated region
      $region45: #{tpu_custom_call.1} parent=5 // pred_check
        _
      $region46: #{tpu_custom_call.1} parent=5 // pred_check_branch
        %268 = sbr.rel (%p265) target = $region48
      $region47: #{tpu_custom_call.1} parent=5 // pred_region
        %s269 = ssub.s32 %s17, 1
        // Predicated region
        $region49: #{tpu_custom_call.1} parent=47 // pred_check
          %p270 = pneg %p90
        $region50: #{tpu_custom_call.1} parent=47 // pred_check_branch
          %272 = sbr.rel (%p270) target = $region52
        $region51: #{tpu_custom_call.1} parent=47 // pred_region
          %273 = dma.done [#allocation3], 30720
        $region52: #{tpu_custom_call.1} parent=47 // pred_fallthru
          _
        %s274 = smul.u32 2, %s22
        %p275 = scmp.lt.s32.totalorder %s274, 7
        %s276 = scalar_select %p275, %s274, 7
        %s277 = smul.addr %s276, 8
        %s278 = scalar_lea.vmem %s0, %s277
        %p279 = pneg %p43
        %p280 = pneg %p40
        %s281 = smul.u32 2, %s22
        %p282 = scmp.lt.s32.totalorder %s281, 7
        %s283 = scalar_select %p282, %s281, 7
        %s284 = smul.addr %s283, 8
        %s285 = smul.addr %s284, 8
        %s286 = scalar_lea.vmem %s1, %s285
        %p287 = pneg %p69
        %p288 = pneg %p66
        %p289 = pneg %p90
        %p290 = pneg %p87
        %p291 = pneg %p111
        %p292 = pneg %p108
        %p293 = pneg %p132
        %p294 = pneg %p129
        %p295 = pneg %p153
        %p296 = pneg %p150
        %p297 = pneg %p174
        %p298 = pneg %p171
        %p299 = pneg %p200
        %p300 = pneg %p197
        %s301 = sand.u32 %s187, 1
        %s302 = scalar_lea.sflag [#allocation4], %s301
        %s303 = sand.u32 %s187, 1
        %s304 = smul.addr %s303, 2
        %s305 = scalar_lea.vmem [#allocation5], %s304
        %s306 = smul.u32 2, %s22
        %p307 = scmp.lt.s32.totalorder %s306, 7
        %s308 = scalar_select %p307, %s306, 7
        %s309 = smul.addr %s308, 8
        %s310 = scalar_lea.vmem %s0, %s309
        %s311 = smul.u32 2, %s22
        %s312 = smul.u32 2, %s22
        %p313 = scmp.lt.s32.totalorder %s312, 7
        %s314 = scalar_select %p313, %s312, 7
        %s315 = smul.addr %s314, 8
        %s316 = smul.addr %s315, 8
        %s317 = scalar_lea.vmem %s1, %s316
        %s318 = smul.u32 2, %s22
        %v319 = vld [vmem:[%s310] sm:$0xff]
        %v320 = vld [vmem:[%s310 + $0x8] sm:$0xff]
        %v321 = vld [vmem:[%s317] sm:$0xff]
        %v322 = vld [vmem:[%s317 + $0x8] sm:$0xff]
        %v323 = vld [vmem:[%s317 + $0x10] sm:$0xff]
        %v324 = vld [vmem:[%s317 + $0x18] sm:$0xff]
        %v325 = vld [vmem:[%s317 + $0x20] sm:$0xff]
        %v326 = vld [vmem:[%s317 + $0x28] sm:$0xff]
        %v327 = vld [vmem:[%s317 + $0x30] sm:$0xff]
        %v328 = vld [vmem:[%s317 + $0x38] sm:$0xff]
        %v329 = vld [vmem:[%s317 + $0x40] sm:$0xff]
        %v330 = vld [vmem:[%s317 + $0x48] sm:$0xff]
        %v331 = vld [vmem:[%s317 + $0x50] sm:$0xff]
        %v332 = vld [vmem:[%s317 + $0x58] sm:$0xff]
        %v333 = vld [vmem:[%s317 + $0x60] sm:$0xff]
        %v334 = vld [vmem:[%s317 + $0x68] sm:$0xff]
        %v335 = vld [vmem:[%s317 + $0x70] sm:$0xff]
        %v336 = vld [vmem:[%s317 + $0x78] sm:$0xff]
        %v337 = vld [vmem:[%s3 + $0x10] sm:$0xf]
        %v338 = vld [vmem:[%s3 + $0xf] sm:$0x1]
        %vm339 = vcmask 31744
        %v341 = vsel %vm339, %v321, 0
        %v344 = vsel %vm339, %v322, 0
        %v347 = vsel %vm339, %v323, 0
        %v350 = vsel %vm339, %v324, 0
        %v353 = vsel %vm339, %v325, 0
        %v356 = vsel %vm339, %v326, 0
        %v359 = vsel %vm339, %v327, 0
        %v362 = vsel %vm339, %v328, 0
        %v365 = vsel %vm339, %v329, 0
        %v368 = vsel %vm339, %v330, 0
        %v371 = vsel %vm339, %v331, 0
        %v374 = vsel %vm339, %v332, 0
        %v377 = vsel %vm339, %v333, 0
        %v380 = vsel %vm339, %v334, 0
        %v383 = vsel %vm339, %v335, 0
        %v386 = vsel %vm339, %v336, 0
        %vm388 = vcmask 1043456
        %v390 = vsel %vm388, %v337, 0
        %392 = vmatprep.subr.mxu0 0.0
        %393 = vmatpush1.msra.mxu0 0.0
        %394 = vmatprep.subr.mxu0 0.0
        %395 = vmatpush1.msra.mxu0 0.0
        %396 = vmatprep.subr.mxu0 0.0
        %397 = vmatpush1.msra.mxu0 0.0
        %398 = vmatprep.subr.mxu0 0.0
        %399 = vmatpush1.msra.mxu0 0.0
        %400 = vmatprep.subr.mxu0 0.0
        %401 = vmatpush1.msra.mxu0 0.0
        %402 = vmatprep.subr.mxu0 0.0
        %403 = vmatpush1.msra.mxu0 0.0
        %404 = vmatprep.subr.mxu0 0.0
        %405 = vmatpush1.msra.mxu0 0.0
        %406 = vmatprep.subr.mxu0 0.0
        %407 = vmatpush1.msra.mxu0 0.0
        %408 = vmatprep.subr.mxu0 0.0
        %409 = vmatpush1.msra.mxu0 0.0
        %410 = vmatprep.subr.mxu0 0.0
        %411 = vmatpush1.msra.mxu0 0.0
        %412 = vmatprep.subr.mxu0 0.0
        %413 = vmatpush1.msra.mxu0 0.0
        %414 = vmatprep.subr.mxu0 0.0
        %415 = vmatpush1.msra.mxu0 0.0
        %416 = vmatprep.subr.mxu0 0.0
        %417 = vmatpush1.msra.mxu0 0.0
        %418 = vmatprep.subr.mxu0 0.0
        %419 = vmatpush1.msra.mxu0 0.0
        %420 = vmatprep.subr.mxu0 0.0
        %421 = vmatpush1.msra.mxu0 0.0
        %422 = vmatprep.subr.mxu0 0.0
        %423 = vmatpush1.msra.mxu0 %v390
        %424 = vmatprep.subr.mxu0 0.0
        %425 = vmatpush2.msra.mxu0 0.0
        %426 = vmatprep.subr.mxu0 0.0
        %427 = vmatpush2.msra.mxu0 0.0
        %428 = vmatprep.subr.mxu0 0.0
        %429 = vmatpush2.msra.mxu0 0.0
        %430 = vmatprep.subr.mxu0 0.0
        %431 = vmatpush2.msra.mxu0 0.0
        %432 = vmatprep.subr.mxu0 0.0
        %433 = vmatpush2.msra.mxu0 0.0
        %434 = vmatprep.subr.mxu0 0.0
        %435 = vmatpush2.msra.mxu0 0.0
        %436 = vmatprep.subr.mxu0 0.0
        %437 = vmatpush2.msra.mxu0 0.0
        %438 = vmatprep.subr.mxu0 0.0
        %439 = vmatpush2.msra.mxu0 0.0
        %440 = vmatprep.subr.mxu0 0.0
        %441 = vmatpush2.msra.mxu0 0.0
        %442 = vmatprep.subr.mxu0 0.0
        %443 = vmatpush2.msra.mxu0 0.0
        %444 = vmatprep.subr.mxu0 0.0
        %445 = vmatpush2.msra.mxu0 0.0
        %446 = vmatprep.subr.mxu0 0.0
        %447 = vmatpush2.msra.mxu0 0.0
        %448 = vmatprep.subr.mxu0 0.0
        %449 = vmatpush2.msra.mxu0 0.0
        %450 = vmatprep.subr.mxu0 0.0
        %451 = vmatpush2.msra.mxu0 0.0
        %452 = vmatprep.subr.mxu0 0.0
        %453 = vmatpush2.msra.mxu0 0.0
        %454 = vmatprep.subr.mxu0 0.0
        %455 = vmatpush2.msra.mxu0 0.0
        %456 = vmatprep.mubr.f32.mxu0 0.0
        %457 = vmatmul.mubr.f32.gmra.mxu0 %v341
        %v458 = vpop.f32.mrf.mxu0
        %v459 = vadd.f32 0.0, %v458
        %v460 = vpop.f32.mrf.mxu0
        %461 = vmatprep.mubr.f32.mxu0 0.0
        %462 = vmatmul.mubr.f32.gmra.mxu0 %v344
        %v463 = vpop.f32.mrf.mxu0
        %v464 = vadd.f32 0.0, %v463
        %v465 = vpop.f32.mrf.mxu0
        %466 = vmatprep.mubr.f32.mxu0 0.0
        %467 = vmatmul.mubr.f32.gmra.mxu0 %v347
        %v468 = vpop.f32.mrf.mxu0
        %v469 = vadd.f32 0.0, %v468
        %v470 = vpop.f32.mrf.mxu0
        %471 = vmatprep.mubr.f32.mxu0 0.0
        %472 = vmatmul.mubr.f32.gmra.mxu0 %v350
        %v473 = vpop.f32.mrf.mxu0
        %v474 = vadd.f32 0.0, %v473
        %v475 = vpop.f32.mrf.mxu0
        %476 = vmatprep.mubr.f32.mxu0 0.0
        %477 = vmatmul.mubr.f32.gmra.mxu0 %v353
        %v478 = vpop.f32.mrf.mxu0
        %v479 = vadd.f32 0.0, %v478
        %v480 = vpop.f32.mrf.mxu0
        %481 = vmatprep.mubr.f32.mxu0 0.0
        %482 = vmatmul.mubr.f32.gmra.mxu0 %v356
        %v483 = vpop.f32.mrf.mxu0
        %v484 = vadd.f32 0.0, %v483
        %v485 = vpop.f32.mrf.mxu0
        %486 = vmatprep.mubr.f32.mxu0 0.0
        %487 = vmatmul.mubr.f32.gmra.mxu0 %v359
        %v488 = vpop.f32.mrf.mxu0
        %v489 = vadd.f32 0.0, %v488
        %v490 = vpop.f32.mrf.mxu0
        %491 = vmatprep.mubr.f32.mxu0 0.0
        %492 = vmatmul.mubr.f32.gmra.mxu0 %v362
        %v493 = vpop.f32.mrf.mxu0
        %v494 = vadd.f32 0.0, %v493
        %v495 = vpop.f32.mrf.mxu0
        %496 = vmatprep.mubr.f32.mxu0 0.0
        %497 = vmatmul.mubr.f32.gmra.mxu0 %v365
        %v498 = vpop.f32.mrf.mxu0
        %v499 = vadd.f32 0.0, %v498
        %v500 = vpop.f32.mrf.mxu0
        %501 = vmatprep.mubr.f32.mxu0 0.0
        %502 = vmatmul.mubr.f32.gmra.mxu0 %v368
        %v503 = vpop.f32.mrf.mxu0
        %v504 = vadd.f32 0.0, %v503
        %v505 = vpop.f32.mrf.mxu0
        %506 = vmatprep.mubr.f32.mxu0 0.0
        %507 = vmatmul.mubr.f32.gmra.mxu0 %v371
        %v508 = vpop.f32.mrf.mxu0
        %v509 = vadd.f32 0.0, %v508
        %v510 = vpop.f32.mrf.mxu0
        %511 = vmatprep.mubr.f32.mxu0 0.0
        %512 = vmatmul.mubr.f32.gmra.mxu0 %v374
        %v513 = vpop.f32.mrf.mxu0
        %v514 = vadd.f32 0.0, %v513
        %v515 = vpop.f32.mrf.mxu0
        %516 = vmatprep.mubr.f32.mxu0 0.0
        %517 = vmatmul.mubr.f32.gmra.mxu0 %v377
        %v518 = vpop.f32.mrf.mxu0
        %v519 = vadd.f32 0.0, %v518
        %v520 = vpop.f32.mrf.mxu0
        %521 = vmatprep.mubr.f32.mxu0 0.0
        %522 = vmatmul.mubr.f32.gmra.mxu0 %v380
        %v523 = vpop.f32.mrf.mxu0
        %v524 = vadd.f32 0.0, %v523
        %v525 = vpop.f32.mrf.mxu0
        %526 = vmatprep.mubr.f32.mxu0 0.0
        %527 = vmatmul.mubr.f32.gmra.mxu0 %v383
        %v528 = vpop.f32.mrf.mxu0
        %v529 = vadd.f32 0.0, %v528
        %v530 = vpop.f32.mrf.mxu0
        %531 = vmatprep.mubr.f32.mxu0 0.0
        %532 = vmatmul.mubr.f32.gmra.mxu0 %v386
        %v533 = vpop.f32.mrf.mxu0
        %v534 = vadd.f32 0.0, %v533
        %v535 = vpop.f32.mrf.mxu0
        %536 = vdwg.mxu0
        %v537 = vlaneseq
        %v538 = vshrl.u32 %v537, 7
        %v539 = vsub.s32 0, %v538
        %v540 = vrot.slane %v338, %v539
        %v541 = vsub.f32 %v459, %v540
        %v542 = vsub.f32 %v464, %v540
        %v543 = vsub.f32 %v469, %v540
        %v544 = vsub.f32 %v474, %v540
        %v545 = vsub.f32 %v479, %v540
        %v546 = vsub.f32 %v484, %v540
        %v547 = vsub.f32 %v489, %v540
        %v548 = vsub.f32 %v494, %v540
        %v549 = vsub.f32 %v499, %v540
        %v550 = vsub.f32 %v504, %v540
        %v551 = vsub.f32 %v509, %v540
        %v552 = vsub.f32 %v514, %v540
        %v553 = vsub.f32 %v519, %v540
        %v554 = vsub.f32 %v524, %v540
        %v555 = vsub.f32 %v529, %v540
        %v556 = vsub.f32 %v534, %v540
        %v557 = vmul.f32 %v541, -0.8
        %v558 = vmul.f32 %v542, -0.8
        %v559 = vmul.f32 %v543, -0.8
        %v560 = vmul.f32 %v544, -0.8
        %v561 = vmul.f32 %v545, -0.8
        %v562 = vmul.f32 %v546, -0.8
        %v563 = vmul.f32 %v547, -0.8
        %v564 = vmul.f32 %v548, -0.8
        %v565 = vmul.f32 %v549, -0.8
        %v566 = vmul.f32 %v550, -0.8
        %v567 = vmul.f32 %v551, -0.8
        %v568 = vmul.f32 %v552, -0.8
        %v569 = vmul.f32 %v553, -0.8
        %v570 = vmul.f32 %v554, -0.8
        %v571 = vmul.f32 %v555, -0.8
        %v572 = vmul.f32 %v556, -0.8
        %v573 = vmul.f32 %v557, %v541
        %v574 = vmul.f32 %v558, %v542
        %v575 = vmul.f32 %v559, %v543
        %v576 = vmul.f32 %v560, %v544
        %v577 = vmul.f32 %v561, %v545
        %v578 = vmul.f32 %v562, %v546
        %v579 = vmul.f32 %v563, %v547
        %v580 = vmul.f32 %v564, %v548
        %v581 = vmul.f32 %v565, %v549
        %v582 = vmul.f32 %v566, %v550
        %v583 = vmul.f32 %v567, %v551
        %v584 = vmul.f32 %v568, %v552
        %v585 = vmul.f32 %v569, %v553
        %v586 = vmul.f32 %v570, %v554
        %v587 = vmul.f32 %v571, %v555
        %v588 = vmul.f32 %v572, %v556
        %v589 = vmul.f32 %v573, 1.442695
        %v590 = vpow.pop %v589
        %v591 = vmul.f32 %v574, 1.442695
        %v592 = vpow.pop %v591
        %v593 = vmul.f32 %v575, 1.442695
        %v594 = vpow.pop %v593
        %v595 = vmul.f32 %v576, 1.442695
        %v596 = vpow.pop %v595
        %v597 = vmul.f32 %v577, 1.442695
        %v598 = vpow.pop %v597
        %v599 = vmul.f32 %v578, 1.442695
        %v600 = vpow.pop %v599
        %v601 = vmul.f32 %v579, 1.442695
        %v602 = vpow.pop %v601
        %v603 = vmul.f32 %v580, 1.442695
        %v604 = vpow.pop %v603
        %v605 = vmul.f32 %v581, 1.442695
        %v606 = vpow.pop %v605
        %v607 = vmul.f32 %v582, 1.442695
        %v608 = vpow.pop %v607
        %v609 = vmul.f32 %v583, 1.442695
        %v610 = vpow.pop %v609
        %v611 = vmul.f32 %v584, 1.442695
        %v612 = vpow.pop %v611
        %v613 = vmul.f32 %v585, 1.442695
        %v614 = vpow.pop %v613
        %v615 = vmul.f32 %v586, 1.442695
        %v616 = vpow.pop %v615
        %v617 = vmul.f32 %v587, 1.442695
        %v618 = vpow.pop %v617
        %v619 = vmul.f32 %v588, 1.442695
        %v620 = vpow.pop %v619
        %v621 = vld [vmem:[#allocation2] sm:$0xff]
        %v622 = vld [vmem:[#allocation2 + $0x8] sm:$0xff]
        %v623 = vld [vmem:[#allocation2 + $0x10] sm:$0xff]
        %v624 = vld [vmem:[#allocation2 + $0x18] sm:$0xff]
        %v625 = vld [vmem:[#allocation2 + $0x20] sm:$0xff]
        %v626 = vld [vmem:[#allocation2 + $0x28] sm:$0xff]
        %v627 = vld [vmem:[#allocation2 + $0x30] sm:$0xff]
        %v628 = vld [vmem:[#allocation2 + $0x38] sm:$0xff]
        %v629 = vld [vmem:[#allocation2 + $0x40] sm:$0xff]
        %v630 = vld [vmem:[#allocation2 + $0x48] sm:$0xff]
        %v631 = vld [vmem:[#allocation2 + $0x50] sm:$0xff]
        %v632 = vld [vmem:[#allocation2 + $0x58] sm:$0xff]
        %v633 = vld [vmem:[#allocation2 + $0x60] sm:$0xff]
        %v634 = vld [vmem:[#allocation2 + $0x68] sm:$0xff]
        %v635 = vld [vmem:[#allocation2 + $0x70] sm:$0xff]
        %v636 = vld [vmem:[#allocation2 + $0x78] sm:$0xff]
        %v637 = vld [vmem:[%s3] sm:$0x1]
        %v638 = vlaneseq
        %v639 = vshrl.u32 %v638, 7
        %v640 = vsub.s32 0, %v639
        %v641 = vrot.slane %v637, %v640
        %642 = vmatprep.subr.mxu0 0.0
        %643 = vmatpush1.msra.mxu0 %v636
        %644 = vmatprep.subr.mxu0 0.0
        %645 = vmatpush1.msra.mxu0 %v635
        %646 = vmatprep.subr.mxu0 0.0
        %647 = vmatpush1.msra.mxu0 %v634
        %648 = vmatprep.subr.mxu0 0.0
        %649 = vmatpush1.msra.mxu0 %v633
        %650 = vmatprep.subr.mxu0 0.0
        %651 = vmatpush1.msra.mxu0 %v632
        %652 = vmatprep.subr.mxu0 0.0
        %653 = vmatpush1.msra.mxu0 %v631
        %654 = vmatprep.subr.mxu0 0.0
        %655 = vmatpush1.msra.mxu0 %v630
        %656 = vmatprep.subr.mxu0 0.0
        %657 = vmatpush1.msra.mxu0 %v629
        %658 = vmatprep.subr.mxu0 0.0
        %659 = vmatpush1.msra.mxu0 %v628
        %660 = vmatprep.subr.mxu0 0.0
        %661 = vmatpush1.msra.mxu0 %v627
        %662 = vmatprep.subr.mxu0 0.0
        %663 = vmatpush1.msra.mxu0 %v626
        %664 = vmatprep.subr.mxu0 0.0
        %665 = vmatpush1.msra.mxu0 %v625
        %666 = vmatprep.subr.mxu0 0.0
        %667 = vmatpush1.msra.mxu0 %v624
        %668 = vmatprep.subr.mxu0 0.0
        %669 = vmatpush1.msra.mxu0 %v623
        %670 = vmatprep.subr.mxu0 0.0
        %671 = vmatpush1.msra.mxu0 %v622
        %672 = vmatprep.subr.mxu0 0.0
        %673 = vmatpush1.msra.mxu0 %v621
        %674 = vmatprep.subr.mxu0 0.0
        %675 = vmatpush2.msra.mxu0 0.0
        %676 = vmatprep.subr.mxu0 0.0
        %677 = vmatpush2.msra.mxu0 0.0
        %678 = vmatprep.subr.mxu0 0.0
        %679 = vmatpush2.msra.mxu0 0.0
        %680 = vmatprep.subr.mxu0 0.0
        %681 = vmatpush2.msra.mxu0 0.0
        %682 = vmatprep.subr.mxu0 0.0
        %683 = vmatpush2.msra.mxu0 0.0
        %684 = vmatprep.subr.mxu0 0.0
        %685 = vmatpush2.msra.mxu0 0.0
        %686 = vmatprep.subr.mxu0 0.0
        %687 = vmatpush2.msra.mxu0 0.0
        %688 = vmatprep.subr.mxu0 0.0
        %689 = vmatpush2.msra.mxu0 0.0
        %690 = vmatprep.subr.mxu0 0.0
        %691 = vmatpush2.msra.mxu0 0.0
        %692 = vmatprep.subr.mxu0 0.0
        %693 = vmatpush2.msra.mxu0 0.0
        %694 = vmatprep.subr.mxu0 0.0
        %695 = vmatpush2.msra.mxu0 0.0
        %696 = vmatprep.subr.mxu0 0.0
        %697 = vmatpush2.msra.mxu0 0.0
        %698 = vmatprep.subr.mxu0 0.0
        %699 = vmatpush2.msra.mxu0 0.0
        %700 = vmatprep.subr.mxu0 0.0
        %701 = vmatpush2.msra.mxu0 0.0
        %702 = vmatprep.subr.mxu0 0.0
        %703 = vmatpush2.msra.mxu0 0.0
        %704 = vmatprep.subr.mxu0 0.0
        %705 = vmatpush2.msra.mxu0 0.0
        %706 = vmatprep.mubr.f32.mxu0 0.0
        %707 = vmatmul.mubr.f32.gmra.mxu0 %v590
        %v708 = vpop.f32.mrf.mxu0
        %v709 = vadd.f32 %v641, %v708
        %v710 = vpop.f32.mrf.mxu0
        %711 = vmatprep.mubr.f32.mxu0 0.0
        %712 = vmatmul.mubr.f32.gmra.mxu0 %v592
        %v713 = vpop.f32.mrf.mxu0
        %v714 = vadd.f32 %v641, %v713
        %v715 = vpop.f32.mrf.mxu0
        %716 = vmatprep.mubr.f32.mxu0 0.0
        %717 = vmatmul.mubr.f32.gmra.mxu0 %v594
        %v718 = vpop.f32.mrf.mxu0
        %v719 = vadd.f32 %v641, %v718
        %v720 = vpop.f32.mrf.mxu0
        %721 = vmatprep.mubr.f32.mxu0 0.0
        %722 = vmatmul.mubr.f32.gmra.mxu0 %v596
        %v723 = vpop.f32.mrf.mxu0
        %v724 = vadd.f32 %v641, %v723
        %v725 = vpop.f32.mrf.mxu0
        %726 = vmatprep.mubr.f32.mxu0 0.0
        %727 = vmatmul.mubr.f32.gmra.mxu0 %v598
        %v728 = vpop.f32.mrf.mxu0
        %v729 = vadd.f32 %v641, %v728
        %v730 = vpop.f32.mrf.mxu0
        %731 = vmatprep.mubr.f32.mxu0 0.0
        %732 = vmatmul.mubr.f32.gmra.mxu0 %v600
        %v733 = vpop.f32.mrf.mxu0
        %v734 = vadd.f32 %v641, %v733
        %v735 = vpop.f32.mrf.mxu0
        %736 = vmatprep.mubr.f32.mxu0 0.0
        %737 = vmatmul.mubr.f32.gmra.mxu0 %v602
        %v738 = vpop.f32.mrf.mxu0
        %v739 = vadd.f32 %v641, %v738
        %v740 = vpop.f32.mrf.mxu0
        %741 = vmatprep.mubr.f32.mxu0 0.0
        %742 = vmatmul.mubr.f32.gmra.mxu0 %v604
        %v743 = vpop.f32.mrf.mxu0
        %v744 = vadd.f32 %v641, %v743
        %v745 = vpop.f32.mrf.mxu0
        %746 = vmatprep.mubr.f32.mxu0 0.0
        %747 = vmatmul.mubr.f32.gmra.mxu0 %v606
        %v748 = vpop.f32.mrf.mxu0
        %v749 = vadd.f32 %v641, %v748
        %v750 = vpop.f32.mrf.mxu0
        %751 = vmatprep.mubr.f32.mxu0 0.0
        %752 = vmatmul.mubr.f32.gmra.mxu0 %v608
        %v753 = vpop.f32.mrf.mxu0
        %v754 = vadd.f32 %v641, %v753
        %v755 = vpop.f32.mrf.mxu0
        %756 = vmatprep.mubr.f32.mxu0 0.0
        %757 = vmatmul.mubr.f32.gmra.mxu0 %v610
        %v758 = vpop.f32.mrf.mxu0
        %v759 = vadd.f32 %v641, %v758
        %v760 = vpop.f32.mrf.mxu0
        %761 = vmatprep.mubr.f32.mxu0 0.0
        %762 = vmatmul.mubr.f32.gmra.mxu0 %v612
        %v763 = vpop.f32.mrf.mxu0
        %v764 = vadd.f32 %v641, %v763
        %v765 = vpop.f32.mrf.mxu0
        %766 = vmatprep.mubr.f32.mxu0 0.0
        %767 = vmatmul.mubr.f32.gmra.mxu0 %v614
        %v768 = vpop.f32.mrf.mxu0
        %v769 = vadd.f32 %v641, %v768
        %v770 = vpop.f32.mrf.mxu0
        %771 = vmatprep.mubr.f32.mxu0 0.0
        %772 = vmatmul.mubr.f32.gmra.mxu0 %v616
        %v773 = vpop.f32.mrf.mxu0
        %v774 = vadd.f32 %v641, %v773
        %v775 = vpop.f32.mrf.mxu0
        %776 = vmatprep.mubr.f32.mxu0 0.0
        %777 = vmatmul.mubr.f32.gmra.mxu0 %v618
        %v778 = vpop.f32.mrf.mxu0
        %v779 = vadd.f32 %v641, %v778
        %v780 = vpop.f32.mrf.mxu0
        %781 = vmatprep.mubr.f32.mxu0 0.0
        %782 = vmatmul.mubr.f32.gmra.mxu0 %v620
        %v783 = vpop.f32.mrf.mxu0
        %v784 = vadd.f32 %v641, %v783
        %v785 = vpop.f32.mrf.mxu0
        %786 = vdwg.mxu0
        %v787 = vmul.f32 %v709, 0.5
        %v788 = vmul.f32 %v714, 0.5
        %v789 = vmul.f32 %v719, 0.5
        %v790 = vmul.f32 %v724, 0.5
        %v791 = vmul.f32 %v729, 0.5
        %v792 = vmul.f32 %v734, 0.5
        %v793 = vmul.f32 %v739, 0.5
        %v794 = vmul.f32 %v744, 0.5
        %v795 = vmul.f32 %v749, 0.5
        %v796 = vmul.f32 %v754, 0.5
        %v797 = vmul.f32 %v759, 0.5
        %v798 = vmul.f32 %v764, 0.5
        %v799 = vmul.f32 %v769, 0.5
        %v800 = vmul.f32 %v774, 0.5
        %v801 = vmul.f32 %v779, 0.5
        %v802 = vmul.f32 %v784, 0.5
        %v803 = vmin.f32 %v787, 14.0
        %v804 = vmin.f32 %v788, 14.0
        %v805 = vmin.f32 %v789, 14.0
        %v806 = vmin.f32 %v790, 14.0
        %v807 = vmin.f32 %v791, 14.0
        %v808 = vmin.f32 %v792, 14.0
        %v809 = vmin.f32 %v793, 14.0
        %v810 = vmin.f32 %v794, 14.0
        %v811 = vmin.f32 %v795, 14.0
        %v812 = vmin.f32 %v796, 14.0
        %v813 = vmin.f32 %v797, 14.0
        %v814 = vmin.f32 %v798, 14.0
        %v815 = vmin.f32 %v799, 14.0
        %v816 = vmin.f32 %v800, 14.0
        %v817 = vmin.f32 %v801, 14.0
        %v818 = vmin.f32 %v802, 14.0
        %vm819 = vcmp.gt.f32.partialorder %v787, 14.0
        %vm820 = vcmp.gt.f32.partialorder %v788, 14.0
        %vm821 = vcmp.gt.f32.partialorder %v789, 14.0
        %vm822 = vcmp.gt.f32.partialorder %v790, 14.0
        %vm823 = vcmp.gt.f32.partialorder %v791, 14.0
        %vm824 = vcmp.gt.f32.partialorder %v792, 14.0
        %vm825 = vcmp.gt.f32.partialorder %v793, 14.0
        %vm826 = vcmp.gt.f32.partialorder %v794, 14.0
        %vm827 = vcmp.gt.f32.partialorder %v795, 14.0
        %vm828 = vcmp.gt.f32.partialorder %v796, 14.0
        %vm829 = vcmp.gt.f32.partialorder %v797, 14.0
        %vm830 = vcmp.gt.f32.partialorder %v798, 14.0
        %vm831 = vcmp.gt.f32.partialorder %v799, 14.0
        %vm832 = vcmp.gt.f32.partialorder %v800, 14.0
        %vm833 = vcmp.gt.f32.partialorder %v801, 14.0
        %vm834 = vcmp.gt.f32.partialorder %v802, 14.0
        %v835 = vmul.f32 %v803, 1.442695
        %v836 = vpow.pop %v835
        %v837 = vmul.f32 %v804, 1.442695
        %v838 = vpow.pop %v837
        %v839 = vmul.f32 %v805, 1.442695
        %v840 = vpow.pop %v839
        %v841 = vmul.f32 %v806, 1.442695
        %v842 = vpow.pop %v841
        %v843 = vmul.f32 %v807, 1.442695
        %v844 = vpow.pop %v843
        %v845 = vmul.f32 %v808, 1.442695
        %v846 = vpow.pop %v845
        %v847 = vmul.f32 %v809, 1.442695
        %v848 = vpow.pop %v847
        %v849 = vmul.f32 %v810, 1.442695
        %v850 = vpow.pop %v849
        %v851 = vmul.f32 %v811, 1.442695
        %v852 = vpow.pop %v851
        %v853 = vmul.f32 %v812, 1.442695
        %v854 = vpow.pop %v853
        %v855 = vmul.f32 %v813, 1.442695
        %v856 = vpow.pop %v855
        %v857 = vmul.f32 %v814, 1.442695
        %v858 = vpow.pop %v857
        %v859 = vmul.f32 %v815, 1.442695
        %v860 = vpow.pop %v859
        %v861 = vmul.f32 %v816, 1.442695
        %v862 = vpow.pop %v861
        %v863 = vmul.f32 %v817, 1.442695
        %v864 = vpow.pop %v863
        %v865 = vmul.f32 %v818, 1.442695
        %v866 = vpow.pop %v865
        %v867 = vadd.f32 %v836, 1.0
        %v868 = vlog2.pop %v867
        %v869 = vmul.f32 %v868, 0.6931472
        %v870 = vmul.f32 -0.5, %v836
        %v871 = vadd.f32 %v870, 1.0
        %v872 = vmul.f32 %v871, %v836
        %v873 = vand.u32 2147483647, %v836
        %vm874 = vcmp.lt.f32.partialorder %v873, 0.0004427343
        %v875 = vsel %vm874, %v872, %v869
        %v876 = vadd.f32 %v838, 1.0
        %v877 = vlog2.pop %v876
        %v878 = vmul.f32 %v877, 0.6931472
        %v879 = vmul.f32 -0.5, %v838
        %v880 = vadd.f32 %v879, 1.0
        %v881 = vmul.f32 %v880, %v838
        %v882 = vand.u32 2147483647, %v838
        %vm883 = vcmp.lt.f32.partialorder %v882, 0.0004427343
        %v884 = vsel %vm883, %v881, %v878
        %v885 = vadd.f32 %v840, 1.0
        %v886 = vlog2.pop %v885
        %v887 = vmul.f32 %v886, 0.6931472
        %v888 = vmul.f32 -0.5, %v840
        %v889 = vadd.f32 %v888, 1.0
        %v890 = vmul.f32 %v889, %v840
        %v891 = vand.u32 2147483647, %v840
        %vm892 = vcmp.lt.f32.partialorder %v891, 0.0004427343
        %v893 = vsel %vm892, %v890, %v887
        %v894 = vadd.f32 %v842, 1.0
        %v895 = vlog2.pop %v894
        %v896 = vmul.f32 %v895, 0.6931472
        %v897 = vmul.f32 -0.5, %v842
        %v898 = vadd.f32 %v897, 1.0
        %v899 = vmul.f32 %v898, %v842
        %v900 = vand.u32 2147483647, %v842
        %vm901 = vcmp.lt.f32.partialorder %v900, 0.0004427343
        %v902 = vsel %vm901, %v899, %v896
        %v903 = vadd.f32 %v844, 1.0
        %v904 = vlog2.pop %v903
        %v905 = vmul.f32 %v904, 0.6931472
        %v906 = vmul.f32 -0.5, %v844
        %v907 = vadd.f32 %v906, 1.0
        %v908 = vmul.f32 %v907, %v844
        %v909 = vand.u32 2147483647, %v844
        %vm910 = vcmp.lt.f32.partialorder %v909, 0.0004427343
        %v911 = vsel %vm910, %v908, %v905
        %v912 = vadd.f32 %v846, 1.0
        %v913 = vlog2.pop %v912
        %v914 = vmul.f32 %v913, 0.6931472
        %v915 = vmul.f32 -0.5, %v846
        %v916 = vadd.f32 %v915, 1.0
        %v917 = vmul.f32 %v916, %v846
        %v918 = vand.u32 2147483647, %v846
        %vm919 = vcmp.lt.f32.partialorder %v918, 0.0004427343
        %v920 = vsel %vm919, %v917, %v914
        %v921 = vadd.f32 %v848, 1.0
        %v922 = vlog2.pop %v921
        %v923 = vmul.f32 %v922, 0.6931472
        %v924 = vmul.f32 -0.5, %v848
        %v925 = vadd.f32 %v924, 1.0
        %v926 = vmul.f32 %v925, %v848
        %v927 = vand.u32 2147483647, %v848
        %vm928 = vcmp.lt.f32.partialorder %v927, 0.0004427343
        %v929 = vsel %vm928, %v926, %v923
        %v930 = vadd.f32 %v850, 1.0
        %v931 = vlog2.pop %v930
        %v932 = vmul.f32 %v931, 0.6931472
        %v933 = vmul.f32 -0.5, %v850
        %v934 = vadd.f32 %v933, 1.0
        %v935 = vmul.f32 %v934, %v850
        %v936 = vand.u32 2147483647, %v850
        %vm937 = vcmp.lt.f32.partialorder %v936, 0.0004427343
        %v938 = vsel %vm937, %v935, %v932
        %v939 = vadd.f32 %v852, 1.0
        %v940 = vlog2.pop %v939
        %v941 = vmul.f32 %v940, 0.6931472
        %v942 = vmul.f32 -0.5, %v852
        %v943 = vadd.f32 %v942, 1.0
        %v944 = vmul.f32 %v943, %v852
        %v945 = vand.u32 2147483647, %v852
        %vm946 = vcmp.lt.f32.partialorder %v945, 0.0004427343
        %v947 = vsel %vm946, %v944, %v941
        %v948 = vadd.f32 %v854, 1.0
        %v949 = vlog2.pop %v948
        %v950 = vmul.f32 %v949, 0.6931472
        %v951 = vmul.f32 -0.5, %v854
        %v952 = vadd.f32 %v951, 1.0
        %v953 = vmul.f32 %v952, %v854
        %v954 = vand.u32 2147483647, %v854
        %vm955 = vcmp.lt.f32.partialorder %v954, 0.0004427343
        %v956 = vsel %vm955, %v953, %v950
        %v957 = vadd.f32 %v856, 1.0
        %v958 = vlog2.pop %v957
        %v959 = vmul.f32 %v958, 0.6931472
        %v960 = vmul.f32 -0.5, %v856
        %v961 = vadd.f32 %v960, 1.0
        %v962 = vmul.f32 %v961, %v856
        %v963 = vand.u32 2147483647, %v856
        %vm964 = vcmp.lt.f32.partialorder %v963, 0.0004427343
        %v965 = vsel %vm964, %v962, %v959
        %v966 = vadd.f32 %v858, 1.0
        %v967 = vlog2.pop %v966
        %v968 = vmul.f32 %v967, 0.6931472
        %v969 = vmul.f32 -0.5, %v858
        %v970 = vadd.f32 %v969, 1.0
        %v971 = vmul.f32 %v970, %v858
        %v972 = vand.u32 2147483647, %v858
        %vm973 = vcmp.lt.f32.partialorder %v972, 0.0004427343
        %v974 = vsel %vm973, %v971, %v968
        %v975 = vadd.f32 %v860, 1.0
        %v976 = vlog2.pop %v975
        %v977 = vmul.f32 %v976, 0.6931472
        %v978 = vmul.f32 -0.5, %v860
        %v979 = vadd.f32 %v978, 1.0
        %v980 = vmul.f32 %v979, %v860
        %v981 = vand.u32 2147483647, %v860
        %vm982 = vcmp.lt.f32.partialorder %v981, 0.0004427343
        %v983 = vsel %vm982, %v980, %v977
        %v984 = vadd.f32 %v862, 1.0
        %v985 = vlog2.pop %v984
        %v986 = vmul.f32 %v985, 0.6931472
        %v987 = vmul.f32 -0.5, %v862
        %v988 = vadd.f32 %v987, 1.0
        %v989 = vmul.f32 %v988, %v862
        %v990 = vand.u32 2147483647, %v862
        %vm991 = vcmp.lt.f32.partialorder %v990, 0.0004427343
        %v992 = vsel %vm991, %v989, %v986
        %v993 = vadd.f32 %v864, 1.0
        %v994 = vlog2.pop %v993
        %v995 = vmul.f32 %v994, 0.6931472
        %v996 = vmul.f32 -0.5, %v864
        %v997 = vadd.f32 %v996, 1.0
        %v998 = vmul.f32 %v997, %v864
        %v999 = vand.u32 2147483647, %v864
        %vm1000 = vcmp.lt.f32.partialorder %v999, 0.0004427343
        %v1001 = vsel %vm1000, %v998, %v995
        %v1002 = vadd.f32 %v866, 1.0
        %v1003 = vlog2.pop %v1002
        %v1004 = vmul.f32 %v1003, 0.6931472
        %v1005 = vmul.f32 -0.5, %v866
        %v1006 = vadd.f32 %v1005, 1.0
        %v1007 = vmul.f32 %v1006, %v866
        %v1008 = vand.u32 2147483647, %v866
        %vm1009 = vcmp.lt.f32.partialorder %v1008, 0.0004427343
        %v1010 = vsel %vm1009, %v1007, %v1004
        %v1011 = vmul.f32 %v875, 2.0
        %v1012 = vmul.f32 %v884, 2.0
        %v1013 = vmul.f32 %v893, 2.0
        %v1014 = vmul.f32 %v902, 2.0
        %v1015 = vmul.f32 %v911, 2.0
        %v1016 = vmul.f32 %v920, 2.0
        %v1017 = vmul.f32 %v929, 2.0
        %v1018 = vmul.f32 %v938, 2.0
        %v1019 = vmul.f32 %v947, 2.0
        %v1020 = vmul.f32 %v956, 2.0
        %v1021 = vmul.f32 %v965, 2.0
        %v1022 = vmul.f32 %v974, 2.0
        %v1023 = vmul.f32 %v983, 2.0
        %v1024 = vmul.f32 %v992, 2.0
        %v1025 = vmul.f32 %v1001, 2.0
        %v1026 = vmul.f32 %v1010, 2.0
        %v1027 = vsel %vm819, %v709, %v1011
        %v1028 = vsel %vm820, %v714, %v1012
        %v1029 = vsel %vm821, %v719, %v1013
        %v1030 = vsel %vm822, %v724, %v1014
        %v1031 = vsel %vm823, %v729, %v1015
        %v1032 = vsel %vm824, %v734, %v1016
        %v1033 = vsel %vm825, %v739, %v1017
        %v1034 = vsel %vm826, %v744, %v1018
        %v1035 = vsel %vm827, %v749, %v1019
        %v1036 = vsel %vm828, %v754, %v1020
        %v1037 = vsel %vm829, %v759, %v1021
        %v1038 = vsel %vm830, %v764, %v1022
        %v1039 = vsel %vm831, %v769, %v1023
        %v1040 = vsel %vm832, %v774, %v1024
        %v1041 = vsel %vm833, %v779, %v1025
        %v1042 = vsel %vm834, %v784, %v1026
        %s1043 = scalar_lea.vmem [#allocation2], 384
        %v1044 = vld [vmem:[%s1043] sm:$0xff]
        %v1045 = vld [vmem:[%s1043 + $0x8] sm:$0xff]
        %v1046 = vld [vmem:[%s1043 + $0x10] sm:$0xff]
        %v1047 = vld [vmem:[%s1043 + $0x18] sm:$0xff]
        %v1048 = vld [vmem:[%s1043 + $0x20] sm:$0xff]
        %v1049 = vld [vmem:[%s1043 + $0x28] sm:$0xff]
        %v1050 = vld [vmem:[%s1043 + $0x30] sm:$0xff]
        %v1051 = vld [vmem:[%s1043 + $0x38] sm:$0xff]
        %v1052 = vld [vmem:[%s1043 + $0x40] sm:$0xff]
        %v1053 = vld [vmem:[%s1043 + $0x48] sm:$0xff]
        %v1054 = vld [vmem:[%s1043 + $0x50] sm:$0xff]
        %v1055 = vld [vmem:[%s1043 + $0x58] sm:$0xff]
        %v1056 = vld [vmem:[%s1043 + $0x60] sm:$0xff]
        %v1057 = vld [vmem:[%s1043 + $0x68] sm:$0xff]
        %v1058 = vld [vmem:[%s1043 + $0x70] sm:$0xff]
        %v1059 = vld [vmem:[%s1043 + $0x78] sm:$0xff]
        %v1060 = vld [vmem:[%s3 + $0x3] sm:$0x1]
        %v1061 = vlaneseq
        %v1062 = vshrl.u32 %v1061, 7
        %v1063 = vsub.s32 0, %v1062
        %v1064 = vrot.slane %v1060, %v1063
        %1065 = vmatprep.subr.mxu0 0.0
        %1066 = vmatpush1.msra.mxu0 %v1059
        %1067 = vmatprep.subr.mxu0 0.0
        %1068 = vmatpush1.msra.mxu0 %v1058
        %1069 = vmatprep.subr.mxu0 0.0
        %1070 = vmatpush1.msra.mxu0 %v1057
        %1071 = vmatprep.subr.mxu0 0.0
        %1072 = vmatpush1.msra.mxu0 %v1056
        %1073 = vmatprep.subr.mxu0 0.0
        %1074 = vmatpush1.msra.mxu0 %v1055
        %1075 = vmatprep.subr.mxu0 0.0
        %1076 = vmatpush1.msra.mxu0 %v1054
        %1077 = vmatprep.subr.mxu0 0.0
        %1078 = vmatpush1.msra.mxu0 %v1053
        %1079 = vmatprep.subr.mxu0 0.0
        %1080 = vmatpush1.msra.mxu0 %v1052
        %1081 = vmatprep.subr.mxu0 0.0
        %1082 = vmatpush1.msra.mxu0 %v1051
        %1083 = vmatprep.subr.mxu0 0.0
        %1084 = vmatpush1.msra.mxu0 %v1050
        %1085 = vmatprep.subr.mxu0 0.0
        %1086 = vmatpush1.msra.mxu0 %v1049
        %1087 = vmatprep.subr.mxu0 0.0
        %1088 = vmatpush1.msra.mxu0 %v1048
        %1089 = vmatprep.subr.mxu0 0.0
        %1090 = vmatpush1.msra.mxu0 %v1047
        %1091 = vmatprep.subr.mxu0 0.0
        %1092 = vmatpush1.msra.mxu0 %v1046
        %1093 = vmatprep.subr.mxu0 0.0
        %1094 = vmatpush1.msra.mxu0 %v1045
        %1095 = vmatprep.subr.mxu0 0.0
        %1096 = vmatpush1.msra.mxu0 %v1044
        %1097 = vmatprep.subr.mxu0 0.0
        %1098 = vmatpush2.msra.mxu0 0.0
        %1099 = vmatprep.subr.mxu0 0.0
        %1100 = vmatpush2.msra.mxu0 0.0
        %1101 = vmatprep.subr.mxu0 0.0
        %1102 = vmatpush2.msra.mxu0 0.0
        %1103 = vmatprep.subr.mxu0 0.0
        %1104 = vmatpush2.msra.mxu0 0.0
        %1105 = vmatprep.subr.mxu0 0.0
        %1106 = vmatpush2.msra.mxu0 0.0
        %1107 = vmatprep.subr.mxu0 0.0
        %1108 = vmatpush2.msra.mxu0 0.0
        %1109 = vmatprep.subr.mxu0 0.0
        %1110 = vmatpush2.msra.mxu0 0.0
        %1111 = vmatprep.subr.mxu0 0.0
        %1112 = vmatpush2.msra.mxu0 0.0
        %1113 = vmatprep.subr.mxu0 0.0
        %1114 = vmatpush2.msra.mxu0 0.0
        %1115 = vmatprep.subr.mxu0 0.0
        %1116 = vmatpush2.msra.mxu0 0.0
        %1117 = vmatprep.subr.mxu0 0.0
        %1118 = vmatpush2.msra.mxu0 0.0
        %1119 = vmatprep.subr.mxu0 0.0
        %1120 = vmatpush2.msra.mxu0 0.0
        %1121 = vmatprep.subr.mxu0 0.0
        %1122 = vmatpush2.msra.mxu0 0.0
        %1123 = vmatprep.subr.mxu0 0.0
        %1124 = vmatpush2.msra.mxu0 0.0
        %1125 = vmatprep.subr.mxu0 0.0
        %1126 = vmatpush2.msra.mxu0 0.0
        %1127 = vmatprep.subr.mxu0 0.0
        %1128 = vmatpush2.msra.mxu0 0.0
        %1129 = vmatprep.mubr.f32.mxu0 0.0
        %1130 = vmatmul.mubr.f32.gmra.mxu0 %v1027
        %v1131 = vpop.f32.mrf.mxu0
        %v1132 = vadd.f32 %v1064, %v1131
        %v1133 = vpop.f32.mrf.mxu0
        %1134 = vmatprep.mubr.f32.mxu0 0.0
        %1135 = vmatmul.mubr.f32.gmra.mxu0 %v1028
        %v1136 = vpop.f32.mrf.mxu0
        %v1137 = vadd.f32 %v1064, %v1136
        %v1138 = vpop.f32.mrf.mxu0
        %1139 = vmatprep.mubr.f32.mxu0 0.0
        %1140 = vmatmul.mubr.f32.gmra.mxu0 %v1029
        %v1141 = vpop.f32.mrf.mxu0
        %v1142 = vadd.f32 %v1064, %v1141
        %v1143 = vpop.f32.mrf.mxu0
        %1144 = vmatprep.mubr.f32.mxu0 0.0
        %1145 = vmatmul.mubr.f32.gmra.mxu0 %v1030
        %v1146 = vpop.f32.mrf.mxu0
        %v1147 = vadd.f32 %v1064, %v1146
        %v1148 = vpop.f32.mrf.mxu0
        %1149 = vmatprep.mubr.f32.mxu0 0.0
        %1150 = vmatmul.mubr.f32.gmra.mxu0 %v1031
        %v1151 = vpop.f32.mrf.mxu0
        %v1152 = vadd.f32 %v1064, %v1151
        %v1153 = vpop.f32.mrf.mxu0
        %1154 = vmatprep.mubr.f32.mxu0 0.0
        %1155 = vmatmul.mubr.f32.gmra.mxu0 %v1032
        %v1156 = vpop.f32.mrf.mxu0
        %v1157 = vadd.f32 %v1064, %v1156
        %v1158 = vpop.f32.mrf.mxu0
        %1159 = vmatprep.mubr.f32.mxu0 0.0
        %1160 = vmatmul.mubr.f32.gmra.mxu0 %v1033
        %v1161 = vpop.f32.mrf.mxu0
        %v1162 = vadd.f32 %v1064, %v1161
        %v1163 = vpop.f32.mrf.mxu0
        %1164 = vmatprep.mubr.f32.mxu0 0.0
        %1165 = vmatmul.mubr.f32.gmra.mxu0 %v1034
        %v1166 = vpop.f32.mrf.mxu0
        %v1167 = vadd.f32 %v1064, %v1166
        %v1168 = vpop.f32.mrf.mxu0
        %1169 = vmatprep.mubr.f32.mxu0 0.0
        %1170 = vmatmul.mubr.f32.gmra.mxu0 %v1035
        %v1171 = vpop.f32.mrf.mxu0
        %v1172 = vadd.f32 %v1064, %v1171
        %v1173 = vpop.f32.mrf.mxu0
        %1174 = vmatprep.mubr.f32.mxu0 0.0
        %1175 = vmatmul.mubr.f32.gmra.mxu0 %v1036
        %v1176 = vpop.f32.mrf.mxu0
        %v1177 = vadd.f32 %v1064, %v1176
        %v1178 = vpop.f32.mrf.mxu0
        %1179 = vmatprep.mubr.f32.mxu0 0.0
        %1180 = vmatmul.mubr.f32.gmra.mxu0 %v1037
        %v1181 = vpop.f32.mrf.mxu0
        %v1182 = vadd.f32 %v1064, %v1181
        %v1183 = vpop.f32.mrf.mxu0
        %1184 = vmatprep.mubr.f32.mxu0 0.0
        %1185 = vmatmul.mubr.f32.gmra.mxu0 %v1038
        %v1186 = vpop.f32.mrf.mxu0
        %v1187 = vadd.f32 %v1064, %v1186
        %v1188 = vpop.f32.mrf.mxu0
        %1189 = vmatprep.mubr.f32.mxu0 0.0
        %1190 = vmatmul.mubr.f32.gmra.mxu0 %v1039
        %v1191 = vpop.f32.mrf.mxu0
        %v1192 = vadd.f32 %v1064, %v1191
        %v1193 = vpop.f32.mrf.mxu0
        %1194 = vmatprep.mubr.f32.mxu0 0.0
        %1195 = vmatmul.mubr.f32.gmra.mxu0 %v1040
        %v1196 = vpop.f32.mrf.mxu0
        %v1197 = vadd.f32 %v1064, %v1196
        %v1198 = vpop.f32.mrf.mxu0
        %1199 = vmatprep.mubr.f32.mxu0 0.0
        %1200 = vmatmul.mubr.f32.gmra.mxu0 %v1041
        %v1201 = vpop.f32.mrf.mxu0
        %v1202 = vadd.f32 %v1064, %v1201
        %v1203 = vpop.f32.mrf.mxu0
        %1204 = vmatprep.mubr.f32.mxu0 0.0
        %1205 = vmatmul.mubr.f32.gmra.mxu0 %v1042
        %v1206 = vpop.f32.mrf.mxu0
        %v1207 = vadd.f32 %v1064, %v1206
        %v1208 = vpop.f32.mrf.mxu0
        %1209 = vdwg.mxu0
        %s1210 = scalar_lea.vmem [#allocation2], 768
        %v1211 = vld [vmem:[%s1210] sm:$0xff]
        %v1212 = vld [vmem:[%s1210 + $0x8] sm:$0xff]
        %v1213 = vld [vmem:[%s1210 + $0x10] sm:$0xff]
        %v1214 = vld [vmem:[%s1210 + $0x18] sm:$0xff]
        %v1215 = vld [vmem:[%s1210 + $0x20] sm:$0xff]
        %v1216 = vld [vmem:[%s1210 + $0x28] sm:$0xff]
        %v1217 = vld [vmem:[%s1210 + $0x30] sm:$0xff]
        %v1218 = vld [vmem:[%s1210 + $0x38] sm:$0xff]
        %v1219 = vld [vmem:[%s1210 + $0x40] sm:$0xff]
        %v1220 = vld [vmem:[%s1210 + $0x48] sm:$0xff]
        %v1221 = vld [vmem:[%s1210 + $0x50] sm:$0xff]
        %v1222 = vld [vmem:[%s1210 + $0x58] sm:$0xff]
        %v1223 = vld [vmem:[%s1210 + $0x60] sm:$0xff]
        %v1224 = vld [vmem:[%s1210 + $0x68] sm:$0xff]
        %v1225 = vld [vmem:[%s1210 + $0x70] sm:$0xff]
        %v1226 = vld [vmem:[%s1210 + $0x78] sm:$0xff]
        %1227 = vmatprep.subr.mxu0 0.0
        %1228 = vmatpush1.msra.mxu0 %v1226
        %1229 = vmatprep.subr.mxu0 0.0
        %1230 = vmatpush1.msra.mxu0 %v1225
        %1231 = vmatprep.subr.mxu0 0.0
        %1232 = vmatpush1.msra.mxu0 %v1224
        %1233 = vmatprep.subr.mxu0 0.0
        %1234 = vmatpush1.msra.mxu0 %v1223
        %1235 = vmatprep.subr.mxu0 0.0
        %1236 = vmatpush1.msra.mxu0 %v1222
        %1237 = vmatprep.subr.mxu0 0.0
        %1238 = vmatpush1.msra.mxu0 %v1221
        %1239 = vmatprep.subr.mxu0 0.0
        %1240 = vmatpush1.msra.mxu0 %v1220
        %1241 = vmatprep.subr.mxu0 0.0
        %1242 = vmatpush1.msra.mxu0 %v1219
        %1243 = vmatprep.subr.mxu0 0.0
        %1244 = vmatpush1.msra.mxu0 %v1218
        %1245 = vmatprep.subr.mxu0 0.0
        %1246 = vmatpush1.msra.mxu0 %v1217
        %1247 = vmatprep.subr.mxu0 0.0
        %1248 = vmatpush1.msra.mxu0 %v1216
        %1249 = vmatprep.subr.mxu0 0.0
        %1250 = vmatpush1.msra.mxu0 %v1215
        %1251 = vmatprep.subr.mxu0 0.0
        %1252 = vmatpush1.msra.mxu0 %v1214
        %1253 = vmatprep.subr.mxu0 0.0
        %1254 = vmatpush1.msra.mxu0 %v1213
        %1255 = vmatprep.subr.mxu0 0.0
        %1256 = vmatpush1.msra.mxu0 %v1212
        %1257 = vmatprep.subr.mxu0 0.0
        %1258 = vmatpush1.msra.mxu0 %v1211
        %1259 = vmatprep.subr.mxu0 0.0
        %1260 = vmatpush2.msra.mxu0 0.0
        %1261 = vmatprep.subr.mxu0 0.0
        %1262 = vmatpush2.msra.mxu0 0.0
        %1263 = vmatprep.subr.mxu0 0.0
        %1264 = vmatpush2.msra.mxu0 0.0
        %1265 = vmatprep.subr.mxu0 0.0
        %1266 = vmatpush2.msra.mxu0 0.0
        %1267 = vmatprep.subr.mxu0 0.0
        %1268 = vmatpush2.msra.mxu0 0.0
        %1269 = vmatprep.subr.mxu0 0.0
        %1270 = vmatpush2.msra.mxu0 0.0
        %1271 = vmatprep.subr.mxu0 0.0
        %1272 = vmatpush2.msra.mxu0 0.0
        %1273 = vmatprep.subr.mxu0 0.0
        %1274 = vmatpush2.msra.mxu0 0.0
        %1275 = vmatprep.subr.mxu0 0.0
        %1276 = vmatpush2.msra.mxu0 0.0
        %1277 = vmatprep.subr.mxu0 0.0
        %1278 = vmatpush2.msra.mxu0 0.0
        %1279 = vmatprep.subr.mxu0 0.0
        %1280 = vmatpush2.msra.mxu0 0.0
        %1281 = vmatprep.subr.mxu0 0.0
        %1282 = vmatpush2.msra.mxu0 0.0
        %1283 = vmatprep.subr.mxu0 0.0
        %1284 = vmatpush2.msra.mxu0 0.0
        %1285 = vmatprep.subr.mxu0 0.0
        %1286 = vmatpush2.msra.mxu0 0.0
        %1287 = vmatprep.subr.mxu0 0.0
        %1288 = vmatpush2.msra.mxu0 0.0
        %1289 = vmatprep.subr.mxu0 0.0
        %1290 = vmatpush2.msra.mxu0 0.0
        %1291 = vmatprep.mubr.f32.mxu0 0.0
        %1292 = vmatmul.mubr.f32.gmra.mxu0 %v319
        %v1293 = vpop.f32.mrf.mxu0
        %v1294 = vadd.f32 0.0, %v1293
        %v1295 = vpop.f32.mrf.mxu0
        %1296 = vmatprep.mubr.f32.mxu0 0.0
        %1297 = vmatmul.mubr.f32.gmra.mxu0 %v320
        %v1298 = vpop.f32.mrf.mxu0
        %v1299 = vadd.f32 0.0, %v1298
        %v1300 = vpop.f32.mrf.mxu0
        %1301 = vdwg.mxu0
        %v1304 = vcombine.high %v1294, %v1294
        %v1306 = vunpack.c.l.s4 1966171168
        %v1307 = vunpack.c.0.s8 %v1306
        %v1308 = vlaneseq
        %v1309 = vshrl.u32 %v1308, 7
        %v1310 = vsub.s32 %v1307, %v1309
        %v1311 = vrot.slane %v1294, %v1310
        %v1313 = vunpack.c.l.s4 1966171168
        %v1314 = vunpack.c.0.s8 %v1313
        %v1315 = vlaneseq
        %v1316 = vshrl.u32 %v1315, 7
        %v1317 = vsub.s32 %v1314, %v1316
        %v1318 = vrot.slane %v1304, %v1317
        %v1319 = vcombine.high %v1311, %v1311
        %v1320 = vcombine.high %v1318, %v1318
        %v1322 = vunpack.c.l.s4 1966171168
        %v1323 = vunpack.c.0.s8 %v1322
        %v1324 = vlaneseq
        %v1325 = vshrl.u32 %v1324, 7
        %v1326 = vsub.s32 %v1323, %v1325
        %v1327 = vrot.slane %v1311, %v1326
        %v1329 = vunpack.c.l.s4 1966171168
        %v1330 = vunpack.c.0.s8 %v1329
        %v1331 = vlaneseq
        %v1332 = vshrl.u32 %v1331, 7
        %v1333 = vsub.s32 %v1330, %v1332
        %v1334 = vrot.slane %v1318, %v1333
        %v1336 = vunpack.c.l.s4 1966171168
        %v1337 = vunpack.c.0.s8 %v1336
        %v1338 = vlaneseq
        %v1339 = vshrl.u32 %v1338, 7
        %v1340 = vsub.s32 %v1337, %v1339
        %v1341 = vrot.slane %v1319, %v1340
        %v1343 = vunpack.c.l.s4 1966171168
        %v1344 = vunpack.c.0.s8 %v1343
        %v1345 = vlaneseq
        %v1346 = vshrl.u32 %v1345, 7
        %v1347 = vsub.s32 %v1344, %v1346
        %v1348 = vrot.slane %v1320, %v1347
        %v1349 = vcombine.high %v1327, %v1327
        %v1350 = vcombine.high %v1334, %v1334
        %v1351 = vcombine.high %v1341, %v1341
        %v1352 = vcombine.high %v1348, %v1348
        %v1353 = vcombine.high %v1299, %v1299
        %v1355 = vunpack.c.l.s4 1966171168
        %v1356 = vunpack.c.0.s8 %v1355
        %v1357 = vlaneseq
        %v1358 = vshrl.u32 %v1357, 7
        %v1359 = vsub.s32 %v1356, %v1358
        %v1360 = vrot.slane %v1299, %v1359
        %v1362 = vunpack.c.l.s4 1966171168
        %v1363 = vunpack.c.0.s8 %v1362
        %v1364 = vlaneseq
        %v1365 = vshrl.u32 %v1364, 7
        %v1366 = vsub.s32 %v1363, %v1365
        %v1367 = vrot.slane %v1353, %v1366
        %v1368 = vcombine.high %v1360, %v1360
        %v1369 = vcombine.high %v1367, %v1367
        %v1371 = vunpack.c.l.s4 1966171168
        %v1372 = vunpack.c.0.s8 %v1371
        %v1373 = vlaneseq
        %v1374 = vshrl.u32 %v1373, 7
        %v1375 = vsub.s32 %v1372, %v1374
        %v1376 = vrot.slane %v1360, %v1375
        %v1378 = vunpack.c.l.s4 1966171168
        %v1379 = vunpack.c.0.s8 %v1378
        %v1380 = vlaneseq
        %v1381 = vshrl.u32 %v1380, 7
        %v1382 = vsub.s32 %v1379, %v1381
        %v1383 = vrot.slane %v1367, %v1382
        %v1385 = vunpack.c.l.s4 1966171168
        %v1386 = vunpack.c.0.s8 %v1385
        %v1387 = vlaneseq
        %v1388 = vshrl.u32 %v1387, 7
        %v1389 = vsub.s32 %v1386, %v1388
        %v1390 = vrot.slane %v1368, %v1389
        %v1392 = vunpack.c.l.s4 1966171168
        %v1393 = vunpack.c.0.s8 %v1392
        %v1394 = vlaneseq
        %v1395 = vshrl.u32 %v1394, 7
        %v1396 = vsub.s32 %v1393, %v1395
        %v1397 = vrot.slane %v1369, %v1396
        %v1398 = vcombine.high %v1376, %v1376
        %v1399 = vcombine.high %v1383, %v1383
        %v1400 = vcombine.high %v1390, %v1390
        %v1401 = vcombine.high %v1397, %v1397
        %v1402 = vlaneseq
        %v1403 = vshrl.u32 %v1402, 7
        %v1404 = vsub.s32 0, %v1403
        %v1405 = vrot.slane %v1327, %v1404
        %v1406 = vlaneseq
        %v1407 = vshrl.u32 %v1406, 7
        %v1408 = vsub.s32 0, %v1407
        %v1409 = vrot.slane %v1341, %v1408
        %v1410 = vlaneseq
        %v1411 = vshrl.u32 %v1410, 7
        %v1412 = vsub.s32 0, %v1411
        %v1413 = vrot.slane %v1349, %v1412
        %v1414 = vlaneseq
        %v1415 = vshrl.u32 %v1414, 7
        %v1416 = vsub.s32 0, %v1415
        %v1417 = vrot.slane %v1351, %v1416
        %v1418 = vlaneseq
        %v1419 = vshrl.u32 %v1418, 7
        %v1420 = vsub.s32 0, %v1419
        %v1421 = vrot.slane %v1334, %v1420
        %v1422 = vlaneseq
        %v1423 = vshrl.u32 %v1422, 7
        %v1424 = vsub.s32 0, %v1423
        %v1425 = vrot.slane %v1348, %v1424
        %v1426 = vlaneseq
        %v1427 = vshrl.u32 %v1426, 7
        %v1428 = vsub.s32 0, %v1427
        %v1429 = vrot.slane %v1350, %v1428
        %v1430 = vlaneseq
        %v1431 = vshrl.u32 %v1430, 7
        %v1432 = vsub.s32 0, %v1431
        %v1433 = vrot.slane %v1352, %v1432
        %v1434 = vlaneseq
        %v1435 = vshrl.u32 %v1434, 7
        %v1436 = vsub.s32 0, %v1435
        %v1437 = vrot.slane %v1376, %v1436
        %v1438 = vlaneseq
        %v1439 = vshrl.u32 %v1438, 7
        %v1440 = vsub.s32 0, %v1439
        %v1441 = vrot.slane %v1390, %v1440
        %v1442 = vlaneseq
        %v1443 = vshrl.u32 %v1442, 7
        %v1444 = vsub.s32 0, %v1443
        %v1445 = vrot.slane %v1398, %v1444
        %v1446 = vlaneseq
        %v1447 = vshrl.u32 %v1446, 7
        %v1448 = vsub.s32 0, %v1447
        %v1449 = vrot.slane %v1400, %v1448
        %v1450 = vlaneseq
        %v1451 = vshrl.u32 %v1450, 7
        %v1452 = vsub.s32 0, %v1451
        %v1453 = vrot.slane %v1383, %v1452
        %v1454 = vlaneseq
        %v1455 = vshrl.u32 %v1454, 7
        %v1456 = vsub.s32 0, %v1455
        %v1457 = vrot.slane %v1397, %v1456
        %v1458 = vlaneseq
        %v1459 = vshrl.u32 %v1458, 7
        %v1460 = vsub.s32 0, %v1459
        %v1461 = vrot.slane %v1399, %v1460
        %v1462 = vlaneseq
        %v1463 = vshrl.u32 %v1462, 7
        %v1464 = vsub.s32 0, %v1463
        %v1465 = vrot.slane %v1401, %v1464
        %v1482 = vmul.f32 %v1132, %v1405
        %v1483 = vmul.f32 %v1137, %v1409
        %v1484 = vmul.f32 %v1142, %v1413
        %v1485 = vmul.f32 %v1147, %v1417
        %v1486 = vmul.f32 %v1152, %v1421
        %v1487 = vmul.f32 %v1157, %v1425
        %v1488 = vmul.f32 %v1162, %v1429
        %v1489 = vmul.f32 %v1167, %v1433
        %v1490 = vmul.f32 %v1172, %v1437
        %v1491 = vmul.f32 %v1177, %v1441
        %v1492 = vmul.f32 %v1182, %v1445
        %v1493 = vmul.f32 %v1187, %v1449
        %v1494 = vmul.f32 %v1192, %v1453
        %v1495 = vmul.f32 %v1197, %v1457
        %v1496 = vmul.f32 %v1202, %v1461
        %v1497 = vmul.f32 %v1207, %v1465
        %v1498 = vadd.f32 %v1482, %v1483
        %v1499 = vadd.f32 %v1498, %v1484
        %v1500 = vadd.f32 %v1499, %v1485
        %v1501 = vadd.f32 %v1500, %v1486
        %v1502 = vadd.f32 %v1501, %v1487
        %v1503 = vadd.f32 %v1502, %v1488
        %v1504 = vadd.f32 %v1503, %v1489
        %v1505 = vadd.f32 %v1490, %v1491
        %v1506 = vadd.f32 %v1505, %v1492
        %v1507 = vadd.f32 %v1506, %v1493
        %v1508 = vadd.f32 %v1507, %v1494
        %v1509 = vadd.f32 %v1508, %v1495
        %v1510 = vadd.f32 %v1509, %v1496
        %v1511 = vadd.f32 %v1510, %v1497
        %v1512 = vld [vmem:[%s3 + $0xc] sm:$0x1]
        %v1513 = vlaneseq
        %v1514 = vshrl.u32 %v1513, 7
        %v1515 = vsub.s32 0, %v1514
        %v1516 = vrot.slane %v1512, %v1515
        %v1517 = vmul.f32 %v1294, %v1516
        %v1518 = vmul.f32 %v1299, %v1516
        %v1519 = vsub.f32 %v1504, %v1517
        %v1520 = vsub.f32 %v1511, %v1518
        %s1521 = scalar_lea.vmem [#allocation2], 1152
        %v1522 = vld [vmem:[%s1521] sm:$0xff]
        %v1523 = vld [vmem:[%s1521 + $0x8] sm:$0xff]
        %v1524 = vld [vmem:[%s1521 + $0x10] sm:$0xff]
        %v1525 = vld [vmem:[%s1521 + $0x18] sm:$0xff]
        %v1526 = vld [vmem:[%s1521 + $0x20] sm:$0xff]
        %v1527 = vld [vmem:[%s1521 + $0x28] sm:$0xff]
        %v1528 = vld [vmem:[%s1521 + $0x30] sm:$0xff]
        %v1529 = vld [vmem:[%s1521 + $0x38] sm:$0xff]
        %v1530 = vld [vmem:[%s1521 + $0x40] sm:$0xff]
        %v1531 = vld [vmem:[%s1521 + $0x48] sm:$0xff]
        %v1532 = vld [vmem:[%s1521 + $0x50] sm:$0xff]
        %v1533 = vld [vmem:[%s1521 + $0x58] sm:$0xff]
        %v1534 = vld [vmem:[%s1521 + $0x60] sm:$0xff]
        %v1535 = vld [vmem:[%s1521 + $0x68] sm:$0xff]
        %v1536 = vld [vmem:[%s1521 + $0x70] sm:$0xff]
        %v1537 = vld [vmem:[%s1521 + $0x78] sm:$0xff]
        %v1538 = vld [vmem:[%s3 + $0x6] sm:$0x1]
        %v1539 = vlaneseq
        %v1540 = vshrl.u32 %v1539, 7
        %v1541 = vsub.s32 0, %v1540
        %v1542 = vrot.slane %v1538, %v1541
        %1543 = vmatprep.subr.mxu0 0.0
        %1544 = vmatpush1.msra.mxu0 %v1537
        %1545 = vmatprep.subr.mxu0 0.0
        %1546 = vmatpush1.msra.mxu0 %v1536
        %1547 = vmatprep.subr.mxu0 0.0
        %1548 = vmatpush1.msra.mxu0 %v1535
        %1549 = vmatprep.subr.mxu0 0.0
        %1550 = vmatpush1.msra.mxu0 %v1534
        %1551 = vmatprep.subr.mxu0 0.0
        %1552 = vmatpush1.msra.mxu0 %v1533
        %1553 = vmatprep.subr.mxu0 0.0
        %1554 = vmatpush1.msra.mxu0 %v1532
        %1555 = vmatprep.subr.mxu0 0.0
        %1556 = vmatpush1.msra.mxu0 %v1531
        %1557 = vmatprep.subr.mxu0 0.0
        %1558 = vmatpush1.msra.mxu0 %v1530
        %1559 = vmatprep.subr.mxu0 0.0
        %1560 = vmatpush1.msra.mxu0 %v1529
        %1561 = vmatprep.subr.mxu0 0.0
        %1562 = vmatpush1.msra.mxu0 %v1528
        %1563 = vmatprep.subr.mxu0 0.0
        %1564 = vmatpush1.msra.mxu0 %v1527
        %1565 = vmatprep.subr.mxu0 0.0
        %1566 = vmatpush1.msra.mxu0 %v1526
        %1567 = vmatprep.subr.mxu0 0.0
        %1568 = vmatpush1.msra.mxu0 %v1525
        %1569 = vmatprep.subr.mxu0 0.0
        %1570 = vmatpush1.msra.mxu0 %v1524
        %1571 = vmatprep.subr.mxu0 0.0
        %1572 = vmatpush1.msra.mxu0 %v1523
        %1573 = vmatprep.subr.mxu0 0.0
        %1574 = vmatpush1.msra.mxu0 %v1522
        %1575 = vmatprep.subr.mxu0 0.0
        %1576 = vmatpush2.msra.mxu0 0.0
        %1577 = vmatprep.subr.mxu0 0.0
        %1578 = vmatpush2.msra.mxu0 0.0
        %1579 = vmatprep.subr.mxu0 0.0
        %1580 = vmatpush2.msra.mxu0 0.0
        %1581 = vmatprep.subr.mxu0 0.0
        %1582 = vmatpush2.msra.mxu0 0.0
        %1583 = vmatprep.subr.mxu0 0.0
        %1584 = vmatpush2.msra.mxu0 0.0
        %1585 = vmatprep.subr.mxu0 0.0
        %1586 = vmatpush2.msra.mxu0 0.0
        %1587 = vmatprep.subr.mxu0 0.0
        %1588 = vmatpush2.msra.mxu0 0.0
        %1589 = vmatprep.subr.mxu0 0.0
        %1590 = vmatpush2.msra.mxu0 0.0
        %1591 = vmatprep.subr.mxu0 0.0
        %1592 = vmatpush2.msra.mxu0 0.0
        %1593 = vmatprep.subr.mxu0 0.0
        %1594 = vmatpush2.msra.mxu0 0.0
        %1595 = vmatprep.subr.mxu0 0.0
        %1596 = vmatpush2.msra.mxu0 0.0
        %1597 = vmatprep.subr.mxu0 0.0
        %1598 = vmatpush2.msra.mxu0 0.0
        %1599 = vmatprep.subr.mxu0 0.0
        %1600 = vmatpush2.msra.mxu0 0.0
        %1601 = vmatprep.subr.mxu0 0.0
        %1602 = vmatpush2.msra.mxu0 0.0
        %1603 = vmatprep.subr.mxu0 0.0
        %1604 = vmatpush2.msra.mxu0 0.0
        %1605 = vmatprep.subr.mxu0 0.0
        %1606 = vmatpush2.msra.mxu0 0.0
        %1607 = vmatprep.mubr.f32.mxu0 0.0
        %1608 = vmatmul.mubr.f32.gmra.mxu0 %v1519
        %v1609 = vpop.f32.mrf.mxu0
        %v1610 = vadd.f32 %v1542, %v1609
        %v1611 = vpop.f32.mrf.mxu0
        %1612 = vmatprep.mubr.f32.mxu0 0.0
        %1613 = vmatmul.mubr.f32.gmra.mxu0 %v1520
        %v1614 = vpop.f32.mrf.mxu0
        %v1615 = vadd.f32 %v1542, %v1614
        %v1616 = vpop.f32.mrf.mxu0
        %1617 = vdwg.mxu0
        %v1618 = vmul.f32 %v1610, 0.5
        %v1619 = vmul.f32 %v1615, 0.5
        %v1620 = vmin.f32 %v1618, 14.0
        %v1621 = vmin.f32 %v1619, 14.0
        %vm1622 = vcmp.gt.f32.partialorder %v1618, 14.0
        %vm1623 = vcmp.gt.f32.partialorder %v1619, 14.0
        %v1624 = vmul.f32 %v1620, 1.442695
        %v1625 = vpow.pop %v1624
        %v1626 = vmul.f32 %v1621, 1.442695
        %v1627 = vpow.pop %v1626
        %v1628 = vadd.f32 %v1625, 1.0
        %v1629 = vlog2.pop %v1628
        %v1630 = vmul.f32 %v1629, 0.6931472
        %v1631 = vmul.f32 -0.5, %v1625
        %v1632 = vadd.f32 %v1631, 1.0
        %v1633 = vmul.f32 %v1632, %v1625
        %v1634 = vand.u32 2147483647, %v1625
        %vm1635 = vcmp.lt.f32.partialorder %v1634, 0.0004427343
        %v1636 = vsel %vm1635, %v1633, %v1630
        %v1637 = vadd.f32 %v1627, 1.0
        %v1638 = vlog2.pop %v1637
        %v1639 = vmul.f32 %v1638, 0.6931472
        %v1640 = vmul.f32 -0.5, %v1627
        %v1641 = vadd.f32 %v1640, 1.0
        %v1642 = vmul.f32 %v1641, %v1627
        %v1643 = vand.u32 2147483647, %v1627
        %vm1644 = vcmp.lt.f32.partialorder %v1643, 0.0004427343
        %v1645 = vsel %vm1644, %v1642, %v1639
        %v1646 = vmul.f32 %v1636, 2.0
        %v1647 = vmul.f32 %v1645, 2.0
        %v1648 = vsel %vm1622, %v1610, %v1646
        %v1649 = vsel %vm1623, %v1615, %v1647
        %s1650 = scalar_lea.vmem [#allocation2], 1536
        %v1651 = vld [vmem:[%s1650] sm:$0xff]
        %v1652 = vld [vmem:[%s1650 + $0x8] sm:$0xff]
        %v1653 = vld [vmem:[%s1650 + $0x10] sm:$0xff]
        %v1654 = vld [vmem:[%s1650 + $0x18] sm:$0xff]
        %v1655 = vld [vmem:[%s1650 + $0x20] sm:$0xff]
        %v1656 = vld [vmem:[%s1650 + $0x28] sm:$0xff]
        %v1657 = vld [vmem:[%s1650 + $0x30] sm:$0xff]
        %v1658 = vld [vmem:[%s1650 + $0x38] sm:$0xff]
        %v1659 = vld [vmem:[%s1650 + $0x40] sm:$0xff]
        %v1660 = vld [vmem:[%s1650 + $0x48] sm:$0xff]
        %v1661 = vld [vmem:[%s1650 + $0x50] sm:$0xff]
        %v1662 = vld [vmem:[%s1650 + $0x58] sm:$0xff]
        %v1663 = vld [vmem:[%s1650 + $0x60] sm:$0xff]
        %v1664 = vld [vmem:[%s1650 + $0x68] sm:$0xff]
        %v1665 = vld [vmem:[%s1650 + $0x70] sm:$0xff]
        %v1666 = vld [vmem:[%s1650 + $0x78] sm:$0xff]
        %1667 = vmatprep.subr.mxu0 0.0
        %1668 = vmatpush1.msra.mxu0 %v1666
        %1669 = vmatprep.subr.mxu0 0.0
        %1670 = vmatpush1.msra.mxu0 %v1665
        %1671 = vmatprep.subr.mxu0 0.0
        %1672 = vmatpush1.msra.mxu0 %v1664
        %1673 = vmatprep.subr.mxu0 0.0
        %1674 = vmatpush1.msra.mxu0 %v1663
        %1675 = vmatprep.subr.mxu0 0.0
        %1676 = vmatpush1.msra.mxu0 %v1662
        %1677 = vmatprep.subr.mxu0 0.0
        %1678 = vmatpush1.msra.mxu0 %v1661
        %1679 = vmatprep.subr.mxu0 0.0
        %1680 = vmatpush1.msra.mxu0 %v1660
        %1681 = vmatprep.subr.mxu0 0.0
        %1682 = vmatpush1.msra.mxu0 %v1659
        %1683 = vmatprep.subr.mxu0 0.0
        %1684 = vmatpush1.msra.mxu0 %v1658
        %1685 = vmatprep.subr.mxu0 0.0
        %1686 = vmatpush1.msra.mxu0 %v1657
        %1687 = vmatprep.subr.mxu0 0.0
        %1688 = vmatpush1.msra.mxu0 %v1656
        %1689 = vmatprep.subr.mxu0 0.0
        %1690 = vmatpush1.msra.mxu0 %v1655
        %1691 = vmatprep.subr.mxu0 0.0
        %1692 = vmatpush1.msra.mxu0 %v1654
        %1693 = vmatprep.subr.mxu0 0.0
        %1694 = vmatpush1.msra.mxu0 %v1653
        %1695 = vmatprep.subr.mxu0 0.0
        %1696 = vmatpush1.msra.mxu0 %v1652
        %1697 = vmatprep.subr.mxu0 0.0
        %1698 = vmatpush1.msra.mxu0 %v1651
        %1699 = vmatprep.subr.mxu0 0.0
        %1700 = vmatpush2.msra.mxu0 0.0
        %1701 = vmatprep.subr.mxu0 0.0
        %1702 = vmatpush2.msra.mxu0 0.0
        %1703 = vmatprep.subr.mxu0 0.0
        %1704 = vmatpush2.msra.mxu0 0.0
        %1705 = vmatprep.subr.mxu0 0.0
        %1706 = vmatpush2.msra.mxu0 0.0
        %1707 = vmatprep.subr.mxu0 0.0
        %1708 = vmatpush2.msra.mxu0 0.0
        %1709 = vmatprep.subr.mxu0 0.0
        %1710 = vmatpush2.msra.mxu0 0.0
        %1711 = vmatprep.subr.mxu0 0.0
        %1712 = vmatpush2.msra.mxu0 0.0
        %1713 = vmatprep.subr.mxu0 0.0
        %1714 = vmatpush2.msra.mxu0 0.0
        %1715 = vmatprep.subr.mxu0 0.0
        %1716 = vmatpush2.msra.mxu0 0.0
        %1717 = vmatprep.subr.mxu0 0.0
        %1718 = vmatpush2.msra.mxu0 0.0
        %1719 = vmatprep.subr.mxu0 0.0
        %1720 = vmatpush2.msra.mxu0 0.0
        %1721 = vmatprep.subr.mxu0 0.0
        %1722 = vmatpush2.msra.mxu0 0.0
        %1723 = vmatprep.subr.mxu0 0.0
        %1724 = vmatpush2.msra.mxu0 0.0
        %1725 = vmatprep.subr.mxu0 0.0
        %1726 = vmatpush2.msra.mxu0 0.0
        %1727 = vmatprep.subr.mxu0 0.0
        %1728 = vmatpush2.msra.mxu0 0.0
        %1729 = vmatprep.subr.mxu0 0.0
        %1730 = vmatpush2.msra.mxu0 0.0
        %1731 = vmatprep.mubr.f32.mxu0 0.0
        %1732 = vmatmul.mubr.f32.gmra.mxu0 %v1648
        %v1733 = vpop.f32.mrf.mxu0
        %v1734 = vadd.f32 0.0, %v1733
        %v1735 = vpop.f32.mrf.mxu0
        %1736 = vmatprep.mubr.f32.mxu0 0.0
        %1737 = vmatmul.mubr.f32.gmra.mxu0 %v1649
        %v1738 = vpop.f32.mrf.mxu0
        %v1739 = vadd.f32 0.0, %v1738
        %v1740 = vpop.f32.mrf.mxu0
        %1741 = vdwg.mxu0
        %v1742 = vadd.f32 %v319, %v1734
        %v1743 = vadd.f32 %v320, %v1739
        %v1744 = vld [vmem:[%s3 + $0x9] sm:$0x1]
        %v1745 = vlaneseq
        %v1746 = vshrl.u32 %v1745, 7
        %v1747 = vsub.s32 0, %v1746
        %v1748 = vrot.slane %v1744, %v1747
        %v1749 = vadd.f32 %v1742, %v1748
        %v1750 = vadd.f32 %v1743, %v1748
        %s1751 = scalar_lea.vmem [#allocation2], 128
        %v1752 = vld [vmem:[%s1751] sm:$0xff]
        %v1753 = vld [vmem:[%s1751 + $0x8] sm:$0xff]
        %v1754 = vld [vmem:[%s1751 + $0x10] sm:$0xff]
        %v1755 = vld [vmem:[%s1751 + $0x18] sm:$0xff]
        %v1756 = vld [vmem:[%s1751 + $0x20] sm:$0xff]
        %v1757 = vld [vmem:[%s1751 + $0x28] sm:$0xff]
        %v1758 = vld [vmem:[%s1751 + $0x30] sm:$0xff]
        %v1759 = vld [vmem:[%s1751 + $0x38] sm:$0xff]
        %v1760 = vld [vmem:[%s1751 + $0x40] sm:$0xff]
        %v1761 = vld [vmem:[%s1751 + $0x48] sm:$0xff]
        %v1762 = vld [vmem:[%s1751 + $0x50] sm:$0xff]
        %v1763 = vld [vmem:[%s1751 + $0x58] sm:$0xff]
        %v1764 = vld [vmem:[%s1751 + $0x60] sm:$0xff]
        %v1765 = vld [vmem:[%s1751 + $0x68] sm:$0xff]
        %v1766 = vld [vmem:[%s1751 + $0x70] sm:$0xff]
        %v1767 = vld [vmem:[%s1751 + $0x78] sm:$0xff]
        %v1768 = vld [vmem:[%s3 + $0x1] sm:$0x1]
        %v1769 = vlaneseq
        %v1770 = vshrl.u32 %v1769, 7
        %v1771 = vsub.s32 0, %v1770
        %v1772 = vrot.slane %v1768, %v1771
        %1773 = vmatprep.subr.mxu0 0.0
        %1774 = vmatpush1.msra.mxu0 %v1767
        %1775 = vmatprep.subr.mxu0 0.0
        %1776 = vmatpush1.msra.mxu0 %v1766
        %1777 = vmatprep.subr.mxu0 0.0
        %1778 = vmatpush1.msra.mxu0 %v1765
        %1779 = vmatprep.subr.mxu0 0.0
        %1780 = vmatpush1.msra.mxu0 %v1764
        %1781 = vmatprep.subr.mxu0 0.0
        %1782 = vmatpush1.msra.mxu0 %v1763
        %1783 = vmatprep.subr.mxu0 0.0
        %1784 = vmatpush1.msra.mxu0 %v1762
        %1785 = vmatprep.subr.mxu0 0.0
        %1786 = vmatpush1.msra.mxu0 %v1761
        %1787 = vmatprep.subr.mxu0 0.0
        %1788 = vmatpush1.msra.mxu0 %v1760
        %1789 = vmatprep.subr.mxu0 0.0
        %1790 = vmatpush1.msra.mxu0 %v1759
        %1791 = vmatprep.subr.mxu0 0.0
        %1792 = vmatpush1.msra.mxu0 %v1758
        %1793 = vmatprep.subr.mxu0 0.0
        %1794 = vmatpush1.msra.mxu0 %v1757
        %1795 = vmatprep.subr.mxu0 0.0
        %1796 = vmatpush1.msra.mxu0 %v1756
        %1797 = vmatprep.subr.mxu0 0.0
        %1798 = vmatpush1.msra.mxu0 %v1755
        %1799 = vmatprep.subr.mxu0 0.0
        %1800 = vmatpush1.msra.mxu0 %v1754
        %1801 = vmatprep.subr.mxu0 0.0
        %1802 = vmatpush1.msra.mxu0 %v1753
        %1803 = vmatprep.subr.mxu0 0.0
        %1804 = vmatpush1.msra.mxu0 %v1752
        %1805 = vmatprep.subr.mxu0 0.0
        %1806 = vmatpush2.msra.mxu0 0.0
        %1807 = vmatprep.subr.mxu0 0.0
        %1808 = vmatpush2.msra.mxu0 0.0
        %1809 = vmatprep.subr.mxu0 0.0
        %1810 = vmatpush2.msra.mxu0 0.0
        %1811 = vmatprep.subr.mxu0 0.0
        %1812 = vmatpush2.msra.mxu0 0.0
        %1813 = vmatprep.subr.mxu0 0.0
        %1814 = vmatpush2.msra.mxu0 0.0
        %1815 = vmatprep.subr.mxu0 0.0
        %1816 = vmatpush2.msra.mxu0 0.0
        %1817 = vmatprep.subr.mxu0 0.0
        %1818 = vmatpush2.msra.mxu0 0.0
        %1819 = vmatprep.subr.mxu0 0.0
        %1820 = vmatpush2.msra.mxu0 0.0
        %1821 = vmatprep.subr.mxu0 0.0
        %1822 = vmatpush2.msra.mxu0 0.0
        %1823 = vmatprep.subr.mxu0 0.0
        %1824 = vmatpush2.msra.mxu0 0.0
        %1825 = vmatprep.subr.mxu0 0.0
        %1826 = vmatpush2.msra.mxu0 0.0
        %1827 = vmatprep.subr.mxu0 0.0
        %1828 = vmatpush2.msra.mxu0 0.0
        %1829 = vmatprep.subr.mxu0 0.0
        %1830 = vmatpush2.msra.mxu0 0.0
        %1831 = vmatprep.subr.mxu0 0.0
        %1832 = vmatpush2.msra.mxu0 0.0
        %1833 = vmatprep.subr.mxu0 0.0
        %1834 = vmatpush2.msra.mxu0 0.0
        %1835 = vmatprep.subr.mxu0 0.0
        %1836 = vmatpush2.msra.mxu0 0.0
        %1837 = vmatprep.mubr.f32.mxu0 0.0
        %1838 = vmatmul.mubr.f32.gmra.mxu0 %v590
        %v1839 = vpop.f32.mrf.mxu0
        %v1840 = vadd.f32 %v1772, %v1839
        %v1841 = vpop.f32.mrf.mxu0
        %1842 = vmatprep.mubr.f32.mxu0 0.0
        %1843 = vmatmul.mubr.f32.gmra.mxu0 %v592
        %v1844 = vpop.f32.mrf.mxu0
        %v1845 = vadd.f32 %v1772, %v1844
        %v1846 = vpop.f32.mrf.mxu0
        %1847 = vmatprep.mubr.f32.mxu0 0.0
        %1848 = vmatmul.mubr.f32.gmra.mxu0 %v594
        %v1849 = vpop.f32.mrf.mxu0
        %v1850 = vadd.f32 %v1772, %v1849
        %v1851 = vpop.f32.mrf.mxu0
        %1852 = vmatprep.mubr.f32.mxu0 0.0
        %1853 = vmatmul.mubr.f32.gmra.mxu0 %v596
        %v1854 = vpop.f32.mrf.mxu0
        %v1855 = vadd.f32 %v1772, %v1854
        %v1856 = vpop.f32.mrf.mxu0
        %1857 = vmatprep.mubr.f32.mxu0 0.0
        %1858 = vmatmul.mubr.f32.gmra.mxu0 %v598
        %v1859 = vpop.f32.mrf.mxu0
        %v1860 = vadd.f32 %v1772, %v1859
        %v1861 = vpop.f32.mrf.mxu0
        %1862 = vmatprep.mubr.f32.mxu0 0.0
        %1863 = vmatmul.mubr.f32.gmra.mxu0 %v600
        %v1864 = vpop.f32.mrf.mxu0
        %v1865 = vadd.f32 %v1772, %v1864
        %v1866 = vpop.f32.mrf.mxu0
        %1867 = vmatprep.mubr.f32.mxu0 0.0
        %1868 = vmatmul.mubr.f32.gmra.mxu0 %v602
        %v1869 = vpop.f32.mrf.mxu0
        %v1870 = vadd.f32 %v1772, %v1869
        %v1871 = vpop.f32.mrf.mxu0
        %1872 = vmatprep.mubr.f32.mxu0 0.0
        %1873 = vmatmul.mubr.f32.gmra.mxu0 %v604
        %v1874 = vpop.f32.mrf.mxu0
        %v1875 = vadd.f32 %v1772, %v1874
        %v1876 = vpop.f32.mrf.mxu0
        %1877 = vmatprep.mubr.f32.mxu0 0.0
        %1878 = vmatmul.mubr.f32.gmra.mxu0 %v606
        %v1879 = vpop.f32.mrf.mxu0
        %v1880 = vadd.f32 %v1772, %v1879
        %v1881 = vpop.f32.mrf.mxu0
        %1882 = vmatprep.mubr.f32.mxu0 0.0
        %1883 = vmatmul.mubr.f32.gmra.mxu0 %v608
        %v1884 = vpop.f32.mrf.mxu0
        %v1885 = vadd.f32 %v1772, %v1884
        %v1886 = vpop.f32.mrf.mxu0
        %1887 = vmatprep.mubr.f32.mxu0 0.0
        %1888 = vmatmul.mubr.f32.gmra.mxu0 %v610
        %v1889 = vpop.f32.mrf.mxu0
        %v1890 = vadd.f32 %v1772, %v1889
        %v1891 = vpop.f32.mrf.mxu0
        %1892 = vmatprep.mubr.f32.mxu0 0.0
        %1893 = vmatmul.mubr.f32.gmra.mxu0 %v612
        %v1894 = vpop.f32.mrf.mxu0
        %v1895 = vadd.f32 %v1772, %v1894
        %v1896 = vpop.f32.mrf.mxu0
        %1897 = vmatprep.mubr.f32.mxu0 0.0
        %1898 = vmatmul.mubr.f32.gmra.mxu0 %v614
        %v1899 = vpop.f32.mrf.mxu0
        %v1900 = vadd.f32 %v1772, %v1899
        %v1901 = vpop.f32.mrf.mxu0
        %1902 = vmatprep.mubr.f32.mxu0 0.0
        %1903 = vmatmul.mubr.f32.gmra.mxu0 %v616
        %v1904 = vpop.f32.mrf.mxu0
        %v1905 = vadd.f32 %v1772, %v1904
        %v1906 = vpop.f32.mrf.mxu0
        %1907 = vmatprep.mubr.f32.mxu0 0.0
        %1908 = vmatmul.mubr.f32.gmra.mxu0 %v618
        %v1909 = vpop.f32.mrf.mxu0
        %v1910 = vadd.f32 %v1772, %v1909
        %v1911 = vpop.f32.mrf.mxu0
        %1912 = vmatprep.mubr.f32.mxu0 0.0
        %1913 = vmatmul.mubr.f32.gmra.mxu0 %v620
        %v1914 = vpop.f32.mrf.mxu0
        %v1915 = vadd.f32 %v1772, %v1914
        %v1916 = vpop.f32.mrf.mxu0
        %1917 = vdwg.mxu0
        %v1918 = vmul.f32 %v1840, 0.5
        %v1919 = vmul.f32 %v1845, 0.5
        %v1920 = vmul.f32 %v1850, 0.5
        %v1921 = vmul.f32 %v1855, 0.5
        %v1922 = vmul.f32 %v1860, 0.5
        %v1923 = vmul.f32 %v1865, 0.5
        %v1924 = vmul.f32 %v1870, 0.5
        %v1925 = vmul.f32 %v1875, 0.5
        %v1926 = vmul.f32 %v1880, 0.5
        %v1927 = vmul.f32 %v1885, 0.5
        %v1928 = vmul.f32 %v1890, 0.5
        %v1929 = vmul.f32 %v1895, 0.5
        %v1930 = vmul.f32 %v1900, 0.5
        %v1931 = vmul.f32 %v1905, 0.5
        %v1932 = vmul.f32 %v1910, 0.5
        %v1933 = vmul.f32 %v1915, 0.5
        %v1934 = vmin.f32 %v1918, 14.0
        %v1935 = vmin.f32 %v1919, 14.0
        %v1936 = vmin.f32 %v1920, 14.0
        %v1937 = vmin.f32 %v1921, 14.0
        %v1938 = vmin.f32 %v1922, 14.0
        %v1939 = vmin.f32 %v1923, 14.0
        %v1940 = vmin.f32 %v1924, 14.0
        %v1941 = vmin.f32 %v1925, 14.0
        %v1942 = vmin.f32 %v1926, 14.0
        %v1943 = vmin.f32 %v1927, 14.0
        %v1944 = vmin.f32 %v1928, 14.0
        %v1945 = vmin.f32 %v1929, 14.0
        %v1946 = vmin.f32 %v1930, 14.0
        %v1947 = vmin.f32 %v1931, 14.0
        %v1948 = vmin.f32 %v1932, 14.0
        %v1949 = vmin.f32 %v1933, 14.0
        %vm1950 = vcmp.gt.f32.partialorder %v1918, 14.0
        %vm1951 = vcmp.gt.f32.partialorder %v1919, 14.0
        %vm1952 = vcmp.gt.f32.partialorder %v1920, 14.0
        %vm1953 = vcmp.gt.f32.partialorder %v1921, 14.0
        %vm1954 = vcmp.gt.f32.partialorder %v1922, 14.0
        %vm1955 = vcmp.gt.f32.partialorder %v1923, 14.0
        %vm1956 = vcmp.gt.f32.partialorder %v1924, 14.0
        %vm1957 = vcmp.gt.f32.partialorder %v1925, 14.0
        %vm1958 = vcmp.gt.f32.partialorder %v1926, 14.0
        %vm1959 = vcmp.gt.f32.partialorder %v1927, 14.0
        %vm1960 = vcmp.gt.f32.partialorder %v1928, 14.0
        %vm1961 = vcmp.gt.f32.partialorder %v1929, 14.0
        %vm1962 = vcmp.gt.f32.partialorder %v1930, 14.0
        %vm1963 = vcmp.gt.f32.partialorder %v1931, 14.0
        %vm1964 = vcmp.gt.f32.partialorder %v1932, 14.0
        %vm1965 = vcmp.gt.f32.partialorder %v1933, 14.0
        %v1966 = vmul.f32 %v1934, 1.442695
        %v1967 = vpow.pop %v1966
        %v1968 = vmul.f32 %v1935, 1.442695
        %v1969 = vpow.pop %v1968
        %v1970 = vmul.f32 %v1936, 1.442695
        %v1971 = vpow.pop %v1970
        %v1972 = vmul.f32 %v1937, 1.442695
        %v1973 = vpow.pop %v1972
        %v1974 = vmul.f32 %v1938, 1.442695
        %v1975 = vpow.pop %v1974
        %v1976 = vmul.f32 %v1939, 1.442695
        %v1977 = vpow.pop %v1976
        %v1978 = vmul.f32 %v1940, 1.442695
        %v1979 = vpow.pop %v1978
        %v1980 = vmul.f32 %v1941, 1.442695
        %v1981 = vpow.pop %v1980
        %v1982 = vmul.f32 %v1942, 1.442695
        %v1983 = vpow.pop %v1982
        %v1984 = vmul.f32 %v1943, 1.442695
        %v1985 = vpow.pop %v1984
        %v1986 = vmul.f32 %v1944, 1.442695
        %v1987 = vpow.pop %v1986
        %v1988 = vmul.f32 %v1945, 1.442695
        %v1989 = vpow.pop %v1988
        %v1990 = vmul.f32 %v1946, 1.442695
        %v1991 = vpow.pop %v1990
        %v1992 = vmul.f32 %v1947, 1.442695
        %v1993 = vpow.pop %v1992
        %v1994 = vmul.f32 %v1948, 1.442695
        %v1995 = vpow.pop %v1994
        %v1996 = vmul.f32 %v1949, 1.442695
        %v1997 = vpow.pop %v1996
        %v1998 = vadd.f32 %v1967, 1.0
        %v1999 = vlog2.pop %v1998
        %v2000 = vmul.f32 %v1999, 0.6931472
        %v2001 = vmul.f32 -0.5, %v1967
        %v2002 = vadd.f32 %v2001, 1.0
        %v2003 = vmul.f32 %v2002, %v1967
        %v2004 = vand.u32 2147483647, %v1967
        %vm2005 = vcmp.lt.f32.partialorder %v2004, 0.0004427343
        %v2006 = vsel %vm2005, %v2003, %v2000
        %v2007 = vadd.f32 %v1969, 1.0
        %v2008 = vlog2.pop %v2007
        %v2009 = vmul.f32 %v2008, 0.6931472
        %v2010 = vmul.f32 -0.5, %v1969
        %v2011 = vadd.f32 %v2010, 1.0
        %v2012 = vmul.f32 %v2011, %v1969
        %v2013 = vand.u32 2147483647, %v1969
        %vm2014 = vcmp.lt.f32.partialorder %v2013, 0.0004427343
        %v2015 = vsel %vm2014, %v2012, %v2009
        %v2016 = vadd.f32 %v1971, 1.0
        %v2017 = vlog2.pop %v2016
        %v2018 = vmul.f32 %v2017, 0.6931472
        %v2019 = vmul.f32 -0.5, %v1971
        %v2020 = vadd.f32 %v2019, 1.0
        %v2021 = vmul.f32 %v2020, %v1971
        %v2022 = vand.u32 2147483647, %v1971
        %vm2023 = vcmp.lt.f32.partialorder %v2022, 0.0004427343
        %v2024 = vsel %vm2023, %v2021, %v2018
        %v2025 = vadd.f32 %v1973, 1.0
        %v2026 = vlog2.pop %v2025
        %v2027 = vmul.f32 %v2026, 0.6931472
        %v2028 = vmul.f32 -0.5, %v1973
        %v2029 = vadd.f32 %v2028, 1.0
        %v2030 = vmul.f32 %v2029, %v1973
        %v2031 = vand.u32 2147483647, %v1973
        %vm2032 = vcmp.lt.f32.partialorder %v2031, 0.0004427343
        %v2033 = vsel %vm2032, %v2030, %v2027
        %v2034 = vadd.f32 %v1975, 1.0
        %v2035 = vlog2.pop %v2034
        %v2036 = vmul.f32 %v2035, 0.6931472
        %v2037 = vmul.f32 -0.5, %v1975
        %v2038 = vadd.f32 %v2037, 1.0
        %v2039 = vmul.f32 %v2038, %v1975
        %v2040 = vand.u32 2147483647, %v1975
        %vm2041 = vcmp.lt.f32.partialorder %v2040, 0.0004427343
        %v2042 = vsel %vm2041, %v2039, %v2036
        %v2043 = vadd.f32 %v1977, 1.0
        %v2044 = vlog2.pop %v2043
        %v2045 = vmul.f32 %v2044, 0.6931472
        %v2046 = vmul.f32 -0.5, %v1977
        %v2047 = vadd.f32 %v2046, 1.0
        %v2048 = vmul.f32 %v2047, %v1977
        %v2049 = vand.u32 2147483647, %v1977
        %vm2050 = vcmp.lt.f32.partialorder %v2049, 0.0004427343
        %v2051 = vsel %vm2050, %v2048, %v2045
        %v2052 = vadd.f32 %v1979, 1.0
        %v2053 = vlog2.pop %v2052
        %v2054 = vmul.f32 %v2053, 0.6931472
        %v2055 = vmul.f32 -0.5, %v1979
        %v2056 = vadd.f32 %v2055, 1.0
        %v2057 = vmul.f32 %v2056, %v1979
        %v2058 = vand.u32 2147483647, %v1979
        %vm2059 = vcmp.lt.f32.partialorder %v2058, 0.0004427343
        %v2060 = vsel %vm2059, %v2057, %v2054
        %v2061 = vadd.f32 %v1981, 1.0
        %v2062 = vlog2.pop %v2061
        %v2063 = vmul.f32 %v2062, 0.6931472
        %v2064 = vmul.f32 -0.5, %v1981
        %v2065 = vadd.f32 %v2064, 1.0
        %v2066 = vmul.f32 %v2065, %v1981
        %v2067 = vand.u32 2147483647, %v1981
        %vm2068 = vcmp.lt.f32.partialorder %v2067, 0.0004427343
        %v2069 = vsel %vm2068, %v2066, %v2063
        %v2070 = vadd.f32 %v1983, 1.0
        %v2071 = vlog2.pop %v2070
        %v2072 = vmul.f32 %v2071, 0.6931472
        %v2073 = vmul.f32 -0.5, %v1983
        %v2074 = vadd.f32 %v2073, 1.0
        %v2075 = vmul.f32 %v2074, %v1983
        %v2076 = vand.u32 2147483647, %v1983
        %vm2077 = vcmp.lt.f32.partialorder %v2076, 0.0004427343
        %v2078 = vsel %vm2077, %v2075, %v2072
        %v2079 = vadd.f32 %v1985, 1.0
        %v2080 = vlog2.pop %v2079
        %v2081 = vmul.f32 %v2080, 0.6931472
        %v2082 = vmul.f32 -0.5, %v1985
        %v2083 = vadd.f32 %v2082, 1.0
        %v2084 = vmul.f32 %v2083, %v1985
        %v2085 = vand.u32 2147483647, %v1985
        %vm2086 = vcmp.lt.f32.partialorder %v2085, 0.0004427343
        %v2087 = vsel %vm2086, %v2084, %v2081
        %v2088 = vadd.f32 %v1987, 1.0
        %v2089 = vlog2.pop %v2088
        %v2090 = vmul.f32 %v2089, 0.6931472
        %v2091 = vmul.f32 -0.5, %v1987
        %v2092 = vadd.f32 %v2091, 1.0
        %v2093 = vmul.f32 %v2092, %v1987
        %v2094 = vand.u32 2147483647, %v1987
        %vm2095 = vcmp.lt.f32.partialorder %v2094, 0.0004427343
        %v2096 = vsel %vm2095, %v2093, %v2090
        %v2097 = vadd.f32 %v1989, 1.0
        %v2098 = vlog2.pop %v2097
        %v2099 = vmul.f32 %v2098, 0.6931472
        %v2100 = vmul.f32 -0.5, %v1989
        %v2101 = vadd.f32 %v2100, 1.0
        %v2102 = vmul.f32 %v2101, %v1989
        %v2103 = vand.u32 2147483647, %v1989
        %vm2104 = vcmp.lt.f32.partialorder %v2103, 0.0004427343
        %v2105 = vsel %vm2104, %v2102, %v2099
        %v2106 = vadd.f32 %v1991, 1.0
        %v2107 = vlog2.pop %v2106
        %v2108 = vmul.f32 %v2107, 0.6931472
        %v2109 = vmul.f32 -0.5, %v1991
        %v2110 = vadd.f32 %v2109, 1.0
        %v2111 = vmul.f32 %v2110, %v1991
        %v2112 = vand.u32 2147483647, %v1991
        %vm2113 = vcmp.lt.f32.partialorder %v2112, 0.0004427343
        %v2114 = vsel %vm2113, %v2111, %v2108
        %v2115 = vadd.f32 %v1993, 1.0
        %v2116 = vlog2.pop %v2115
        %v2117 = vmul.f32 %v2116, 0.6931472
        %v2118 = vmul.f32 -0.5, %v1993
        %v2119 = vadd.f32 %v2118, 1.0
        %v2120 = vmul.f32 %v2119, %v1993
        %v2121 = vand.u32 2147483647, %v1993
        %vm2122 = vcmp.lt.f32.partialorder %v2121, 0.0004427343
        %v2123 = vsel %vm2122, %v2120, %v2117
        %v2124 = vadd.f32 %v1995, 1.0
        %v2125 = vlog2.pop %v2124
        %v2126 = vmul.f32 %v2125, 0.6931472
        %v2127 = vmul.f32 -0.5, %v1995
        %v2128 = vadd.f32 %v2127, 1.0
        %v2129 = vmul.f32 %v2128, %v1995
        %v2130 = vand.u32 2147483647, %v1995
        %vm2131 = vcmp.lt.f32.partialorder %v2130, 0.0004427343
        %v2132 = vsel %vm2131, %v2129, %v2126
        %v2133 = vadd.f32 %v1997, 1.0
        %v2134 = vlog2.pop %v2133
        %v2135 = vmul.f32 %v2134, 0.6931472
        %v2136 = vmul.f32 -0.5, %v1997
        %v2137 = vadd.f32 %v2136, 1.0
        %v2138 = vmul.f32 %v2137, %v1997
        %v2139 = vand.u32 2147483647, %v1997
        %vm2140 = vcmp.lt.f32.partialorder %v2139, 0.0004427343
        %v2141 = vsel %vm2140, %v2138, %v2135
        %v2142 = vmul.f32 %v2006, 2.0
        %v2143 = vmul.f32 %v2015, 2.0
        %v2144 = vmul.f32 %v2024, 2.0
        %v2145 = vmul.f32 %v2033, 2.0
        %v2146 = vmul.f32 %v2042, 2.0
        %v2147 = vmul.f32 %v2051, 2.0
        %v2148 = vmul.f32 %v2060, 2.0
        %v2149 = vmul.f32 %v2069, 2.0
        %v2150 = vmul.f32 %v2078, 2.0
        %v2151 = vmul.f32 %v2087, 2.0
        %v2152 = vmul.f32 %v2096, 2.0
        %v2153 = vmul.f32 %v2105, 2.0
        %v2154 = vmul.f32 %v2114, 2.0
        %v2155 = vmul.f32 %v2123, 2.0
        %v2156 = vmul.f32 %v2132, 2.0
        %v2157 = vmul.f32 %v2141, 2.0
        %v2158 = vsel %vm1950, %v1840, %v2142
        %v2159 = vsel %vm1951, %v1845, %v2143
        %v2160 = vsel %vm1952, %v1850, %v2144
        %v2161 = vsel %vm1953, %v1855, %v2145
        %v2162 = vsel %vm1954, %v1860, %v2146
        %v2163 = vsel %vm1955, %v1865, %v2147
        %v2164 = vsel %vm1956, %v1870, %v2148
        %v2165 = vsel %vm1957, %v1875, %v2149
        %v2166 = vsel %vm1958, %v1880, %v2150
        %v2167 = vsel %vm1959, %v1885, %v2151
        %v2168 = vsel %vm1960, %v1890, %v2152
        %v2169 = vsel %vm1961, %v1895, %v2153
        %v2170 = vsel %vm1962, %v1900, %v2154
        %v2171 = vsel %vm1963, %v1905, %v2155
        %v2172 = vsel %vm1964, %v1910, %v2156
        %v2173 = vsel %vm1965, %v1915, %v2157
        %s2174 = scalar_lea.vmem [#allocation2], 512
        %v2175 = vld [vmem:[%s2174] sm:$0xff]
        %v2176 = vld [vmem:[%s2174 + $0x8] sm:$0xff]
        %v2177 = vld [vmem:[%s2174 + $0x10] sm:$0xff]
        %v2178 = vld [vmem:[%s2174 + $0x18] sm:$0xff]
        %v2179 = vld [vmem:[%s2174 + $0x20] sm:$0xff]
        %v2180 = vld [vmem:[%s2174 + $0x28] sm:$0xff]
        %v2181 = vld [vmem:[%s2174 + $0x30] sm:$0xff]
        %v2182 = vld [vmem:[%s2174 + $0x38] sm:$0xff]
        %v2183 = vld [vmem:[%s2174 + $0x40] sm:$0xff]
        %v2184 = vld [vmem:[%s2174 + $0x48] sm:$0xff]
        %v2185 = vld [vmem:[%s2174 + $0x50] sm:$0xff]
        %v2186 = vld [vmem:[%s2174 + $0x58] sm:$0xff]
        %v2187 = vld [vmem:[%s2174 + $0x60] sm:$0xff]
        %v2188 = vld [vmem:[%s2174 + $0x68] sm:$0xff]
        %v2189 = vld [vmem:[%s2174 + $0x70] sm:$0xff]
        %v2190 = vld [vmem:[%s2174 + $0x78] sm:$0xff]
        %v2191 = vld [vmem:[%s3 + $0x4] sm:$0x1]
        %v2192 = vlaneseq
        %v2193 = vshrl.u32 %v2192, 7
        %v2194 = vsub.s32 0, %v2193
        %v2195 = vrot.slane %v2191, %v2194
        %2196 = vmatprep.subr.mxu0 0.0
        %2197 = vmatpush1.msra.mxu0 %v2190
        %2198 = vmatprep.subr.mxu0 0.0
        %2199 = vmatpush1.msra.mxu0 %v2189
        %2200 = vmatprep.subr.mxu0 0.0
        %2201 = vmatpush1.msra.mxu0 %v2188
        %2202 = vmatprep.subr.mxu0 0.0
        %2203 = vmatpush1.msra.mxu0 %v2187
        %2204 = vmatprep.subr.mxu0 0.0
        %2205 = vmatpush1.msra.mxu0 %v2186
        %2206 = vmatprep.subr.mxu0 0.0
        %2207 = vmatpush1.msra.mxu0 %v2185
        %2208 = vmatprep.subr.mxu0 0.0
        %2209 = vmatpush1.msra.mxu0 %v2184
        %2210 = vmatprep.subr.mxu0 0.0
        %2211 = vmatpush1.msra.mxu0 %v2183
        %2212 = vmatprep.subr.mxu0 0.0
        %2213 = vmatpush1.msra.mxu0 %v2182
        %2214 = vmatprep.subr.mxu0 0.0
        %2215 = vmatpush1.msra.mxu0 %v2181
        %2216 = vmatprep.subr.mxu0 0.0
        %2217 = vmatpush1.msra.mxu0 %v2180
        %2218 = vmatprep.subr.mxu0 0.0
        %2219 = vmatpush1.msra.mxu0 %v2179
        %2220 = vmatprep.subr.mxu0 0.0
        %2221 = vmatpush1.msra.mxu0 %v2178
        %2222 = vmatprep.subr.mxu0 0.0
        %2223 = vmatpush1.msra.mxu0 %v2177
        %2224 = vmatprep.subr.mxu0 0.0
        %2225 = vmatpush1.msra.mxu0 %v2176
        %2226 = vmatprep.subr.mxu0 0.0
        %2227 = vmatpush1.msra.mxu0 %v2175
        %2228 = vmatprep.subr.mxu0 0.0
        %2229 = vmatpush2.msra.mxu0 0.0
        %2230 = vmatprep.subr.mxu0 0.0
        %2231 = vmatpush2.msra.mxu0 0.0
        %2232 = vmatprep.subr.mxu0 0.0
        %2233 = vmatpush2.msra.mxu0 0.0
        %2234 = vmatprep.subr.mxu0 0.0
        %2235 = vmatpush2.msra.mxu0 0.0
        %2236 = vmatprep.subr.mxu0 0.0
        %2237 = vmatpush2.msra.mxu0 0.0
        %2238 = vmatprep.subr.mxu0 0.0
        %2239 = vmatpush2.msra.mxu0 0.0
        %2240 = vmatprep.subr.mxu0 0.0
        %2241 = vmatpush2.msra.mxu0 0.0
        %2242 = vmatprep.subr.mxu0 0.0
        %2243 = vmatpush2.msra.mxu0 0.0
        %2244 = vmatprep.subr.mxu0 0.0
        %2245 = vmatpush2.msra.mxu0 0.0
        %2246 = vmatprep.subr.mxu0 0.0
        %2247 = vmatpush2.msra.mxu0 0.0
        %2248 = vmatprep.subr.mxu0 0.0
        %2249 = vmatpush2.msra.mxu0 0.0
        %2250 = vmatprep.subr.mxu0 0.0
        %2251 = vmatpush2.msra.mxu0 0.0
        %2252 = vmatprep.subr.mxu0 0.0
        %2253 = vmatpush2.msra.mxu0 0.0
        %2254 = vmatprep.subr.mxu0 0.0
        %2255 = vmatpush2.msra.mxu0 0.0
        %2256 = vmatprep.subr.mxu0 0.0
        %2257 = vmatpush2.msra.mxu0 0.0
        %2258 = vmatprep.subr.mxu0 0.0
        %2259 = vmatpush2.msra.mxu0 0.0
        %2260 = vmatprep.mubr.f32.mxu0 0.0
        %2261 = vmatmul.mubr.f32.gmra.mxu0 %v2158
        %v2262 = vpop.f32.mrf.mxu0
        %v2263 = vadd.f32 %v2195, %v2262
        %v2264 = vpop.f32.mrf.mxu0
        %2265 = vmatprep.mubr.f32.mxu0 0.0
        %2266 = vmatmul.mubr.f32.gmra.mxu0 %v2159
        %v2267 = vpop.f32.mrf.mxu0
        %v2268 = vadd.f32 %v2195, %v2267
        %v2269 = vpop.f32.mrf.mxu0
        %2270 = vmatprep.mubr.f32.mxu0 0.0
        %2271 = vmatmul.mubr.f32.gmra.mxu0 %v2160
        %v2272 = vpop.f32.mrf.mxu0
        %v2273 = vadd.f32 %v2195, %v2272
        %v2274 = vpop.f32.mrf.mxu0
        %2275 = vmatprep.mubr.f32.mxu0 0.0
        %2276 = vmatmul.mubr.f32.gmra.mxu0 %v2161
        %v2277 = vpop.f32.mrf.mxu0
        %v2278 = vadd.f32 %v2195, %v2277
        %v2279 = vpop.f32.mrf.mxu0
        %2280 = vmatprep.mubr.f32.mxu0 0.0
        %2281 = vmatmul.mubr.f32.gmra.mxu0 %v2162
        %v2282 = vpop.f32.mrf.mxu0
        %v2283 = vadd.f32 %v2195, %v2282
        %v2284 = vpop.f32.mrf.mxu0
        %2285 = vmatprep.mubr.f32.mxu0 0.0
        %2286 = vmatmul.mubr.f32.gmra.mxu0 %v2163
        %v2287 = vpop.f32.mrf.mxu0
        %v2288 = vadd.f32 %v2195, %v2287
        %v2289 = vpop.f32.mrf.mxu0
        %2290 = vmatprep.mubr.f32.mxu0 0.0
        %2291 = vmatmul.mubr.f32.gmra.mxu0 %v2164
        %v2292 = vpop.f32.mrf.mxu0
        %v2293 = vadd.f32 %v2195, %v2292
        %v2294 = vpop.f32.mrf.mxu0
        %2295 = vmatprep.mubr.f32.mxu0 0.0
        %2296 = vmatmul.mubr.f32.gmra.mxu0 %v2165
        %v2297 = vpop.f32.mrf.mxu0
        %v2298 = vadd.f32 %v2195, %v2297
        %v2299 = vpop.f32.mrf.mxu0
        %2300 = vmatprep.mubr.f32.mxu0 0.0
        %2301 = vmatmul.mubr.f32.gmra.mxu0 %v2166
        %v2302 = vpop.f32.mrf.mxu0
        %v2303 = vadd.f32 %v2195, %v2302
        %v2304 = vpop.f32.mrf.mxu0
        %2305 = vmatprep.mubr.f32.mxu0 0.0
        %2306 = vmatmul.mubr.f32.gmra.mxu0 %v2167
        %v2307 = vpop.f32.mrf.mxu0
        %v2308 = vadd.f32 %v2195, %v2307
        %v2309 = vpop.f32.mrf.mxu0
        %2310 = vmatprep.mubr.f32.mxu0 0.0
        %2311 = vmatmul.mubr.f32.gmra.mxu0 %v2168
        %v2312 = vpop.f32.mrf.mxu0
        %v2313 = vadd.f32 %v2195, %v2312
        %v2314 = vpop.f32.mrf.mxu0
        %2315 = vmatprep.mubr.f32.mxu0 0.0
        %2316 = vmatmul.mubr.f32.gmra.mxu0 %v2169
        %v2317 = vpop.f32.mrf.mxu0
        %v2318 = vadd.f32 %v2195, %v2317
        %v2319 = vpop.f32.mrf.mxu0
        %2320 = vmatprep.mubr.f32.mxu0 0.0
        %2321 = vmatmul.mubr.f32.gmra.mxu0 %v2170
        %v2322 = vpop.f32.mrf.mxu0
        %v2323 = vadd.f32 %v2195, %v2322
        %v2324 = vpop.f32.mrf.mxu0
        %2325 = vmatprep.mubr.f32.mxu0 0.0
        %2326 = vmatmul.mubr.f32.gmra.mxu0 %v2171
        %v2327 = vpop.f32.mrf.mxu0
        %v2328 = vadd.f32 %v2195, %v2327
        %v2329 = vpop.f32.mrf.mxu0
        %2330 = vmatprep.mubr.f32.mxu0 0.0
        %2331 = vmatmul.mubr.f32.gmra.mxu0 %v2172
        %v2332 = vpop.f32.mrf.mxu0
        %v2333 = vadd.f32 %v2195, %v2332
        %v2334 = vpop.f32.mrf.mxu0
        %2335 = vmatprep.mubr.f32.mxu0 0.0
        %2336 = vmatmul.mubr.f32.gmra.mxu0 %v2173
        %v2337 = vpop.f32.mrf.mxu0
        %v2338 = vadd.f32 %v2195, %v2337
        %v2339 = vpop.f32.mrf.mxu0
        %2340 = vdwg.mxu0
        %s2341 = scalar_lea.vmem [#allocation2], 896
        %v2342 = vld [vmem:[%s2341] sm:$0xff]
        %v2343 = vld [vmem:[%s2341 + $0x8] sm:$0xff]
        %v2344 = vld [vmem:[%s2341 + $0x10] sm:$0xff]
        %v2345 = vld [vmem:[%s2341 + $0x18] sm:$0xff]
        %v2346 = vld [vmem:[%s2341 + $0x20] sm:$0xff]
        %v2347 = vld [vmem:[%s2341 + $0x28] sm:$0xff]
        %v2348 = vld [vmem:[%s2341 + $0x30] sm:$0xff]
        %v2349 = vld [vmem:[%s2341 + $0x38] sm:$0xff]
        %v2350 = vld [vmem:[%s2341 + $0x40] sm:$0xff]
        %v2351 = vld [vmem:[%s2341 + $0x48] sm:$0xff]
        %v2352 = vld [vmem:[%s2341 + $0x50] sm:$0xff]
        %v2353 = vld [vmem:[%s2341 + $0x58] sm:$0xff]
        %v2354 = vld [vmem:[%s2341 + $0x60] sm:$0xff]
        %v2355 = vld [vmem:[%s2341 + $0x68] sm:$0xff]
        %v2356 = vld [vmem:[%s2341 + $0x70] sm:$0xff]
        %v2357 = vld [vmem:[%s2341 + $0x78] sm:$0xff]
        %2358 = vmatprep.subr.mxu0 0.0
        %2359 = vmatpush1.msra.mxu0 %v2357
        %2360 = vmatprep.subr.mxu0 0.0
        %2361 = vmatpush1.msra.mxu0 %v2356
        %2362 = vmatprep.subr.mxu0 0.0
        %2363 = vmatpush1.msra.mxu0 %v2355
        %2364 = vmatprep.subr.mxu0 0.0
        %2365 = vmatpush1.msra.mxu0 %v2354
        %2366 = vmatprep.subr.mxu0 0.0
        %2367 = vmatpush1.msra.mxu0 %v2353
        %2368 = vmatprep.subr.mxu0 0.0
        %2369 = vmatpush1.msra.mxu0 %v2352
        %2370 = vmatprep.subr.mxu0 0.0
        %2371 = vmatpush1.msra.mxu0 %v2351
        %2372 = vmatprep.subr.mxu0 0.0
        %2373 = vmatpush1.msra.mxu0 %v2350
        %2374 = vmatprep.subr.mxu0 0.0
        %2375 = vmatpush1.msra.mxu0 %v2349
        %2376 = vmatprep.subr.mxu0 0.0
        %2377 = vmatpush1.msra.mxu0 %v2348
        %2378 = vmatprep.subr.mxu0 0.0
        %2379 = vmatpush1.msra.mxu0 %v2347
        %2380 = vmatprep.subr.mxu0 0.0
        %2381 = vmatpush1.msra.mxu0 %v2346
        %2382 = vmatprep.subr.mxu0 0.0
        %2383 = vmatpush1.msra.mxu0 %v2345
        %2384 = vmatprep.subr.mxu0 0.0
        %2385 = vmatpush1.msra.mxu0 %v2344
        %2386 = vmatprep.subr.mxu0 0.0
        %2387 = vmatpush1.msra.mxu0 %v2343
        %2388 = vmatprep.subr.mxu0 0.0
        %2389 = vmatpush1.msra.mxu0 %v2342
        %2390 = vmatprep.subr.mxu0 0.0
        %2391 = vmatpush2.msra.mxu0 0.0
        %2392 = vmatprep.subr.mxu0 0.0
        %2393 = vmatpush2.msra.mxu0 0.0
        %2394 = vmatprep.subr.mxu0 0.0
        %2395 = vmatpush2.msra.mxu0 0.0
        %2396 = vmatprep.subr.mxu0 0.0
        %2397 = vmatpush2.msra.mxu0 0.0
        %2398 = vmatprep.subr.mxu0 0.0
        %2399 = vmatpush2.msra.mxu0 0.0
        %2400 = vmatprep.subr.mxu0 0.0
        %2401 = vmatpush2.msra.mxu0 0.0
        %2402 = vmatprep.subr.mxu0 0.0
        %2403 = vmatpush2.msra.mxu0 0.0
        %2404 = vmatprep.subr.mxu0 0.0
        %2405 = vmatpush2.msra.mxu0 0.0
        %2406 = vmatprep.subr.mxu0 0.0
        %2407 = vmatpush2.msra.mxu0 0.0
        %2408 = vmatprep.subr.mxu0 0.0
        %2409 = vmatpush2.msra.mxu0 0.0
        %2410 = vmatprep.subr.mxu0 0.0
        %2411 = vmatpush2.msra.mxu0 0.0
        %2412 = vmatprep.subr.mxu0 0.0
        %2413 = vmatpush2.msra.mxu0 0.0
        %2414 = vmatprep.subr.mxu0 0.0
        %2415 = vmatpush2.msra.mxu0 0.0
        %2416 = vmatprep.subr.mxu0 0.0
        %2417 = vmatpush2.msra.mxu0 0.0
        %2418 = vmatprep.subr.mxu0 0.0
        %2419 = vmatpush2.msra.mxu0 0.0
        %2420 = vmatprep.subr.mxu0 0.0
        %2421 = vmatpush2.msra.mxu0 0.0
        %2422 = vmatprep.mubr.f32.mxu0 0.0
        %2423 = vmatmul.mubr.f32.gmra.mxu0 %v1749
        %v2424 = vpop.f32.mrf.mxu0
        %v2425 = vadd.f32 0.0, %v2424
        %v2426 = vpop.f32.mrf.mxu0
        %2427 = vmatprep.mubr.f32.mxu0 0.0
        %2428 = vmatmul.mubr.f32.gmra.mxu0 %v1750
        %v2429 = vpop.f32.mrf.mxu0
        %v2430 = vadd.f32 0.0, %v2429
        %v2431 = vpop.f32.mrf.mxu0
        %2432 = vdwg.mxu0
        %v2435 = vcombine.high %v2425, %v2425
        %v2437 = vunpack.c.l.s4 1966171168
        %v2438 = vunpack.c.0.s8 %v2437
        %v2439 = vlaneseq
        %v2440 = vshrl.u32 %v2439, 7
        %v2441 = vsub.s32 %v2438, %v2440
        %v2442 = vrot.slane %v2425, %v2441
        %v2444 = vunpack.c.l.s4 1966171168
        %v2445 = vunpack.c.0.s8 %v2444
        %v2446 = vlaneseq
        %v2447 = vshrl.u32 %v2446, 7
        %v2448 = vsub.s32 %v2445, %v2447
        %v2449 = vrot.slane %v2435, %v2448
        %v2450 = vcombine.high %v2442, %v2442
        %v2451 = vcombine.high %v2449, %v2449
        %v2453 = vunpack.c.l.s4 1966171168
        %v2454 = vunpack.c.0.s8 %v2453
        %v2455 = vlaneseq
        %v2456 = vshrl.u32 %v2455, 7
        %v2457 = vsub.s32 %v2454, %v2456
        %v2458 = vrot.slane %v2442, %v2457
        %v2460 = vunpack.c.l.s4 1966171168
        %v2461 = vunpack.c.0.s8 %v2460
        %v2462 = vlaneseq
        %v2463 = vshrl.u32 %v2462, 7
        %v2464 = vsub.s32 %v2461, %v2463
        %v2465 = vrot.slane %v2449, %v2464
        %v2467 = vunpack.c.l.s4 1966171168
        %v2468 = vunpack.c.0.s8 %v2467
        %v2469 = vlaneseq
        %v2470 = vshrl.u32 %v2469, 7
        %v2471 = vsub.s32 %v2468, %v2470
        %v2472 = vrot.slane %v2450, %v2471
        %v2474 = vunpack.c.l.s4 1966171168
        %v2475 = vunpack.c.0.s8 %v2474
        %v2476 = vlaneseq
        %v2477 = vshrl.u32 %v2476, 7
        %v2478 = vsub.s32 %v2475, %v2477
        %v2479 = vrot.slane %v2451, %v2478
        %v2480 = vcombine.high %v2458, %v2458
        %v2481 = vcombine.high %v2465, %v2465
        %v2482 = vcombine.high %v2472, %v2472
        %v2483 = vcombine.high %v2479, %v2479
        %v2484 = vcombine.high %v2430, %v2430
        %v2486 = vunpack.c.l.s4 1966171168
        %v2487 = vunpack.c.0.s8 %v2486
        %v2488 = vlaneseq
        %v2489 = vshrl.u32 %v2488, 7
        %v2490 = vsub.s32 %v2487, %v2489
        %v2491 = vrot.slane %v2430, %v2490
        %v2493 = vunpack.c.l.s4 1966171168
        %v2494 = vunpack.c.0.s8 %v2493
        %v2495 = vlaneseq
        %v2496 = vshrl.u32 %v2495, 7
        %v2497 = vsub.s32 %v2494, %v2496
        %v2498 = vrot.slane %v2484, %v2497
        %v2499 = vcombine.high %v2491, %v2491
        %v2500 = vcombine.high %v2498, %v2498
        %v2502 = vunpack.c.l.s4 1966171168
        %v2503 = vunpack.c.0.s8 %v2502
        %v2504 = vlaneseq
        %v2505 = vshrl.u32 %v2504, 7
        %v2506 = vsub.s32 %v2503, %v2505
        %v2507 = vrot.slane %v2491, %v2506
        %v2509 = vunpack.c.l.s4 1966171168
        %v2510 = vunpack.c.0.s8 %v2509
        %v2511 = vlaneseq
        %v2512 = vshrl.u32 %v2511, 7
        %v2513 = vsub.s32 %v2510, %v2512
        %v2514 = vrot.slane %v2498, %v2513
        %v2516 = vunpack.c.l.s4 1966171168
        %v2517 = vunpack.c.0.s8 %v2516
        %v2518 = vlaneseq
        %v2519 = vshrl.u32 %v2518, 7
        %v2520 = vsub.s32 %v2517, %v2519
        %v2521 = vrot.slane %v2499, %v2520
        %v2523 = vunpack.c.l.s4 1966171168
        %v2524 = vunpack.c.0.s8 %v2523
        %v2525 = vlaneseq
        %v2526 = vshrl.u32 %v2525, 7
        %v2527 = vsub.s32 %v2524, %v2526
        %v2528 = vrot.slane %v2500, %v2527
        %v2529 = vcombine.high %v2507, %v2507
        %v2530 = vcombine.high %v2514, %v2514
        %v2531 = vcombine.high %v2521, %v2521
        %v2532 = vcombine.high %v2528, %v2528
        %v2533 = vlaneseq
        %v2534 = vshrl.u32 %v2533, 7
        %v2535 = vsub.s32 0, %v2534
        %v2536 = vrot.slane %v2458, %v2535
        %v2537 = vlaneseq
        %v2538 = vshrl.u32 %v2537, 7
        %v2539 = vsub.s32 0, %v2538
        %v2540 = vrot.slane %v2472, %v2539
        %v2541 = vlaneseq
        %v2542 = vshrl.u32 %v2541, 7
        %v2543 = vsub.s32 0, %v2542
        %v2544 = vrot.slane %v2480, %v2543
        %v2545 = vlaneseq
        %v2546 = vshrl.u32 %v2545, 7
        %v2547 = vsub.s32 0, %v2546
        %v2548 = vrot.slane %v2482, %v2547
        %v2549 = vlaneseq
        %v2550 = vshrl.u32 %v2549, 7
        %v2551 = vsub.s32 0, %v2550
        %v2552 = vrot.slane %v2465, %v2551
        %v2553 = vlaneseq
        %v2554 = vshrl.u32 %v2553, 7
        %v2555 = vsub.s32 0, %v2554
        %v2556 = vrot.slane %v2479, %v2555
        %v2557 = vlaneseq
        %v2558 = vshrl.u32 %v2557, 7
        %v2559 = vsub.s32 0, %v2558
        %v2560 = vrot.slane %v2481, %v2559
        %v2561 = vlaneseq
        %v2562 = vshrl.u32 %v2561, 7
        %v2563 = vsub.s32 0, %v2562
        %v2564 = vrot.slane %v2483, %v2563
        %v2565 = vlaneseq
        %v2566 = vshrl.u32 %v2565, 7
        %v2567 = vsub.s32 0, %v2566
        %v2568 = vrot.slane %v2507, %v2567
        %v2569 = vlaneseq
        %v2570 = vshrl.u32 %v2569, 7
        %v2571 = vsub.s32 0, %v2570
        %v2572 = vrot.slane %v2521, %v2571
        %v2573 = vlaneseq
        %v2574 = vshrl.u32 %v2573, 7
        %v2575 = vsub.s32 0, %v2574
        %v2576 = vrot.slane %v2529, %v2575
        %v2577 = vlaneseq
        %v2578 = vshrl.u32 %v2577, 7
        %v2579 = vsub.s32 0, %v2578
        %v2580 = vrot.slane %v2531, %v2579
        %v2581 = vlaneseq
        %v2582 = vshrl.u32 %v2581, 7
        %v2583 = vsub.s32 0, %v2582
        %v2584 = vrot.slane %v2514, %v2583
        %v2585 = vlaneseq
        %v2586 = vshrl.u32 %v2585, 7
        %v2587 = vsub.s32 0, %v2586
        %v2588 = vrot.slane %v2528, %v2587
        %v2589 = vlaneseq
        %v2590 = vshrl.u32 %v2589, 7
        %v2591 = vsub.s32 0, %v2590
        %v2592 = vrot.slane %v2530, %v2591
        %v2593 = vlaneseq
        %v2594 = vshrl.u32 %v2593, 7
        %v2595 = vsub.s32 0, %v2594
        %v2596 = vrot.slane %v2532, %v2595
        %v2613 = vmul.f32 %v2263, %v2536
        %v2614 = vmul.f32 %v2268, %v2540
        %v2615 = vmul.f32 %v2273, %v2544
        %v2616 = vmul.f32 %v2278, %v2548
        %v2617 = vmul.f32 %v2283, %v2552
        %v2618 = vmul.f32 %v2288, %v2556
        %v2619 = vmul.f32 %v2293, %v2560
        %v2620 = vmul.f32 %v2298, %v2564
        %v2621 = vmul.f32 %v2303, %v2568
        %v2622 = vmul.f32 %v2308, %v2572
        %v2623 = vmul.f32 %v2313, %v2576
        %v2624 = vmul.f32 %v2318, %v2580
        %v2625 = vmul.f32 %v2323, %v2584
        %v2626 = vmul.f32 %v2328, %v2588
        %v2627 = vmul.f32 %v2333, %v2592
        %v2628 = vmul.f32 %v2338, %v2596
        %v2629 = vadd.f32 %v2613, %v2614
        %v2630 = vadd.f32 %v2629, %v2615
        %v2631 = vadd.f32 %v2630, %v2616
        %v2632 = vadd.f32 %v2631, %v2617
        %v2633 = vadd.f32 %v2632, %v2618
        %v2634 = vadd.f32 %v2633, %v2619
        %v2635 = vadd.f32 %v2634, %v2620
        %v2636 = vadd.f32 %v2621, %v2622
        %v2637 = vadd.f32 %v2636, %v2623
        %v2638 = vadd.f32 %v2637, %v2624
        %v2639 = vadd.f32 %v2638, %v2625
        %v2640 = vadd.f32 %v2639, %v2626
        %v2641 = vadd.f32 %v2640, %v2627
        %v2642 = vadd.f32 %v2641, %v2628
        %v2643 = vld [vmem:[%s3 + $0xd] sm:$0x1]
        %v2644 = vlaneseq
        %v2645 = vshrl.u32 %v2644, 7
        %v2646 = vsub.s32 0, %v2645
        %v2647 = vrot.slane %v2643, %v2646
        %v2648 = vmul.f32 %v2425, %v2647
        %v2649 = vmul.f32 %v2430, %v2647
        %v2650 = vsub.f32 %v2635, %v2648
        %v2651 = vsub.f32 %v2642, %v2649
        %s2652 = scalar_lea.vmem [#allocation2], 1280
        %v2653 = vld [vmem:[%s2652] sm:$0xff]
        %v2654 = vld [vmem:[%s2652 + $0x8] sm:$0xff]
        %v2655 = vld [vmem:[%s2652 + $0x10] sm:$0xff]
        %v2656 = vld [vmem:[%s2652 + $0x18] sm:$0xff]
        %v2657 = vld [vmem:[%s2652 + $0x20] sm:$0xff]
        %v2658 = vld [vmem:[%s2652 + $0x28] sm:$0xff]
        %v2659 = vld [vmem:[%s2652 + $0x30] sm:$0xff]
        %v2660 = vld [vmem:[%s2652 + $0x38] sm:$0xff]
        %v2661 = vld [vmem:[%s2652 + $0x40] sm:$0xff]
        %v2662 = vld [vmem:[%s2652 + $0x48] sm:$0xff]
        %v2663 = vld [vmem:[%s2652 + $0x50] sm:$0xff]
        %v2664 = vld [vmem:[%s2652 + $0x58] sm:$0xff]
        %v2665 = vld [vmem:[%s2652 + $0x60] sm:$0xff]
        %v2666 = vld [vmem:[%s2652 + $0x68] sm:$0xff]
        %v2667 = vld [vmem:[%s2652 + $0x70] sm:$0xff]
        %v2668 = vld [vmem:[%s2652 + $0x78] sm:$0xff]
        %v2669 = vld [vmem:[%s3 + $0x7] sm:$0x1]
        %v2670 = vlaneseq
        %v2671 = vshrl.u32 %v2670, 7
        %v2672 = vsub.s32 0, %v2671
        %v2673 = vrot.slane %v2669, %v2672
        %2674 = vmatprep.subr.mxu0 0.0
        %2675 = vmatpush1.msra.mxu0 %v2668
        %2676 = vmatprep.subr.mxu0 0.0
        %2677 = vmatpush1.msra.mxu0 %v2667
        %2678 = vmatprep.subr.mxu0 0.0
        %2679 = vmatpush1.msra.mxu0 %v2666
        %2680 = vmatprep.subr.mxu0 0.0
        %2681 = vmatpush1.msra.mxu0 %v2665
        %2682 = vmatprep.subr.mxu0 0.0
        %2683 = vmatpush1.msra.mxu0 %v2664
        %2684 = vmatprep.subr.mxu0 0.0
        %2685 = vmatpush1.msra.mxu0 %v2663
        %2686 = vmatprep.subr.mxu0 0.0
        %2687 = vmatpush1.msra.mxu0 %v2662
        %2688 = vmatprep.subr.mxu0 0.0
        %2689 = vmatpush1.msra.mxu0 %v2661
        %2690 = vmatprep.subr.mxu0 0.0
        %2691 = vmatpush1.msra.mxu0 %v2660
        %2692 = vmatprep.subr.mxu0 0.0
        %2693 = vmatpush1.msra.mxu0 %v2659
        %2694 = vmatprep.subr.mxu0 0.0
        %2695 = vmatpush1.msra.mxu0 %v2658
        %2696 = vmatprep.subr.mxu0 0.0
        %2697 = vmatpush1.msra.mxu0 %v2657
        %2698 = vmatprep.subr.mxu0 0.0
        %2699 = vmatpush1.msra.mxu0 %v2656
        %2700 = vmatprep.subr.mxu0 0.0
        %2701 = vmatpush1.msra.mxu0 %v2655
        %2702 = vmatprep.subr.mxu0 0.0
        %2703 = vmatpush1.msra.mxu0 %v2654
        %2704 = vmatprep.subr.mxu0 0.0
        %2705 = vmatpush1.msra.mxu0 %v2653
        %2706 = vmatprep.subr.mxu0 0.0
        %2707 = vmatpush2.msra.mxu0 0.0
        %2708 = vmatprep.subr.mxu0 0.0
        %2709 = vmatpush2.msra.mxu0 0.0
        %2710 = vmatprep.subr.mxu0 0.0
        %2711 = vmatpush2.msra.mxu0 0.0
        %2712 = vmatprep.subr.mxu0 0.0
        %2713 = vmatpush2.msra.mxu0 0.0
        %2714 = vmatprep.subr.mxu0 0.0
        %2715 = vmatpush2.msra.mxu0 0.0
        %2716 = vmatprep.subr.mxu0 0.0
        %2717 = vmatpush2.msra.mxu0 0.0
        %2718 = vmatprep.subr.mxu0 0.0
        %2719 = vmatpush2.msra.mxu0 0.0
        %2720 = vmatprep.subr.mxu0 0.0
        %2721 = vmatpush2.msra.mxu0 0.0
        %2722 = vmatprep.subr.mxu0 0.0
        %2723 = vmatpush2.msra.mxu0 0.0
        %2724 = vmatprep.subr.mxu0 0.0
        %2725 = vmatpush2.msra.mxu0 0.0
        %2726 = vmatprep.subr.mxu0 0.0
        %2727 = vmatpush2.msra.mxu0 0.0
        %2728 = vmatprep.subr.mxu0 0.0
        %2729 = vmatpush2.msra.mxu0 0.0
        %2730 = vmatprep.subr.mxu0 0.0
        %2731 = vmatpush2.msra.mxu0 0.0
        %2732 = vmatprep.subr.mxu0 0.0
        %2733 = vmatpush2.msra.mxu0 0.0
        %2734 = vmatprep.subr.mxu0 0.0
        %2735 = vmatpush2.msra.mxu0 0.0
        %2736 = vmatprep.subr.mxu0 0.0
        %2737 = vmatpush2.msra.mxu0 0.0
        %2738 = vmatprep.mubr.f32.mxu0 0.0
        %2739 = vmatmul.mubr.f32.gmra.mxu0 %v2650
        %v2740 = vpop.f32.mrf.mxu0
        %v2741 = vadd.f32 %v2673, %v2740
        %v2742 = vpop.f32.mrf.mxu0
        %2743 = vmatprep.mubr.f32.mxu0 0.0
        %2744 = vmatmul.mubr.f32.gmra.mxu0 %v2651
        %v2745 = vpop.f32.mrf.mxu0
        %v2746 = vadd.f32 %v2673, %v2745
        %v2747 = vpop.f32.mrf.mxu0
        %2748 = vdwg.mxu0
        %v2749 = vmul.f32 %v2741, 0.5
        %v2750 = vmul.f32 %v2746, 0.5
        %v2751 = vmin.f32 %v2749, 14.0
        %v2752 = vmin.f32 %v2750, 14.0
        %vm2753 = vcmp.gt.f32.partialorder %v2749, 14.0
        %vm2754 = vcmp.gt.f32.partialorder %v2750, 14.0
        %v2755 = vmul.f32 %v2751, 1.442695
        %v2756 = vpow.pop %v2755
        %v2757 = vmul.f32 %v2752, 1.442695
        %v2758 = vpow.pop %v2757
        %v2759 = vadd.f32 %v2756, 1.0
        %v2760 = vlog2.pop %v2759
        %v2761 = vmul.f32 %v2760, 0.6931472
        %v2762 = vmul.f32 -0.5, %v2756
        %v2763 = vadd.f32 %v2762, 1.0
        %v2764 = vmul.f32 %v2763, %v2756
        %v2765 = vand.u32 2147483647, %v2756
        %vm2766 = vcmp.lt.f32.partialorder %v2765, 0.0004427343
        %v2767 = vsel %vm2766, %v2764, %v2761
        %v2768 = vadd.f32 %v2758, 1.0
        %v2769 = vlog2.pop %v2768
        %v2770 = vmul.f32 %v2769, 0.6931472
        %v2771 = vmul.f32 -0.5, %v2758
        %v2772 = vadd.f32 %v2771, 1.0
        %v2773 = vmul.f32 %v2772, %v2758
        %v2774 = vand.u32 2147483647, %v2758
        %vm2775 = vcmp.lt.f32.partialorder %v2774, 0.0004427343
        %v2776 = vsel %vm2775, %v2773, %v2770
        %v2777 = vmul.f32 %v2767, 2.0
        %v2778 = vmul.f32 %v2776, 2.0
        %v2779 = vsel %vm2753, %v2741, %v2777
        %v2780 = vsel %vm2754, %v2746, %v2778
        %s2781 = scalar_lea.vmem [#allocation2], 1664
        %v2782 = vld [vmem:[%s2781] sm:$0xff]
        %v2783 = vld [vmem:[%s2781 + $0x8] sm:$0xff]
        %v2784 = vld [vmem:[%s2781 + $0x10] sm:$0xff]
        %v2785 = vld [vmem:[%s2781 + $0x18] sm:$0xff]
        %v2786 = vld [vmem:[%s2781 + $0x20] sm:$0xff]
        %v2787 = vld [vmem:[%s2781 + $0x28] sm:$0xff]
        %v2788 = vld [vmem:[%s2781 + $0x30] sm:$0xff]
        %v2789 = vld [vmem:[%s2781 + $0x38] sm:$0xff]
        %v2790 = vld [vmem:[%s2781 + $0x40] sm:$0xff]
        %v2791 = vld [vmem:[%s2781 + $0x48] sm:$0xff]
        %v2792 = vld [vmem:[%s2781 + $0x50] sm:$0xff]
        %v2793 = vld [vmem:[%s2781 + $0x58] sm:$0xff]
        %v2794 = vld [vmem:[%s2781 + $0x60] sm:$0xff]
        %v2795 = vld [vmem:[%s2781 + $0x68] sm:$0xff]
        %v2796 = vld [vmem:[%s2781 + $0x70] sm:$0xff]
        %v2797 = vld [vmem:[%s2781 + $0x78] sm:$0xff]
        %2798 = vmatprep.subr.mxu0 0.0
        %2799 = vmatpush1.msra.mxu0 %v2797
        %2800 = vmatprep.subr.mxu0 0.0
        %2801 = vmatpush1.msra.mxu0 %v2796
        %2802 = vmatprep.subr.mxu0 0.0
        %2803 = vmatpush1.msra.mxu0 %v2795
        %2804 = vmatprep.subr.mxu0 0.0
        %2805 = vmatpush1.msra.mxu0 %v2794
        %2806 = vmatprep.subr.mxu0 0.0
        %2807 = vmatpush1.msra.mxu0 %v2793
        %2808 = vmatprep.subr.mxu0 0.0
        %2809 = vmatpush1.msra.mxu0 %v2792
        %2810 = vmatprep.subr.mxu0 0.0
        %2811 = vmatpush1.msra.mxu0 %v2791
        %2812 = vmatprep.subr.mxu0 0.0
        %2813 = vmatpush1.msra.mxu0 %v2790
        %2814 = vmatprep.subr.mxu0 0.0
        %2815 = vmatpush1.msra.mxu0 %v2789
        %2816 = vmatprep.subr.mxu0 0.0
        %2817 = vmatpush1.msra.mxu0 %v2788
        %2818 = vmatprep.subr.mxu0 0.0
        %2819 = vmatpush1.msra.mxu0 %v2787
        %2820 = vmatprep.subr.mxu0 0.0
        %2821 = vmatpush1.msra.mxu0 %v2786
        %2822 = vmatprep.subr.mxu0 0.0
        %2823 = vmatpush1.msra.mxu0 %v2785
        %2824 = vmatprep.subr.mxu0 0.0
        %2825 = vmatpush1.msra.mxu0 %v2784
        %2826 = vmatprep.subr.mxu0 0.0
        %2827 = vmatpush1.msra.mxu0 %v2783
        %2828 = vmatprep.subr.mxu0 0.0
        %2829 = vmatpush1.msra.mxu0 %v2782
        %2830 = vmatprep.subr.mxu0 0.0
        %2831 = vmatpush2.msra.mxu0 0.0
        %2832 = vmatprep.subr.mxu0 0.0
        %2833 = vmatpush2.msra.mxu0 0.0
        %2834 = vmatprep.subr.mxu0 0.0
        %2835 = vmatpush2.msra.mxu0 0.0
        %2836 = vmatprep.subr.mxu0 0.0
        %2837 = vmatpush2.msra.mxu0 0.0
        %2838 = vmatprep.subr.mxu0 0.0
        %2839 = vmatpush2.msra.mxu0 0.0
        %2840 = vmatprep.subr.mxu0 0.0
        %2841 = vmatpush2.msra.mxu0 0.0
        %2842 = vmatprep.subr.mxu0 0.0
        %2843 = vmatpush2.msra.mxu0 0.0
        %2844 = vmatprep.subr.mxu0 0.0
        %2845 = vmatpush2.msra.mxu0 0.0
        %2846 = vmatprep.subr.mxu0 0.0
        %2847 = vmatpush2.msra.mxu0 0.0
        %2848 = vmatprep.subr.mxu0 0.0
        %2849 = vmatpush2.msra.mxu0 0.0
        %2850 = vmatprep.subr.mxu0 0.0
        %2851 = vmatpush2.msra.mxu0 0.0
        %2852 = vmatprep.subr.mxu0 0.0
        %2853 = vmatpush2.msra.mxu0 0.0
        %2854 = vmatprep.subr.mxu0 0.0
        %2855 = vmatpush2.msra.mxu0 0.0
        %2856 = vmatprep.subr.mxu0 0.0
        %2857 = vmatpush2.msra.mxu0 0.0
        %2858 = vmatprep.subr.mxu0 0.0
        %2859 = vmatpush2.msra.mxu0 0.0
        %2860 = vmatprep.subr.mxu0 0.0
        %2861 = vmatpush2.msra.mxu0 0.0
        %2862 = vmatprep.mubr.f32.mxu0 0.0
        %2863 = vmatmul.mubr.f32.gmra.mxu0 %v2779
        %v2864 = vpop.f32.mrf.mxu0
        %v2865 = vadd.f32 0.0, %v2864
        %v2866 = vpop.f32.mrf.mxu0
        %2867 = vmatprep.mubr.f32.mxu0 0.0
        %2868 = vmatmul.mubr.f32.gmra.mxu0 %v2780
        %v2869 = vpop.f32.mrf.mxu0
        %v2870 = vadd.f32 0.0, %v2869
        %v2871 = vpop.f32.mrf.mxu0
        %2872 = vdwg.mxu0
        %v2873 = vadd.f32 %v1749, %v2865
        %v2874 = vadd.f32 %v1750, %v2870
        %v2875 = vld [vmem:[%s3 + $0xa] sm:$0x1]
        %v2876 = vlaneseq
        %v2877 = vshrl.u32 %v2876, 7
        %v2878 = vsub.s32 0, %v2877
        %v2879 = vrot.slane %v2875, %v2878
        %v2880 = vadd.f32 %v2873, %v2879
        %v2881 = vadd.f32 %v2874, %v2879
        %s2882 = scalar_lea.vmem [#allocation2], 256
        %v2883 = vld [vmem:[%s2882] sm:$0xff]
        %v2884 = vld [vmem:[%s2882 + $0x8] sm:$0xff]
        %v2885 = vld [vmem:[%s2882 + $0x10] sm:$0xff]
        %v2886 = vld [vmem:[%s2882 + $0x18] sm:$0xff]
        %v2887 = vld [vmem:[%s2882 + $0x20] sm:$0xff]
        %v2888 = vld [vmem:[%s2882 + $0x28] sm:$0xff]
        %v2889 = vld [vmem:[%s2882 + $0x30] sm:$0xff]
        %v2890 = vld [vmem:[%s2882 + $0x38] sm:$0xff]
        %v2891 = vld [vmem:[%s2882 + $0x40] sm:$0xff]
        %v2892 = vld [vmem:[%s2882 + $0x48] sm:$0xff]
        %v2893 = vld [vmem:[%s2882 + $0x50] sm:$0xff]
        %v2894 = vld [vmem:[%s2882 + $0x58] sm:$0xff]
        %v2895 = vld [vmem:[%s2882 + $0x60] sm:$0xff]
        %v2896 = vld [vmem:[%s2882 + $0x68] sm:$0xff]
        %v2897 = vld [vmem:[%s2882 + $0x70] sm:$0xff]
        %v2898 = vld [vmem:[%s2882 + $0x78] sm:$0xff]
        %v2899 = vld [vmem:[%s3 + $0x2] sm:$0x1]
        %v2900 = vlaneseq
        %v2901 = vshrl.u32 %v2900, 7
        %v2902 = vsub.s32 0, %v2901
        %v2903 = vrot.slane %v2899, %v2902
        %2904 = vmatprep.subr.mxu0 0.0
        %2905 = vmatpush1.msra.mxu0 %v2898
        %2906 = vmatprep.subr.mxu0 0.0
        %2907 = vmatpush1.msra.mxu0 %v2897
        %2908 = vmatprep.subr.mxu0 0.0
        %2909 = vmatpush1.msra.mxu0 %v2896
        %2910 = vmatprep.subr.mxu0 0.0
        %2911 = vmatpush1.msra.mxu0 %v2895
        %2912 = vmatprep.subr.mxu0 0.0
        %2913 = vmatpush1.msra.mxu0 %v2894
        %2914 = vmatprep.subr.mxu0 0.0
        %2915 = vmatpush1.msra.mxu0 %v2893
        %2916 = vmatprep.subr.mxu0 0.0
        %2917 = vmatpush1.msra.mxu0 %v2892
        %2918 = vmatprep.subr.mxu0 0.0
        %2919 = vmatpush1.msra.mxu0 %v2891
        %2920 = vmatprep.subr.mxu0 0.0
        %2921 = vmatpush1.msra.mxu0 %v2890
        %2922 = vmatprep.subr.mxu0 0.0
        %2923 = vmatpush1.msra.mxu0 %v2889
        %2924 = vmatprep.subr.mxu0 0.0
        %2925 = vmatpush1.msra.mxu0 %v2888
        %2926 = vmatprep.subr.mxu0 0.0
        %2927 = vmatpush1.msra.mxu0 %v2887
        %2928 = vmatprep.subr.mxu0 0.0
        %2929 = vmatpush1.msra.mxu0 %v2886
        %2930 = vmatprep.subr.mxu0 0.0
        %2931 = vmatpush1.msra.mxu0 %v2885
        %2932 = vmatprep.subr.mxu0 0.0
        %2933 = vmatpush1.msra.mxu0 %v2884
        %2934 = vmatprep.subr.mxu0 0.0
        %2935 = vmatpush1.msra.mxu0 %v2883
        %2936 = vmatprep.subr.mxu0 0.0
        %2937 = vmatpush2.msra.mxu0 0.0
        %2938 = vmatprep.subr.mxu0 0.0
        %2939 = vmatpush2.msra.mxu0 0.0
        %2940 = vmatprep.subr.mxu0 0.0
        %2941 = vmatpush2.msra.mxu0 0.0
        %2942 = vmatprep.subr.mxu0 0.0
        %2943 = vmatpush2.msra.mxu0 0.0
        %2944 = vmatprep.subr.mxu0 0.0
        %2945 = vmatpush2.msra.mxu0 0.0
        %2946 = vmatprep.subr.mxu0 0.0
        %2947 = vmatpush2.msra.mxu0 0.0
        %2948 = vmatprep.subr.mxu0 0.0
        %2949 = vmatpush2.msra.mxu0 0.0
        %2950 = vmatprep.subr.mxu0 0.0
        %2951 = vmatpush2.msra.mxu0 0.0
        %2952 = vmatprep.subr.mxu0 0.0
        %2953 = vmatpush2.msra.mxu0 0.0
        %2954 = vmatprep.subr.mxu0 0.0
        %2955 = vmatpush2.msra.mxu0 0.0
        %2956 = vmatprep.subr.mxu0 0.0
        %2957 = vmatpush2.msra.mxu0 0.0
        %2958 = vmatprep.subr.mxu0 0.0
        %2959 = vmatpush2.msra.mxu0 0.0
        %2960 = vmatprep.subr.mxu0 0.0
        %2961 = vmatpush2.msra.mxu0 0.0
        %2962 = vmatprep.subr.mxu0 0.0
        %2963 = vmatpush2.msra.mxu0 0.0
        %2964 = vmatprep.subr.mxu0 0.0
        %2965 = vmatpush2.msra.mxu0 0.0
        %2966 = vmatprep.subr.mxu0 0.0
        %2967 = vmatpush2.msra.mxu0 0.0
        %2968 = vmatprep.mubr.f32.mxu0 0.0
        %2969 = vmatmul.mubr.f32.gmra.mxu0 %v590
        %v2970 = vpop.f32.mrf.mxu0
        %v2971 = vadd.f32 %v2903, %v2970
        %v2972 = vpop.f32.mrf.mxu0
        %2973 = vmatprep.mubr.f32.mxu0 0.0
        %2974 = vmatmul.mubr.f32.gmra.mxu0 %v592
        %v2975 = vpop.f32.mrf.mxu0
        %v2976 = vadd.f32 %v2903, %v2975
        %v2977 = vpop.f32.mrf.mxu0
        %2978 = vmatprep.mubr.f32.mxu0 0.0
        %2979 = vmatmul.mubr.f32.gmra.mxu0 %v594
        %v2980 = vpop.f32.mrf.mxu0
        %v2981 = vadd.f32 %v2903, %v2980
        %v2982 = vpop.f32.mrf.mxu0
        %2983 = vmatprep.mubr.f32.mxu0 0.0
        %2984 = vmatmul.mubr.f32.gmra.mxu0 %v596
        %v2985 = vpop.f32.mrf.mxu0
        %v2986 = vadd.f32 %v2903, %v2985
        %v2987 = vpop.f32.mrf.mxu0
        %2988 = vmatprep.mubr.f32.mxu0 0.0
        %2989 = vmatmul.mubr.f32.gmra.mxu0 %v598
        %v2990 = vpop.f32.mrf.mxu0
        %v2991 = vadd.f32 %v2903, %v2990
        %v2992 = vpop.f32.mrf.mxu0
        %2993 = vmatprep.mubr.f32.mxu0 0.0
        %2994 = vmatmul.mubr.f32.gmra.mxu0 %v600
        %v2995 = vpop.f32.mrf.mxu0
        %v2996 = vadd.f32 %v2903, %v2995
        %v2997 = vpop.f32.mrf.mxu0
        %2998 = vmatprep.mubr.f32.mxu0 0.0
        %2999 = vmatmul.mubr.f32.gmra.mxu0 %v602
        %v3000 = vpop.f32.mrf.mxu0
        %v3001 = vadd.f32 %v2903, %v3000
        %v3002 = vpop.f32.mrf.mxu0
        %3003 = vmatprep.mubr.f32.mxu0 0.0
        %3004 = vmatmul.mubr.f32.gmra.mxu0 %v604
        %v3005 = vpop.f32.mrf.mxu0
        %v3006 = vadd.f32 %v2903, %v3005
        %v3007 = vpop.f32.mrf.mxu0
        %3008 = vmatprep.mubr.f32.mxu0 0.0
        %3009 = vmatmul.mubr.f32.gmra.mxu0 %v606
        %v3010 = vpop.f32.mrf.mxu0
        %v3011 = vadd.f32 %v2903, %v3010
        %v3012 = vpop.f32.mrf.mxu0
        %3013 = vmatprep.mubr.f32.mxu0 0.0
        %3014 = vmatmul.mubr.f32.gmra.mxu0 %v608
        %v3015 = vpop.f32.mrf.mxu0
        %v3016 = vadd.f32 %v2903, %v3015
        %v3017 = vpop.f32.mrf.mxu0
        %3018 = vmatprep.mubr.f32.mxu0 0.0
        %3019 = vmatmul.mubr.f32.gmra.mxu0 %v610
        %v3020 = vpop.f32.mrf.mxu0
        %v3021 = vadd.f32 %v2903, %v3020
        %v3022 = vpop.f32.mrf.mxu0
        %3023 = vmatprep.mubr.f32.mxu0 0.0
        %3024 = vmatmul.mubr.f32.gmra.mxu0 %v612
        %v3025 = vpop.f32.mrf.mxu0
        %v3026 = vadd.f32 %v2903, %v3025
        %v3027 = vpop.f32.mrf.mxu0
        %3028 = vmatprep.mubr.f32.mxu0 0.0
        %3029 = vmatmul.mubr.f32.gmra.mxu0 %v614
        %v3030 = vpop.f32.mrf.mxu0
        %v3031 = vadd.f32 %v2903, %v3030
        %v3032 = vpop.f32.mrf.mxu0
        %3033 = vmatprep.mubr.f32.mxu0 0.0
        %3034 = vmatmul.mubr.f32.gmra.mxu0 %v616
        %v3035 = vpop.f32.mrf.mxu0
        %v3036 = vadd.f32 %v2903, %v3035
        %v3037 = vpop.f32.mrf.mxu0
        %3038 = vmatprep.mubr.f32.mxu0 0.0
        %3039 = vmatmul.mubr.f32.gmra.mxu0 %v618
        %v3040 = vpop.f32.mrf.mxu0
        %v3041 = vadd.f32 %v2903, %v3040
        %v3042 = vpop.f32.mrf.mxu0
        %3043 = vmatprep.mubr.f32.mxu0 0.0
        %3044 = vmatmul.mubr.f32.gmra.mxu0 %v620
        %v3045 = vpop.f32.mrf.mxu0
        %v3046 = vadd.f32 %v2903, %v3045
        %v3047 = vpop.f32.mrf.mxu0
        %3048 = vdwg.mxu0
        %v3049 = vmul.f32 %v2971, 0.5
        %v3050 = vmul.f32 %v2976, 0.5
        %v3051 = vmul.f32 %v2981, 0.5
        %v3052 = vmul.f32 %v2986, 0.5
        %v3053 = vmul.f32 %v2991, 0.5
        %v3054 = vmul.f32 %v2996, 0.5
        %v3055 = vmul.f32 %v3001, 0.5
        %v3056 = vmul.f32 %v3006, 0.5
        %v3057 = vmul.f32 %v3011, 0.5
        %v3058 = vmul.f32 %v3016, 0.5
        %v3059 = vmul.f32 %v3021, 0.5
        %v3060 = vmul.f32 %v3026, 0.5
        %v3061 = vmul.f32 %v3031, 0.5
        %v3062 = vmul.f32 %v3036, 0.5
        %v3063 = vmul.f32 %v3041, 0.5
        %v3064 = vmul.f32 %v3046, 0.5
        %v3065 = vmin.f32 %v3049, 14.0
        %v3066 = vmin.f32 %v3050, 14.0
        %v3067 = vmin.f32 %v3051, 14.0
        %v3068 = vmin.f32 %v3052, 14.0
        %v3069 = vmin.f32 %v3053, 14.0
        %v3070 = vmin.f32 %v3054, 14.0
        %v3071 = vmin.f32 %v3055, 14.0
        %v3072 = vmin.f32 %v3056, 14.0
        %v3073 = vmin.f32 %v3057, 14.0
        %v3074 = vmin.f32 %v3058, 14.0
        %v3075 = vmin.f32 %v3059, 14.0
        %v3076 = vmin.f32 %v3060, 14.0
        %v3077 = vmin.f32 %v3061, 14.0
        %v3078 = vmin.f32 %v3062, 14.0
        %v3079 = vmin.f32 %v3063, 14.0
        %v3080 = vmin.f32 %v3064, 14.0
        %vm3081 = vcmp.gt.f32.partialorder %v3049, 14.0
        %vm3082 = vcmp.gt.f32.partialorder %v3050, 14.0
        %vm3083 = vcmp.gt.f32.partialorder %v3051, 14.0
        %vm3084 = vcmp.gt.f32.partialorder %v3052, 14.0
        %vm3085 = vcmp.gt.f32.partialorder %v3053, 14.0
        %vm3086 = vcmp.gt.f32.partialorder %v3054, 14.0
        %vm3087 = vcmp.gt.f32.partialorder %v3055, 14.0
        %vm3088 = vcmp.gt.f32.partialorder %v3056, 14.0
        %vm3089 = vcmp.gt.f32.partialorder %v3057, 14.0
        %vm3090 = vcmp.gt.f32.partialorder %v3058, 14.0
        %vm3091 = vcmp.gt.f32.partialorder %v3059, 14.0
        %vm3092 = vcmp.gt.f32.partialorder %v3060, 14.0
        %vm3093 = vcmp.gt.f32.partialorder %v3061, 14.0
        %vm3094 = vcmp.gt.f32.partialorder %v3062, 14.0
        %vm3095 = vcmp.gt.f32.partialorder %v3063, 14.0
        %vm3096 = vcmp.gt.f32.partialorder %v3064, 14.0
        %v3097 = vmul.f32 %v3065, 1.442695
        %v3098 = vpow.pop %v3097
        %v3099 = vmul.f32 %v3066, 1.442695
        %v3100 = vpow.pop %v3099
        %v3101 = vmul.f32 %v3067, 1.442695
        %v3102 = vpow.pop %v3101
        %v3103 = vmul.f32 %v3068, 1.442695
        %v3104 = vpow.pop %v3103
        %v3105 = vmul.f32 %v3069, 1.442695
        %v3106 = vpow.pop %v3105
        %v3107 = vmul.f32 %v3070, 1.442695
        %v3108 = vpow.pop %v3107
        %v3109 = vmul.f32 %v3071, 1.442695
        %v3110 = vpow.pop %v3109
        %v3111 = vmul.f32 %v3072, 1.442695
        %v3112 = vpow.pop %v3111
        %v3113 = vmul.f32 %v3073, 1.442695
        %v3114 = vpow.pop %v3113
        %v3115 = vmul.f32 %v3074, 1.442695
        %v3116 = vpow.pop %v3115
        %v3117 = vmul.f32 %v3075, 1.442695
        %v3118 = vpow.pop %v3117
        %v3119 = vmul.f32 %v3076, 1.442695
        %v3120 = vpow.pop %v3119
        %v3121 = vmul.f32 %v3077, 1.442695
        %v3122 = vpow.pop %v3121
        %v3123 = vmul.f32 %v3078, 1.442695
        %v3124 = vpow.pop %v3123
        %v3125 = vmul.f32 %v3079, 1.442695
        %v3126 = vpow.pop %v3125
        %v3127 = vmul.f32 %v3080, 1.442695
        %v3128 = vpow.pop %v3127
        %v3129 = vadd.f32 %v3098, 1.0
        %v3130 = vlog2.pop %v3129
        %v3131 = vmul.f32 %v3130, 0.6931472
        %v3132 = vmul.f32 -0.5, %v3098
        %v3133 = vadd.f32 %v3132, 1.0
        %v3134 = vmul.f32 %v3133, %v3098
        %v3135 = vand.u32 2147483647, %v3098
        %vm3136 = vcmp.lt.f32.partialorder %v3135, 0.0004427343
        %v3137 = vsel %vm3136, %v3134, %v3131
        %v3138 = vadd.f32 %v3100, 1.0
        %v3139 = vlog2.pop %v3138
        %v3140 = vmul.f32 %v3139, 0.6931472
        %v3141 = vmul.f32 -0.5, %v3100
        %v3142 = vadd.f32 %v3141, 1.0
        %v3143 = vmul.f32 %v3142, %v3100
        %v3144 = vand.u32 2147483647, %v3100
        %vm3145 = vcmp.lt.f32.partialorder %v3144, 0.0004427343
        %v3146 = vsel %vm3145, %v3143, %v3140
        %v3147 = vadd.f32 %v3102, 1.0
        %v3148 = vlog2.pop %v3147
        %v3149 = vmul.f32 %v3148, 0.6931472
        %v3150 = vmul.f32 -0.5, %v3102
        %v3151 = vadd.f32 %v3150, 1.0
        %v3152 = vmul.f32 %v3151, %v3102
        %v3153 = vand.u32 2147483647, %v3102
        %vm3154 = vcmp.lt.f32.partialorder %v3153, 0.0004427343
        %v3155 = vsel %vm3154, %v3152, %v3149
        %v3156 = vadd.f32 %v3104, 1.0
        %v3157 = vlog2.pop %v3156
        %v3158 = vmul.f32 %v3157, 0.6931472
        %v3159 = vmul.f32 -0.5, %v3104
        %v3160 = vadd.f32 %v3159, 1.0
        %v3161 = vmul.f32 %v3160, %v3104
        %v3162 = vand.u32 2147483647, %v3104
        %vm3163 = vcmp.lt.f32.partialorder %v3162, 0.0004427343
        %v3164 = vsel %vm3163, %v3161, %v3158
        %v3165 = vadd.f32 %v3106, 1.0
        %v3166 = vlog2.pop %v3165
        %v3167 = vmul.f32 %v3166, 0.6931472
        %v3168 = vmul.f32 -0.5, %v3106
        %v3169 = vadd.f32 %v3168, 1.0
        %v3170 = vmul.f32 %v3169, %v3106
        %v3171 = vand.u32 2147483647, %v3106
        %vm3172 = vcmp.lt.f32.partialorder %v3171, 0.0004427343
        %v3173 = vsel %vm3172, %v3170, %v3167
        %v3174 = vadd.f32 %v3108, 1.0
        %v3175 = vlog2.pop %v3174
        %v3176 = vmul.f32 %v3175, 0.6931472
        %v3177 = vmul.f32 -0.5, %v3108
        %v3178 = vadd.f32 %v3177, 1.0
        %v3179 = vmul.f32 %v3178, %v3108
        %v3180 = vand.u32 2147483647, %v3108
        %vm3181 = vcmp.lt.f32.partialorder %v3180, 0.0004427343
        %v3182 = vsel %vm3181, %v3179, %v3176
        %v3183 = vadd.f32 %v3110, 1.0
        %v3184 = vlog2.pop %v3183
        %v3185 = vmul.f32 %v3184, 0.6931472
        %v3186 = vmul.f32 -0.5, %v3110
        %v3187 = vadd.f32 %v3186, 1.0
        %v3188 = vmul.f32 %v3187, %v3110
        %v3189 = vand.u32 2147483647, %v3110
        %vm3190 = vcmp.lt.f32.partialorder %v3189, 0.0004427343
        %v3191 = vsel %vm3190, %v3188, %v3185
        %v3192 = vadd.f32 %v3112, 1.0
        %v3193 = vlog2.pop %v3192
        %v3194 = vmul.f32 %v3193, 0.6931472
        %v3195 = vmul.f32 -0.5, %v3112
        %v3196 = vadd.f32 %v3195, 1.0
        %v3197 = vmul.f32 %v3196, %v3112
        %v3198 = vand.u32 2147483647, %v3112
        %vm3199 = vcmp.lt.f32.partialorder %v3198, 0.0004427343
        %v3200 = vsel %vm3199, %v3197, %v3194
        %v3201 = vadd.f32 %v3114, 1.0
        %v3202 = vlog2.pop %v3201
        %v3203 = vmul.f32 %v3202, 0.6931472
        %v3204 = vmul.f32 -0.5, %v3114
        %v3205 = vadd.f32 %v3204, 1.0
        %v3206 = vmul.f32 %v3205, %v3114
        %v3207 = vand.u32 2147483647, %v3114
        %vm3208 = vcmp.lt.f32.partialorder %v3207, 0.0004427343
        %v3209 = vsel %vm3208, %v3206, %v3203
        %v3210 = vadd.f32 %v3116, 1.0
        %v3211 = vlog2.pop %v3210
        %v3212 = vmul.f32 %v3211, 0.6931472
        %v3213 = vmul.f32 -0.5, %v3116
        %v3214 = vadd.f32 %v3213, 1.0
        %v3215 = vmul.f32 %v3214, %v3116
        %v3216 = vand.u32 2147483647, %v3116
        %vm3217 = vcmp.lt.f32.partialorder %v3216, 0.0004427343
        %v3218 = vsel %vm3217, %v3215, %v3212
        %v3219 = vadd.f32 %v3118, 1.0
        %v3220 = vlog2.pop %v3219
        %v3221 = vmul.f32 %v3220, 0.6931472
        %v3222 = vmul.f32 -0.5, %v3118
        %v3223 = vadd.f32 %v3222, 1.0
        %v3224 = vmul.f32 %v3223, %v3118
        %v3225 = vand.u32 2147483647, %v3118
        %vm3226 = vcmp.lt.f32.partialorder %v3225, 0.0004427343
        %v3227 = vsel %vm3226, %v3224, %v3221
        %v3228 = vadd.f32 %v3120, 1.0
        %v3229 = vlog2.pop %v3228
        %v3230 = vmul.f32 %v3229, 0.6931472
        %v3231 = vmul.f32 -0.5, %v3120
        %v3232 = vadd.f32 %v3231, 1.0
        %v3233 = vmul.f32 %v3232, %v3120
        %v3234 = vand.u32 2147483647, %v3120
        %vm3235 = vcmp.lt.f32.partialorder %v3234, 0.0004427343
        %v3236 = vsel %vm3235, %v3233, %v3230
        %v3237 = vadd.f32 %v3122, 1.0
        %v3238 = vlog2.pop %v3237
        %v3239 = vmul.f32 %v3238, 0.6931472
        %v3240 = vmul.f32 -0.5, %v3122
        %v3241 = vadd.f32 %v3240, 1.0
        %v3242 = vmul.f32 %v3241, %v3122
        %v3243 = vand.u32 2147483647, %v3122
        %vm3244 = vcmp.lt.f32.partialorder %v3243, 0.0004427343
        %v3245 = vsel %vm3244, %v3242, %v3239
        %v3246 = vadd.f32 %v3124, 1.0
        %v3247 = vlog2.pop %v3246
        %v3248 = vmul.f32 %v3247, 0.6931472
        %v3249 = vmul.f32 -0.5, %v3124
        %v3250 = vadd.f32 %v3249, 1.0
        %v3251 = vmul.f32 %v3250, %v3124
        %v3252 = vand.u32 2147483647, %v3124
        %vm3253 = vcmp.lt.f32.partialorder %v3252, 0.0004427343
        %v3254 = vsel %vm3253, %v3251, %v3248
        %v3255 = vadd.f32 %v3126, 1.0
        %v3256 = vlog2.pop %v3255
        %v3257 = vmul.f32 %v3256, 0.6931472
        %v3258 = vmul.f32 -0.5, %v3126
        %v3259 = vadd.f32 %v3258, 1.0
        %v3260 = vmul.f32 %v3259, %v3126
        %v3261 = vand.u32 2147483647, %v3126
        %vm3262 = vcmp.lt.f32.partialorder %v3261, 0.0004427343
        %v3263 = vsel %vm3262, %v3260, %v3257
        %v3264 = vadd.f32 %v3128, 1.0
        %v3265 = vlog2.pop %v3264
        %v3266 = vmul.f32 %v3265, 0.6931472
        %v3267 = vmul.f32 -0.5, %v3128
        %v3268 = vadd.f32 %v3267, 1.0
        %v3269 = vmul.f32 %v3268, %v3128
        %v3270 = vand.u32 2147483647, %v3128
        %vm3271 = vcmp.lt.f32.partialorder %v3270, 0.0004427343
        %v3272 = vsel %vm3271, %v3269, %v3266
        %v3273 = vmul.f32 %v3137, 2.0
        %v3274 = vmul.f32 %v3146, 2.0
        %v3275 = vmul.f32 %v3155, 2.0
        %v3276 = vmul.f32 %v3164, 2.0
        %v3277 = vmul.f32 %v3173, 2.0
        %v3278 = vmul.f32 %v3182, 2.0
        %v3279 = vmul.f32 %v3191, 2.0
        %v3280 = vmul.f32 %v3200, 2.0
        %v3281 = vmul.f32 %v3209, 2.0
        %v3282 = vmul.f32 %v3218, 2.0
        %v3283 = vmul.f32 %v3227, 2.0
        %v3284 = vmul.f32 %v3236, 2.0
        %v3285 = vmul.f32 %v3245, 2.0
        %v3286 = vmul.f32 %v3254, 2.0
        %v3287 = vmul.f32 %v3263, 2.0
        %v3288 = vmul.f32 %v3272, 2.0
        %v3289 = vsel %vm3081, %v2971, %v3273
        %v3290 = vsel %vm3082, %v2976, %v3274
        %v3291 = vsel %vm3083, %v2981, %v3275
        %v3292 = vsel %vm3084, %v2986, %v3276
        %v3293 = vsel %vm3085, %v2991, %v3277
        %v3294 = vsel %vm3086, %v2996, %v3278
        %v3295 = vsel %vm3087, %v3001, %v3279
        %v3296 = vsel %vm3088, %v3006, %v3280
        %v3297 = vsel %vm3089, %v3011, %v3281
        %v3298 = vsel %vm3090, %v3016, %v3282
        %v3299 = vsel %vm3091, %v3021, %v3283
        %v3300 = vsel %vm3092, %v3026, %v3284
        %v3301 = vsel %vm3093, %v3031, %v3285
        %v3302 = vsel %vm3094, %v3036, %v3286
        %v3303 = vsel %vm3095, %v3041, %v3287
        %v3304 = vsel %vm3096, %v3046, %v3288
        %s3305 = scalar_lea.vmem [#allocation2], 640
        %v3306 = vld [vmem:[%s3305] sm:$0xff]
        %v3307 = vld [vmem:[%s3305 + $0x8] sm:$0xff]
        %v3308 = vld [vmem:[%s3305 + $0x10] sm:$0xff]
        %v3309 = vld [vmem:[%s3305 + $0x18] sm:$0xff]
        %v3310 = vld [vmem:[%s3305 + $0x20] sm:$0xff]
        %v3311 = vld [vmem:[%s3305 + $0x28] sm:$0xff]
        %v3312 = vld [vmem:[%s3305 + $0x30] sm:$0xff]
        %v3313 = vld [vmem:[%s3305 + $0x38] sm:$0xff]
        %v3314 = vld [vmem:[%s3305 + $0x40] sm:$0xff]
        %v3315 = vld [vmem:[%s3305 + $0x48] sm:$0xff]
        %v3316 = vld [vmem:[%s3305 + $0x50] sm:$0xff]
        %v3317 = vld [vmem:[%s3305 + $0x58] sm:$0xff]
        %v3318 = vld [vmem:[%s3305 + $0x60] sm:$0xff]
        %v3319 = vld [vmem:[%s3305 + $0x68] sm:$0xff]
        %v3320 = vld [vmem:[%s3305 + $0x70] sm:$0xff]
        %v3321 = vld [vmem:[%s3305 + $0x78] sm:$0xff]
        %v3322 = vld [vmem:[%s3 + $0x5] sm:$0x1]
        %v3323 = vlaneseq
        %v3324 = vshrl.u32 %v3323, 7
        %v3325 = vsub.s32 0, %v3324
        %v3326 = vrot.slane %v3322, %v3325
        %3327 = vmatprep.subr.mxu0 0.0
        %3328 = vmatpush1.msra.mxu0 %v3321
        %3329 = vmatprep.subr.mxu0 0.0
        %3330 = vmatpush1.msra.mxu0 %v3320
        %3331 = vmatprep.subr.mxu0 0.0
        %3332 = vmatpush1.msra.mxu0 %v3319
        %3333 = vmatprep.subr.mxu0 0.0
        %3334 = vmatpush1.msra.mxu0 %v3318
        %3335 = vmatprep.subr.mxu0 0.0
        %3336 = vmatpush1.msra.mxu0 %v3317
        %3337 = vmatprep.subr.mxu0 0.0
        %3338 = vmatpush1.msra.mxu0 %v3316
        %3339 = vmatprep.subr.mxu0 0.0
        %3340 = vmatpush1.msra.mxu0 %v3315
        %3341 = vmatprep.subr.mxu0 0.0
        %3342 = vmatpush1.msra.mxu0 %v3314
        %3343 = vmatprep.subr.mxu0 0.0
        %3344 = vmatpush1.msra.mxu0 %v3313
        %3345 = vmatprep.subr.mxu0 0.0
        %3346 = vmatpush1.msra.mxu0 %v3312
        %3347 = vmatprep.subr.mxu0 0.0
        %3348 = vmatpush1.msra.mxu0 %v3311
        %3349 = vmatprep.subr.mxu0 0.0
        %3350 = vmatpush1.msra.mxu0 %v3310
        %3351 = vmatprep.subr.mxu0 0.0
        %3352 = vmatpush1.msra.mxu0 %v3309
        %3353 = vmatprep.subr.mxu0 0.0
        %3354 = vmatpush1.msra.mxu0 %v3308
        %3355 = vmatprep.subr.mxu0 0.0
        %3356 = vmatpush1.msra.mxu0 %v3307
        %3357 = vmatprep.subr.mxu0 0.0
        %3358 = vmatpush1.msra.mxu0 %v3306
        %3359 = vmatprep.subr.mxu0 0.0
        %3360 = vmatpush2.msra.mxu0 0.0
        %3361 = vmatprep.subr.mxu0 0.0
        %3362 = vmatpush2.msra.mxu0 0.0
        %3363 = vmatprep.subr.mxu0 0.0
        %3364 = vmatpush2.msra.mxu0 0.0
        %3365 = vmatprep.subr.mxu0 0.0
        %3366 = vmatpush2.msra.mxu0 0.0
        %3367 = vmatprep.subr.mxu0 0.0
        %3368 = vmatpush2.msra.mxu0 0.0
        %3369 = vmatprep.subr.mxu0 0.0
        %3370 = vmatpush2.msra.mxu0 0.0
        %3371 = vmatprep.subr.mxu0 0.0
        %3372 = vmatpush2.msra.mxu0 0.0
        %3373 = vmatprep.subr.mxu0 0.0
        %3374 = vmatpush2.msra.mxu0 0.0
        %3375 = vmatprep.subr.mxu0 0.0
        %3376 = vmatpush2.msra.mxu0 0.0
        %3377 = vmatprep.subr.mxu0 0.0
        %3378 = vmatpush2.msra.mxu0 0.0
        %3379 = vmatprep.subr.mxu0 0.0
        %3380 = vmatpush2.msra.mxu0 0.0
        %3381 = vmatprep.subr.mxu0 0.0
        %3382 = vmatpush2.msra.mxu0 0.0
        %3383 = vmatprep.subr.mxu0 0.0
        %3384 = vmatpush2.msra.mxu0 0.0
        %3385 = vmatprep.subr.mxu0 0.0
        %3386 = vmatpush2.msra.mxu0 0.0
        %3387 = vmatprep.subr.mxu0 0.0
        %3388 = vmatpush2.msra.mxu0 0.0
        %3389 = vmatprep.subr.mxu0 0.0
        %3390 = vmatpush2.msra.mxu0 0.0
        %3391 = vmatprep.mubr.f32.mxu0 0.0
        %3392 = vmatmul.mubr.f32.gmra.mxu0 %v3289
        %v3393 = vpop.f32.mrf.mxu0
        %v3394 = vadd.f32 %v3326, %v3393
        %v3395 = vpop.f32.mrf.mxu0
        %3396 = vmatprep.mubr.f32.mxu0 0.0
        %3397 = vmatmul.mubr.f32.gmra.mxu0 %v3290
        %v3398 = vpop.f32.mrf.mxu0
        %v3399 = vadd.f32 %v3326, %v3398
        %v3400 = vpop.f32.mrf.mxu0
        %3401 = vmatprep.mubr.f32.mxu0 0.0
        %3402 = vmatmul.mubr.f32.gmra.mxu0 %v3291
        %v3403 = vpop.f32.mrf.mxu0
        %v3404 = vadd.f32 %v3326, %v3403
        %v3405 = vpop.f32.mrf.mxu0
        %3406 = vmatprep.mubr.f32.mxu0 0.0
        %3407 = vmatmul.mubr.f32.gmra.mxu0 %v3292
        %v3408 = vpop.f32.mrf.mxu0
        %v3409 = vadd.f32 %v3326, %v3408
        %v3410 = vpop.f32.mrf.mxu0
        %3411 = vmatprep.mubr.f32.mxu0 0.0
        %3412 = vmatmul.mubr.f32.gmra.mxu0 %v3293
        %v3413 = vpop.f32.mrf.mxu0
        %v3414 = vadd.f32 %v3326, %v3413
        %v3415 = vpop.f32.mrf.mxu0
        %3416 = vmatprep.mubr.f32.mxu0 0.0
        %3417 = vmatmul.mubr.f32.gmra.mxu0 %v3294
        %v3418 = vpop.f32.mrf.mxu0
        %v3419 = vadd.f32 %v3326, %v3418
        %v3420 = vpop.f32.mrf.mxu0
        %3421 = vmatprep.mubr.f32.mxu0 0.0
        %3422 = vmatmul.mubr.f32.gmra.mxu0 %v3295
        %v3423 = vpop.f32.mrf.mxu0
        %v3424 = vadd.f32 %v3326, %v3423
        %v3425 = vpop.f32.mrf.mxu0
        %3426 = vmatprep.mubr.f32.mxu0 0.0
        %3427 = vmatmul.mubr.f32.gmra.mxu0 %v3296
        %v3428 = vpop.f32.mrf.mxu0
        %v3429 = vadd.f32 %v3326, %v3428
        %v3430 = vpop.f32.mrf.mxu0
        %3431 = vmatprep.mubr.f32.mxu0 0.0
        %3432 = vmatmul.mubr.f32.gmra.mxu0 %v3297
        %v3433 = vpop.f32.mrf.mxu0
        %v3434 = vadd.f32 %v3326, %v3433
        %v3435 = vpop.f32.mrf.mxu0
        %3436 = vmatprep.mubr.f32.mxu0 0.0
        %3437 = vmatmul.mubr.f32.gmra.mxu0 %v3298
        %v3438 = vpop.f32.mrf.mxu0
        %v3439 = vadd.f32 %v3326, %v3438
        %v3440 = vpop.f32.mrf.mxu0
        %3441 = vmatprep.mubr.f32.mxu0 0.0
        %3442 = vmatmul.mubr.f32.gmra.mxu0 %v3299
        %v3443 = vpop.f32.mrf.mxu0
        %v3444 = vadd.f32 %v3326, %v3443
        %v3445 = vpop.f32.mrf.mxu0
        %3446 = vmatprep.mubr.f32.mxu0 0.0
        %3447 = vmatmul.mubr.f32.gmra.mxu0 %v3300
        %v3448 = vpop.f32.mrf.mxu0
        %v3449 = vadd.f32 %v3326, %v3448
        %v3450 = vpop.f32.mrf.mxu0
        %3451 = vmatprep.mubr.f32.mxu0 0.0
        %3452 = vmatmul.mubr.f32.gmra.mxu0 %v3301
        %v3453 = vpop.f32.mrf.mxu0
        %v3454 = vadd.f32 %v3326, %v3453
        %v3455 = vpop.f32.mrf.mxu0
        %3456 = vmatprep.mubr.f32.mxu0 0.0
        %3457 = vmatmul.mubr.f32.gmra.mxu0 %v3302
        %v3458 = vpop.f32.mrf.mxu0
        %v3459 = vadd.f32 %v3326, %v3458
        %v3460 = vpop.f32.mrf.mxu0
        %3461 = vmatprep.mubr.f32.mxu0 0.0
        %3462 = vmatmul.mubr.f32.gmra.mxu0 %v3303
        %v3463 = vpop.f32.mrf.mxu0
        %v3464 = vadd.f32 %v3326, %v3463
        %v3465 = vpop.f32.mrf.mxu0
        %3466 = vmatprep.mubr.f32.mxu0 0.0
        %3467 = vmatmul.mubr.f32.gmra.mxu0 %v3304
        %v3468 = vpop.f32.mrf.mxu0
        %v3469 = vadd.f32 %v3326, %v3468
        %v3470 = vpop.f32.mrf.mxu0
        %3471 = vdwg.mxu0
        %s3472 = scalar_lea.vmem [#allocation2], 1024
        %v3473 = vld [vmem:[%s3472] sm:$0xff]
        %v3474 = vld [vmem:[%s3472 + $0x8] sm:$0xff]
        %v3475 = vld [vmem:[%s3472 + $0x10] sm:$0xff]
        %v3476 = vld [vmem:[%s3472 + $0x18] sm:$0xff]
        %v3477 = vld [vmem:[%s3472 + $0x20] sm:$0xff]
        %v3478 = vld [vmem:[%s3472 + $0x28] sm:$0xff]
        %v3479 = vld [vmem:[%s3472 + $0x30] sm:$0xff]
        %v3480 = vld [vmem:[%s3472 + $0x38] sm:$0xff]
        %v3481 = vld [vmem:[%s3472 + $0x40] sm:$0xff]
        %v3482 = vld [vmem:[%s3472 + $0x48] sm:$0xff]
        %v3483 = vld [vmem:[%s3472 + $0x50] sm:$0xff]
        %v3484 = vld [vmem:[%s3472 + $0x58] sm:$0xff]
        %v3485 = vld [vmem:[%s3472 + $0x60] sm:$0xff]
        %v3486 = vld [vmem:[%s3472 + $0x68] sm:$0xff]
        %v3487 = vld [vmem:[%s3472 + $0x70] sm:$0xff]
        %v3488 = vld [vmem:[%s3472 + $0x78] sm:$0xff]
        %3489 = vmatprep.subr.mxu0 0.0
        %3490 = vmatpush1.msra.mxu0 %v3488
        %3491 = vmatprep.subr.mxu0 0.0
        %3492 = vmatpush1.msra.mxu0 %v3487
        %3493 = vmatprep.subr.mxu0 0.0
        %3494 = vmatpush1.msra.mxu0 %v3486
        %3495 = vmatprep.subr.mxu0 0.0
        %3496 = vmatpush1.msra.mxu0 %v3485
        %3497 = vmatprep.subr.mxu0 0.0
        %3498 = vmatpush1.msra.mxu0 %v3484
        %3499 = vmatprep.subr.mxu0 0.0
        %3500 = vmatpush1.msra.mxu0 %v3483
        %3501 = vmatprep.subr.mxu0 0.0
        %3502 = vmatpush1.msra.mxu0 %v3482
        %3503 = vmatprep.subr.mxu0 0.0
        %3504 = vmatpush1.msra.mxu0 %v3481
        %3505 = vmatprep.subr.mxu0 0.0
        %3506 = vmatpush1.msra.mxu0 %v3480
        %3507 = vmatprep.subr.mxu0 0.0
        %3508 = vmatpush1.msra.mxu0 %v3479
        %3509 = vmatprep.subr.mxu0 0.0
        %3510 = vmatpush1.msra.mxu0 %v3478
        %3511 = vmatprep.subr.mxu0 0.0
        %3512 = vmatpush1.msra.mxu0 %v3477
        %3513 = vmatprep.subr.mxu0 0.0
        %3514 = vmatpush1.msra.mxu0 %v3476
        %3515 = vmatprep.subr.mxu0 0.0
        %3516 = vmatpush1.msra.mxu0 %v3475
        %3517 = vmatprep.subr.mxu0 0.0
        %3518 = vmatpush1.msra.mxu0 %v3474
        %3519 = vmatprep.subr.mxu0 0.0
        %3520 = vmatpush1.msra.mxu0 %v3473
        %3521 = vmatprep.subr.mxu0 0.0
        %3522 = vmatpush2.msra.mxu0 0.0
        %3523 = vmatprep.subr.mxu0 0.0
        %3524 = vmatpush2.msra.mxu0 0.0
        %3525 = vmatprep.subr.mxu0 0.0
        %3526 = vmatpush2.msra.mxu0 0.0
        %3527 = vmatprep.subr.mxu0 0.0
        %3528 = vmatpush2.msra.mxu0 0.0
        %3529 = vmatprep.subr.mxu0 0.0
        %3530 = vmatpush2.msra.mxu0 0.0
        %3531 = vmatprep.subr.mxu0 0.0
        %3532 = vmatpush2.msra.mxu0 0.0
        %3533 = vmatprep.subr.mxu0 0.0
        %3534 = vmatpush2.msra.mxu0 0.0
        %3535 = vmatprep.subr.mxu0 0.0
        %3536 = vmatpush2.msra.mxu0 0.0
        %3537 = vmatprep.subr.mxu0 0.0
        %3538 = vmatpush2.msra.mxu0 0.0
        %3539 = vmatprep.subr.mxu0 0.0
        %3540 = vmatpush2.msra.mxu0 0.0
        %3541 = vmatprep.subr.mxu0 0.0
        %3542 = vmatpush2.msra.mxu0 0.0
        %3543 = vmatprep.subr.mxu0 0.0
        %3544 = vmatpush2.msra.mxu0 0.0
        %3545 = vmatprep.subr.mxu0 0.0
        %3546 = vmatpush2.msra.mxu0 0.0
        %3547 = vmatprep.subr.mxu0 0.0
        %3548 = vmatpush2.msra.mxu0 0.0
        %3549 = vmatprep.subr.mxu0 0.0
        %3550 = vmatpush2.msra.mxu0 0.0
        %3551 = vmatprep.subr.mxu0 0.0
        %3552 = vmatpush2.msra.mxu0 0.0
        %3553 = vmatprep.mubr.f32.mxu0 0.0
        %3554 = vmatmul.mubr.f32.gmra.mxu0 %v2880
        %v3555 = vpop.f32.mrf.mxu0
        %v3556 = vadd.f32 0.0, %v3555
        %v3557 = vpop.f32.mrf.mxu0
        %3558 = vmatprep.mubr.f32.mxu0 0.0
        %3559 = vmatmul.mubr.f32.gmra.mxu0 %v2881
        %v3560 = vpop.f32.mrf.mxu0
        %v3561 = vadd.f32 0.0, %v3560
        %v3562 = vpop.f32.mrf.mxu0
        %3563 = vdwg.mxu0
        %v3566 = vcombine.high %v3556, %v3556
        %v3568 = vunpack.c.l.s4 1966171168
        %v3569 = vunpack.c.0.s8 %v3568
        %v3570 = vlaneseq
        %v3571 = vshrl.u32 %v3570, 7
        %v3572 = vsub.s32 %v3569, %v3571
        %v3573 = vrot.slane %v3556, %v3572
        %v3575 = vunpack.c.l.s4 1966171168
        %v3576 = vunpack.c.0.s8 %v3575
        %v3577 = vlaneseq
        %v3578 = vshrl.u32 %v3577, 7
        %v3579 = vsub.s32 %v3576, %v3578
        %v3580 = vrot.slane %v3566, %v3579
        %v3581 = vcombine.high %v3573, %v3573
        %v3582 = vcombine.high %v3580, %v3580
        %v3584 = vunpack.c.l.s4 1966171168
        %v3585 = vunpack.c.0.s8 %v3584
        %v3586 = vlaneseq
        %v3587 = vshrl.u32 %v3586, 7
        %v3588 = vsub.s32 %v3585, %v3587
        %v3589 = vrot.slane %v3573, %v3588
        %v3591 = vunpack.c.l.s4 1966171168
        %v3592 = vunpack.c.0.s8 %v3591
        %v3593 = vlaneseq
        %v3594 = vshrl.u32 %v3593, 7
        %v3595 = vsub.s32 %v3592, %v3594
        %v3596 = vrot.slane %v3580, %v3595
        %v3598 = vunpack.c.l.s4 1966171168
        %v3599 = vunpack.c.0.s8 %v3598
        %v3600 = vlaneseq
        %v3601 = vshrl.u32 %v3600, 7
        %v3602 = vsub.s32 %v3599, %v3601
        %v3603 = vrot.slane %v3581, %v3602
        %v3605 = vunpack.c.l.s4 1966171168
        %v3606 = vunpack.c.0.s8 %v3605
        %v3607 = vlaneseq
        %v3608 = vshrl.u32 %v3607, 7
        %v3609 = vsub.s32 %v3606, %v3608
        %v3610 = vrot.slane %v3582, %v3609
        %v3611 = vcombine.high %v3589, %v3589
        %v3612 = vcombine.high %v3596, %v3596
        %v3613 = vcombine.high %v3603, %v3603
        %v3614 = vcombine.high %v3610, %v3610
        %v3615 = vcombine.high %v3561, %v3561
        %v3617 = vunpack.c.l.s4 1966171168
        %v3618 = vunpack.c.0.s8 %v3617
        %v3619 = vlaneseq
        %v3620 = vshrl.u32 %v3619, 7
        %v3621 = vsub.s32 %v3618, %v3620
        %v3622 = vrot.slane %v3561, %v3621
        %v3624 = vunpack.c.l.s4 1966171168
        %v3625 = vunpack.c.0.s8 %v3624
        %v3626 = vlaneseq
        %v3627 = vshrl.u32 %v3626, 7
        %v3628 = vsub.s32 %v3625, %v3627
        %v3629 = vrot.slane %v3615, %v3628
        %v3630 = vcombine.high %v3622, %v3622
        %v3631 = vcombine.high %v3629, %v3629
        %v3633 = vunpack.c.l.s4 1966171168
        %v3634 = vunpack.c.0.s8 %v3633
        %v3635 = vlaneseq
        %v3636 = vshrl.u32 %v3635, 7
        %v3637 = vsub.s32 %v3634, %v3636
        %v3638 = vrot.slane %v3622, %v3637
        %v3640 = vunpack.c.l.s4 1966171168
        %v3641 = vunpack.c.0.s8 %v3640
        %v3642 = vlaneseq
        %v3643 = vshrl.u32 %v3642, 7
        %v3644 = vsub.s32 %v3641, %v3643
        %v3645 = vrot.slane %v3629, %v3644
        %v3647 = vunpack.c.l.s4 1966171168
        %v3648 = vunpack.c.0.s8 %v3647
        %v3649 = vlaneseq
        %v3650 = vshrl.u32 %v3649, 7
        %v3651 = vsub.s32 %v3648, %v3650
        %v3652 = vrot.slane %v3630, %v3651
        %v3654 = vunpack.c.l.s4 1966171168
        %v3655 = vunpack.c.0.s8 %v3654
        %v3656 = vlaneseq
        %v3657 = vshrl.u32 %v3656, 7
        %v3658 = vsub.s32 %v3655, %v3657
        %v3659 = vrot.slane %v3631, %v3658
        %v3660 = vcombine.high %v3638, %v3638
        %v3661 = vcombine.high %v3645, %v3645
        %v3662 = vcombine.high %v3652, %v3652
        %v3663 = vcombine.high %v3659, %v3659
        %v3664 = vlaneseq
        %v3665 = vshrl.u32 %v3664, 7
        %v3666 = vsub.s32 0, %v3665
        %v3667 = vrot.slane %v3589, %v3666
        %v3668 = vlaneseq
        %v3669 = vshrl.u32 %v3668, 7
        %v3670 = vsub.s32 0, %v3669
        %v3671 = vrot.slane %v3603, %v3670
        %v3672 = vlaneseq
        %v3673 = vshrl.u32 %v3672, 7
        %v3674 = vsub.s32 0, %v3673
        %v3675 = vrot.slane %v3611, %v3674
        %v3676 = vlaneseq
        %v3677 = vshrl.u32 %v3676, 7
        %v3678 = vsub.s32 0, %v3677
        %v3679 = vrot.slane %v3613, %v3678
        %v3680 = vlaneseq
        %v3681 = vshrl.u32 %v3680, 7
        %v3682 = vsub.s32 0, %v3681
        %v3683 = vrot.slane %v3596, %v3682
        %v3684 = vlaneseq
        %v3685 = vshrl.u32 %v3684, 7
        %v3686 = vsub.s32 0, %v3685
        %v3687 = vrot.slane %v3610, %v3686
        %v3688 = vlaneseq
        %v3689 = vshrl.u32 %v3688, 7
        %v3690 = vsub.s32 0, %v3689
        %v3691 = vrot.slane %v3612, %v3690
        %v3692 = vlaneseq
        %v3693 = vshrl.u32 %v3692, 7
        %v3694 = vsub.s32 0, %v3693
        %v3695 = vrot.slane %v3614, %v3694
        %v3696 = vlaneseq
        %v3697 = vshrl.u32 %v3696, 7
        %v3698 = vsub.s32 0, %v3697
        %v3699 = vrot.slane %v3638, %v3698
        %v3700 = vlaneseq
        %v3701 = vshrl.u32 %v3700, 7
        %v3702 = vsub.s32 0, %v3701
        %v3703 = vrot.slane %v3652, %v3702
        %v3704 = vlaneseq
        %v3705 = vshrl.u32 %v3704, 7
        %v3706 = vsub.s32 0, %v3705
        %v3707 = vrot.slane %v3660, %v3706
        %v3708 = vlaneseq
        %v3709 = vshrl.u32 %v3708, 7
        %v3710 = vsub.s32 0, %v3709
        %v3711 = vrot.slane %v3662, %v3710
        %v3712 = vlaneseq
        %v3713 = vshrl.u32 %v3712, 7
        %v3714 = vsub.s32 0, %v3713
        %v3715 = vrot.slane %v3645, %v3714
        %v3716 = vlaneseq
        %v3717 = vshrl.u32 %v3716, 7
        %v3718 = vsub.s32 0, %v3717
        %v3719 = vrot.slane %v3659, %v3718
        %v3720 = vlaneseq
        %v3721 = vshrl.u32 %v3720, 7
        %v3722 = vsub.s32 0, %v3721
        %v3723 = vrot.slane %v3661, %v3722
        %v3724 = vlaneseq
        %v3725 = vshrl.u32 %v3724, 7
        %v3726 = vsub.s32 0, %v3725
        %v3727 = vrot.slane %v3663, %v3726
        %v3744 = vmul.f32 %v3394, %v3667
        %v3745 = vmul.f32 %v3399, %v3671
        %v3746 = vmul.f32 %v3404, %v3675
        %v3747 = vmul.f32 %v3409, %v3679
        %v3748 = vmul.f32 %v3414, %v3683
        %v3749 = vmul.f32 %v3419, %v3687
        %v3750 = vmul.f32 %v3424, %v3691
        %v3751 = vmul.f32 %v3429, %v3695
        %v3752 = vmul.f32 %v3434, %v3699
        %v3753 = vmul.f32 %v3439, %v3703
        %v3754 = vmul.f32 %v3444, %v3707
        %v3755 = vmul.f32 %v3449, %v3711
        %v3756 = vmul.f32 %v3454, %v3715
        %v3757 = vmul.f32 %v3459, %v3719
        %v3758 = vmul.f32 %v3464, %v3723
        %v3759 = vmul.f32 %v3469, %v3727
        %v3760 = vadd.f32 %v3744, %v3745
        %v3761 = vadd.f32 %v3760, %v3746
        %v3762 = vadd.f32 %v3761, %v3747
        %v3763 = vadd.f32 %v3762, %v3748
        %v3764 = vadd.f32 %v3763, %v3749
        %v3765 = vadd.f32 %v3764, %v3750
        %v3766 = vadd.f32 %v3765, %v3751
        %v3767 = vadd.f32 %v3752, %v3753
        %v3768 = vadd.f32 %v3767, %v3754
        %v3769 = vadd.f32 %v3768, %v3755
        %v3770 = vadd.f32 %v3769, %v3756
        %v3771 = vadd.f32 %v3770, %v3757
        %v3772 = vadd.f32 %v3771, %v3758
        %v3773 = vadd.f32 %v3772, %v3759
        %v3774 = vld [vmem:[%s3 + $0xe] sm:$0x1]
        %v3775 = vlaneseq
        %v3776 = vshrl.u32 %v3775, 7
        %v3777 = vsub.s32 0, %v3776
        %v3778 = vrot.slane %v3774, %v3777
        %v3779 = vmul.f32 %v3556, %v3778
        %v3780 = vmul.f32 %v3561, %v3778
        %v3781 = vsub.f32 %v3766, %v3779
        %v3782 = vsub.f32 %v3773, %v3780
        %s3783 = scalar_lea.vmem [#allocation2], 1408
        %v3784 = vld [vmem:[%s3783] sm:$0xff]
        %v3785 = vld [vmem:[%s3783 + $0x8] sm:$0xff]
        %v3786 = vld [vmem:[%s3783 + $0x10] sm:$0xff]
        %v3787 = vld [vmem:[%s3783 + $0x18] sm:$0xff]
        %v3788 = vld [vmem:[%s3783 + $0x20] sm:$0xff]
        %v3789 = vld [vmem:[%s3783 + $0x28] sm:$0xff]
        %v3790 = vld [vmem:[%s3783 + $0x30] sm:$0xff]
        %v3791 = vld [vmem:[%s3783 + $0x38] sm:$0xff]
        %v3792 = vld [vmem:[%s3783 + $0x40] sm:$0xff]
        %v3793 = vld [vmem:[%s3783 + $0x48] sm:$0xff]
        %v3794 = vld [vmem:[%s3783 + $0x50] sm:$0xff]
        %v3795 = vld [vmem:[%s3783 + $0x58] sm:$0xff]
        %v3796 = vld [vmem:[%s3783 + $0x60] sm:$0xff]
        %v3797 = vld [vmem:[%s3783 + $0x68] sm:$0xff]
        %v3798 = vld [vmem:[%s3783 + $0x70] sm:$0xff]
        %v3799 = vld [vmem:[%s3783 + $0x78] sm:$0xff]
        %v3800 = vld [vmem:[%s3 + $0x8] sm:$0x1]
        %v3801 = vlaneseq
        %v3802 = vshrl.u32 %v3801, 7
        %v3803 = vsub.s32 0, %v3802
        %v3804 = vrot.slane %v3800, %v3803
        %3805 = vmatprep.subr.mxu0 0.0
        %3806 = vmatpush1.msra.mxu0 %v3799
        %3807 = vmatprep.subr.mxu0 0.0
        %3808 = vmatpush1.msra.mxu0 %v3798
        %3809 = vmatprep.subr.mxu0 0.0
        %3810 = vmatpush1.msra.mxu0 %v3797
        %3811 = vmatprep.subr.mxu0 0.0
        %3812 = vmatpush1.msra.mxu0 %v3796
        %3813 = vmatprep.subr.mxu0 0.0
        %3814 = vmatpush1.msra.mxu0 %v3795
        %3815 = vmatprep.subr.mxu0 0.0
        %3816 = vmatpush1.msra.mxu0 %v3794
        %3817 = vmatprep.subr.mxu0 0.0
        %3818 = vmatpush1.msra.mxu0 %v3793
        %3819 = vmatprep.subr.mxu0 0.0
        %3820 = vmatpush1.msra.mxu0 %v3792
        %3821 = vmatprep.subr.mxu0 0.0
        %3822 = vmatpush1.msra.mxu0 %v3791
        %3823 = vmatprep.subr.mxu0 0.0
        %3824 = vmatpush1.msra.mxu0 %v3790
        %3825 = vmatprep.subr.mxu0 0.0
        %3826 = vmatpush1.msra.mxu0 %v3789
        %3827 = vmatprep.subr.mxu0 0.0
        %3828 = vmatpush1.msra.mxu0 %v3788
        %3829 = vmatprep.subr.mxu0 0.0
        %3830 = vmatpush1.msra.mxu0 %v3787
        %3831 = vmatprep.subr.mxu0 0.0
        %3832 = vmatpush1.msra.mxu0 %v3786
        %3833 = vmatprep.subr.mxu0 0.0
        %3834 = vmatpush1.msra.mxu0 %v3785
        %3835 = vmatprep.subr.mxu0 0.0
        %3836 = vmatpush1.msra.mxu0 %v3784
        %3837 = vmatprep.subr.mxu0 0.0
        %3838 = vmatpush2.msra.mxu0 0.0
        %3839 = vmatprep.subr.mxu0 0.0
        %3840 = vmatpush2.msra.mxu0 0.0
        %3841 = vmatprep.subr.mxu0 0.0
        %3842 = vmatpush2.msra.mxu0 0.0
        %3843 = vmatprep.subr.mxu0 0.0
        %3844 = vmatpush2.msra.mxu0 0.0
        %3845 = vmatprep.subr.mxu0 0.0
        %3846 = vmatpush2.msra.mxu0 0.0
        %3847 = vmatprep.subr.mxu0 0.0
        %3848 = vmatpush2.msra.mxu0 0.0
        %3849 = vmatprep.subr.mxu0 0.0
        %3850 = vmatpush2.msra.mxu0 0.0
        %3851 = vmatprep.subr.mxu0 0.0
        %3852 = vmatpush2.msra.mxu0 0.0
        %3853 = vmatprep.subr.mxu0 0.0
        %3854 = vmatpush2.msra.mxu0 0.0
        %3855 = vmatprep.subr.mxu0 0.0
        %3856 = vmatpush2.msra.mxu0 0.0
        %3857 = vmatprep.subr.mxu0 0.0
        %3858 = vmatpush2.msra.mxu0 0.0
        %3859 = vmatprep.subr.mxu0 0.0
        %3860 = vmatpush2.msra.mxu0 0.0
        %3861 = vmatprep.subr.mxu0 0.0
        %3862 = vmatpush2.msra.mxu0 0.0
        %3863 = vmatprep.subr.mxu0 0.0
        %3864 = vmatpush2.msra.mxu0 0.0
        %3865 = vmatprep.subr.mxu0 0.0
        %3866 = vmatpush2.msra.mxu0 0.0
        %3867 = vmatprep.subr.mxu0 0.0
        %3868 = vmatpush2.msra.mxu0 0.0
        %3869 = vmatprep.mubr.f32.mxu0 0.0
        %3870 = vmatmul.mubr.f32.gmra.mxu0 %v3781
        %v3871 = vpop.f32.mrf.mxu0
        %v3872 = vadd.f32 %v3804, %v3871
        %v3873 = vpop.f32.mrf.mxu0
        %3874 = vmatprep.mubr.f32.mxu0 0.0
        %3875 = vmatmul.mubr.f32.gmra.mxu0 %v3782
        %v3876 = vpop.f32.mrf.mxu0
        %v3877 = vadd.f32 %v3804, %v3876
        %v3878 = vpop.f32.mrf.mxu0
        %3879 = vdwg.mxu0
        %v3880 = vmul.f32 %v3872, 0.5
        %v3881 = vmul.f32 %v3877, 0.5
        %v3882 = vmin.f32 %v3880, 14.0
        %v3883 = vmin.f32 %v3881, 14.0
        %vm3884 = vcmp.gt.f32.partialorder %v3880, 14.0
        %vm3885 = vcmp.gt.f32.partialorder %v3881, 14.0
        %v3886 = vmul.f32 %v3882, 1.442695
        %v3887 = vpow.pop %v3886
        %v3888 = vmul.f32 %v3883, 1.442695
        %v3889 = vpow.pop %v3888
        %v3890 = vadd.f32 %v3887, 1.0
        %v3891 = vlog2.pop %v3890
        %v3892 = vmul.f32 %v3891, 0.6931472
        %v3893 = vmul.f32 -0.5, %v3887
        %v3894 = vadd.f32 %v3893, 1.0
        %v3895 = vmul.f32 %v3894, %v3887
        %v3896 = vand.u32 2147483647, %v3887
        %vm3897 = vcmp.lt.f32.partialorder %v3896, 0.0004427343
        %v3898 = vsel %vm3897, %v3895, %v3892
        %v3899 = vadd.f32 %v3889, 1.0
        %v3900 = vlog2.pop %v3899
        %v3901 = vmul.f32 %v3900, 0.6931472
        %v3902 = vmul.f32 -0.5, %v3889
        %v3903 = vadd.f32 %v3902, 1.0
        %v3904 = vmul.f32 %v3903, %v3889
        %v3905 = vand.u32 2147483647, %v3889
        %vm3906 = vcmp.lt.f32.partialorder %v3905, 0.0004427343
        %v3907 = vsel %vm3906, %v3904, %v3901
        %v3908 = vmul.f32 %v3898, 2.0
        %v3909 = vmul.f32 %v3907, 2.0
        %v3910 = vsel %vm3884, %v3872, %v3908
        %v3911 = vsel %vm3885, %v3877, %v3909
        %s3912 = scalar_lea.vmem [#allocation2], 1792
        %v3913 = vld [vmem:[%s3912] sm:$0xff]
        %v3914 = vld [vmem:[%s3912 + $0x8] sm:$0xff]
        %v3915 = vld [vmem:[%s3912 + $0x10] sm:$0xff]
        %v3916 = vld [vmem:[%s3912 + $0x18] sm:$0xff]
        %v3917 = vld [vmem:[%s3912 + $0x20] sm:$0xff]
        %v3918 = vld [vmem:[%s3912 + $0x28] sm:$0xff]
        %v3919 = vld [vmem:[%s3912 + $0x30] sm:$0xff]
        %v3920 = vld [vmem:[%s3912 + $0x38] sm:$0xff]
        %v3921 = vld [vmem:[%s3912 + $0x40] sm:$0xff]
        %v3922 = vld [vmem:[%s3912 + $0x48] sm:$0xff]
        %v3923 = vld [vmem:[%s3912 + $0x50] sm:$0xff]
        %v3924 = vld [vmem:[%s3912 + $0x58] sm:$0xff]
        %v3925 = vld [vmem:[%s3912 + $0x60] sm:$0xff]
        %v3926 = vld [vmem:[%s3912 + $0x68] sm:$0xff]
        %v3927 = vld [vmem:[%s3912 + $0x70] sm:$0xff]
        %v3928 = vld [vmem:[%s3912 + $0x78] sm:$0xff]
        %3929 = vmatprep.subr.mxu0 0.0
        %3930 = vmatpush1.msra.mxu0 %v3928
        %3931 = vmatprep.subr.mxu0 0.0
        %3932 = vmatpush1.msra.mxu0 %v3927
        %3933 = vmatprep.subr.mxu0 0.0
        %3934 = vmatpush1.msra.mxu0 %v3926
        %3935 = vmatprep.subr.mxu0 0.0
        %3936 = vmatpush1.msra.mxu0 %v3925
        %3937 = vmatprep.subr.mxu0 0.0
        %3938 = vmatpush1.msra.mxu0 %v3924
        %3939 = vmatprep.subr.mxu0 0.0
        %3940 = vmatpush1.msra.mxu0 %v3923
        %3941 = vmatprep.subr.mxu0 0.0
        %3942 = vmatpush1.msra.mxu0 %v3922
        %3943 = vmatprep.subr.mxu0 0.0
        %3944 = vmatpush1.msra.mxu0 %v3921
        %3945 = vmatprep.subr.mxu0 0.0
        %3946 = vmatpush1.msra.mxu0 %v3920
        %3947 = vmatprep.subr.mxu0 0.0
        %3948 = vmatpush1.msra.mxu0 %v3919
        %3949 = vmatprep.subr.mxu0 0.0
        %3950 = vmatpush1.msra.mxu0 %v3918
        %3951 = vmatprep.subr.mxu0 0.0
        %3952 = vmatpush1.msra.mxu0 %v3917
        %3953 = vmatprep.subr.mxu0 0.0
        %3954 = vmatpush1.msra.mxu0 %v3916
        %3955 = vmatprep.subr.mxu0 0.0
        %3956 = vmatpush1.msra.mxu0 %v3915
        %3957 = vmatprep.subr.mxu0 0.0
        %3958 = vmatpush1.msra.mxu0 %v3914
        %3959 = vmatprep.subr.mxu0 0.0
        %3960 = vmatpush1.msra.mxu0 %v3913
        %3961 = vmatprep.subr.mxu0 0.0
        %3962 = vmatpush2.msra.mxu0 0.0
        %3963 = vmatprep.subr.mxu0 0.0
        %3964 = vmatpush2.msra.mxu0 0.0
        %3965 = vmatprep.subr.mxu0 0.0
        %3966 = vmatpush2.msra.mxu0 0.0
        %3967 = vmatprep.subr.mxu0 0.0
        %3968 = vmatpush2.msra.mxu0 0.0
        %3969 = vmatprep.subr.mxu0 0.0
        %3970 = vmatpush2.msra.mxu0 0.0
        %3971 = vmatprep.subr.mxu0 0.0
        %3972 = vmatpush2.msra.mxu0 0.0
        %3973 = vmatprep.subr.mxu0 0.0
        %3974 = vmatpush2.msra.mxu0 0.0
        %3975 = vmatprep.subr.mxu0 0.0
        %3976 = vmatpush2.msra.mxu0 0.0
        %3977 = vmatprep.subr.mxu0 0.0
        %3978 = vmatpush2.msra.mxu0 0.0
        %3979 = vmatprep.subr.mxu0 0.0
        %3980 = vmatpush2.msra.mxu0 0.0
        %3981 = vmatprep.subr.mxu0 0.0
        %3982 = vmatpush2.msra.mxu0 0.0
        %3983 = vmatprep.subr.mxu0 0.0
        %3984 = vmatpush2.msra.mxu0 0.0
        %3985 = vmatprep.subr.mxu0 0.0
        %3986 = vmatpush2.msra.mxu0 0.0
        %3987 = vmatprep.subr.mxu0 0.0
        %3988 = vmatpush2.msra.mxu0 0.0
        %3989 = vmatprep.subr.mxu0 0.0
        %3990 = vmatpush2.msra.mxu0 0.0
        %3991 = vmatprep.subr.mxu0 0.0
        %3992 = vmatpush2.msra.mxu0 0.0
        %3993 = vmatprep.mubr.f32.mxu0 0.0
        %3994 = vmatmul.mubr.f32.gmra.mxu0 %v3910
        %v3995 = vpop.f32.mrf.mxu0
        %v3996 = vadd.f32 0.0, %v3995
        %v3997 = vpop.f32.mrf.mxu0
        %3998 = vmatprep.mubr.f32.mxu0 0.0
        %3999 = vmatmul.mubr.f32.gmra.mxu0 %v3911
        %v4000 = vpop.f32.mrf.mxu0
        %v4001 = vadd.f32 0.0, %v4000
        %v4002 = vpop.f32.mrf.mxu0
        %4003 = vdwg.mxu0
        %v4004 = vadd.f32 %v2880, %v3996
        %v4005 = vadd.f32 %v2881, %v4001
        %v4006 = vld [vmem:[%s3 + $0xb] sm:$0x1]
        %v4007 = vlaneseq
        %v4008 = vshrl.u32 %v4007, 7
        %v4009 = vsub.s32 0, %v4008
        %v4010 = vrot.slane %v4006, %v4009
        %v4011 = vadd.f32 %v4004, %v4010
        %v4012 = vadd.f32 %v4005, %v4010
        %v4013 = vld [vmem:[%s4] sm:$0xff]
        %v4014 = vld [vmem:[%s4 + $0x8] sm:$0xff]
        %v4015 = vld [vmem:[%s4 + $0x10] sm:$0xff]
        %v4016 = vld [vmem:[%s4 + $0x18] sm:$0xff]
        %v4017 = vld [vmem:[%s4 + $0x20] sm:$0xff]
        %v4018 = vld [vmem:[%s4 + $0x28] sm:$0xff]
        %v4019 = vld [vmem:[%s4 + $0x30] sm:$0xff]
        %v4020 = vld [vmem:[%s4 + $0x38] sm:$0xff]
        %v4021 = vld [vmem:[%s4 + $0x40] sm:$0xff]
        %v4022 = vld [vmem:[%s4 + $0x48] sm:$0xff]
        %v4023 = vld [vmem:[%s4 + $0x50] sm:$0xff]
        %v4024 = vld [vmem:[%s4 + $0x58] sm:$0xff]
        %v4025 = vld [vmem:[%s4 + $0x60] sm:$0xff]
        %v4026 = vld [vmem:[%s4 + $0x68] sm:$0xff]
        %v4027 = vld [vmem:[%s4 + $0x70] sm:$0xff]
        %v4028 = vld [vmem:[%s4 + $0x78] sm:$0xff]
        %v4029 = vld [vmem:[%s4 + $0x80] sm:$0xff]
        %v4030 = vld [vmem:[%s4 + $0x88] sm:$0xff]
        %v4031 = vld [vmem:[%s4 + $0x90] sm:$0xff]
        %v4032 = vld [vmem:[%s4 + $0x98] sm:$0xff]
        %v4033 = vld [vmem:[%s4 + $0xa0] sm:$0xff]
        %v4034 = vld [vmem:[%s4 + $0xa8] sm:$0xff]
        %v4035 = vld [vmem:[%s4 + $0xb0] sm:$0xff]
        %v4036 = vld [vmem:[%s4 + $0xb8] sm:$0xff]
        %v4037 = vld [vmem:[%s4 + $0xc0] sm:$0xff]
        %v4038 = vld [vmem:[%s4 + $0xc8] sm:$0xff]
        %v4039 = vld [vmem:[%s4 + $0xd0] sm:$0xff]
        %v4040 = vld [vmem:[%s4 + $0xd8] sm:$0xff]
        %v4041 = vld [vmem:[%s4 + $0xe0] sm:$0xff]
        %v4042 = vld [vmem:[%s4 + $0xe8] sm:$0xff]
        %v4043 = vld [vmem:[%s4 + $0xf0] sm:$0xff]
        %v4044 = vld [vmem:[%s4 + $0xf8] sm:$0xff]
        %v4045 = vld [vmem:[%s6] ss:$2 sm:$0x3]
        %v4047 = vlaneseq
        %v4048 = vshrl.u32 %v4047, 7
        %v4049 = vsub.s32 0, %v4048
        %v4050 = vrot.slane %v4045, %v4049
        %v4051 = vlaneseq
        %v4052 = vshrl.u32 %v4051, 7
        %v4053 = vsub.s32 1, %v4052
        %v4054 = vrot.slane %v4045, %v4053
        %4057 = vmatprep.subr.mxu0 %v4044
        %4058 = vmatpush1.msra.mxu0 %v4043
        %4059 = vmatprep.subr.mxu0 %v4042
        %4060 = vmatpush1.msra.mxu0 %v4041
        %4061 = vmatprep.subr.mxu0 %v4040
        %4062 = vmatpush1.msra.mxu0 %v4039
        %4063 = vmatprep.subr.mxu0 %v4038
        %4064 = vmatpush1.msra.mxu0 %v4037
        %4065 = vmatprep.subr.mxu0 %v4036
        %4066 = vmatpush1.msra.mxu0 %v4035
        %4067 = vmatprep.subr.mxu0 %v4034
        %4068 = vmatpush1.msra.mxu0 %v4033
        %4069 = vmatprep.subr.mxu0 %v4032
        %4070 = vmatpush1.msra.mxu0 %v4031
        %4071 = vmatprep.subr.mxu0 %v4030
        %4072 = vmatpush1.msra.mxu0 %v4029
        %4073 = vmatprep.subr.mxu0 %v4028
        %4074 = vmatpush1.msra.mxu0 %v4027
        %4075 = vmatprep.subr.mxu0 %v4026
        %4076 = vmatpush1.msra.mxu0 %v4025
        %4077 = vmatprep.subr.mxu0 %v4024
        %4078 = vmatpush1.msra.mxu0 %v4023
        %4079 = vmatprep.subr.mxu0 %v4022
        %4080 = vmatpush1.msra.mxu0 %v4021
        %4081 = vmatprep.subr.mxu0 %v4020
        %4082 = vmatpush1.msra.mxu0 %v4019
        %4083 = vmatprep.subr.mxu0 %v4018
        %4084 = vmatpush1.msra.mxu0 %v4017
        %4085 = vmatprep.subr.mxu0 %v4016
        %4086 = vmatpush1.msra.mxu0 %v4015
        %4087 = vmatprep.subr.mxu0 %v4014
        %4088 = vmatpush1.msra.mxu0 %v4013
        %4089 = vmatprep.subr.mxu0 0.0
        %4090 = vmatpush2.msra.mxu0 0.0
        %4091 = vmatprep.subr.mxu0 0.0
        %4092 = vmatpush2.msra.mxu0 0.0
        %4093 = vmatprep.subr.mxu0 0.0
        %4094 = vmatpush2.msra.mxu0 0.0
        %4095 = vmatprep.subr.mxu0 0.0
        %4096 = vmatpush2.msra.mxu0 0.0
        %4097 = vmatprep.subr.mxu0 0.0
        %4098 = vmatpush2.msra.mxu0 0.0
        %4099 = vmatprep.subr.mxu0 0.0
        %4100 = vmatpush2.msra.mxu0 0.0
        %4101 = vmatprep.subr.mxu0 0.0
        %4102 = vmatpush2.msra.mxu0 0.0
        %4103 = vmatprep.subr.mxu0 0.0
        %4104 = vmatpush2.msra.mxu0 0.0
        %4105 = vmatprep.subr.mxu0 0.0
        %4106 = vmatpush2.msra.mxu0 0.0
        %4107 = vmatprep.subr.mxu0 0.0
        %4108 = vmatpush2.msra.mxu0 0.0
        %4109 = vmatprep.subr.mxu0 0.0
        %4110 = vmatpush2.msra.mxu0 0.0
        %4111 = vmatprep.subr.mxu0 0.0
        %4112 = vmatpush2.msra.mxu0 0.0
        %4113 = vmatprep.subr.mxu0 0.0
        %4114 = vmatpush2.msra.mxu0 0.0
        %4115 = vmatprep.subr.mxu0 0.0
        %4116 = vmatpush2.msra.mxu0 0.0
        %4117 = vmatprep.subr.mxu0 0.0
        %4118 = vmatpush2.msra.mxu0 0.0
        %4119 = vmatprep.subr.mxu0 0.0
        %4120 = vmatpush2.msra.mxu0 0.0
        %4121 = vmatprep.mubr.f32.mxu0 0.0
        %4122 = vmatmul.mubr.f32.gmra.mxu0 %v4011
        %v4123 = vpop.f32.mrf.mxu0
        %v4124 = vadd.f32 %v4050, %v4123
        %v4125 = vpop.f32.mrf.mxu0
        %v4126 = vadd.f32 %v4054, %v4125
        %4127 = vmatprep.mubr.f32.mxu0 0.0
        %4128 = vmatmul.mubr.f32.gmra.mxu0 %v4012
        %v4129 = vpop.f32.mrf.mxu0
        %v4130 = vadd.f32 %v4050, %v4129
        %v4131 = vpop.f32.mrf.mxu0
        %v4132 = vadd.f32 %v4054, %v4131
        %4133 = vdwg.mxu0
        %v4134 = vmin.f32 %v4124, 20.0
        %v4135 = vmin.f32 %v4126, 20.0
        %v4136 = vmin.f32 %v4130, 20.0
        %v4137 = vmin.f32 %v4132, 20.0
        %vm4138 = vcmp.gt.f32.partialorder %v4124, 20.0
        %vm4139 = vcmp.gt.f32.partialorder %v4126, 20.0
        %vm4140 = vcmp.gt.f32.partialorder %v4130, 20.0
        %vm4141 = vcmp.gt.f32.partialorder %v4132, 20.0
        %v4142 = vmul.f32 %v4134, 1.442695
        %v4143 = vpow.pop %v4142
        %v4144 = vmul.f32 %v4135, 1.442695
        %v4145 = vpow.pop %v4144
        %v4146 = vmul.f32 %v4136, 1.442695
        %v4147 = vpow.pop %v4146
        %v4148 = vmul.f32 %v4137, 1.442695
        %v4149 = vpow.pop %v4148
        %v4150 = vadd.f32 %v4143, 1.0
        %v4151 = vlog2.pop %v4150
        %v4152 = vmul.f32 %v4151, 0.6931472
        %v4153 = vmul.f32 -0.5, %v4143
        %v4154 = vadd.f32 %v4153, 1.0
        %v4155 = vmul.f32 %v4154, %v4143
        %v4156 = vand.u32 2147483647, %v4143
        %vm4157 = vcmp.lt.f32.partialorder %v4156, 0.0004427343
        %v4158 = vsel %vm4157, %v4155, %v4152
        %v4159 = vadd.f32 %v4145, 1.0
        %v4160 = vlog2.pop %v4159
        %v4161 = vmul.f32 %v4160, 0.6931472
        %v4162 = vmul.f32 -0.5, %v4145
        %v4163 = vadd.f32 %v4162, 1.0
        %v4164 = vmul.f32 %v4163, %v4145
        %v4165 = vand.u32 2147483647, %v4145
        %vm4166 = vcmp.lt.f32.partialorder %v4165, 0.0004427343
        %v4167 = vsel %vm4166, %v4164, %v4161
        %v4168 = vadd.f32 %v4147, 1.0
        %v4169 = vlog2.pop %v4168
        %v4170 = vmul.f32 %v4169, 0.6931472
        %v4171 = vmul.f32 -0.5, %v4147
        %v4172 = vadd.f32 %v4171, 1.0
        %v4173 = vmul.f32 %v4172, %v4147
        %v4174 = vand.u32 2147483647, %v4147
        %vm4175 = vcmp.lt.f32.partialorder %v4174, 0.0004427343
        %v4176 = vsel %vm4175, %v4173, %v4170
        %v4177 = vadd.f32 %v4149, 1.0
        %v4178 = vlog2.pop %v4177
        %v4179 = vmul.f32 %v4178, 0.6931472
        %v4180 = vmul.f32 -0.5, %v4149
        %v4181 = vadd.f32 %v4180, 1.0
        %v4182 = vmul.f32 %v4181, %v4149
        %v4183 = vand.u32 2147483647, %v4149
        %vm4184 = vcmp.lt.f32.partialorder %v4183, 0.0004427343
        %v4185 = vsel %vm4184, %v4182, %v4179
        %v4186 = vsel %vm4138, %v4124, %v4158
        %v4187 = vsel %vm4139, %v4126, %v4167
        %v4188 = vsel %vm4140, %v4130, %v4176
        %v4189 = vsel %vm4141, %v4132, %v4185
        %v4190 = vsub.f32 %v4186, 0.6931472
        %v4191 = vsub.f32 %v4187, 0.6931472
        %v4192 = vsub.f32 %v4188, 0.6931472
        %v4193 = vsub.f32 %v4189, 0.6931472
        %v4194 = vrot.slane %v4190, 4
        %v4195 = vadd.f32 %v4190, %v4194
        %v4196 = vrot.slane %v4195, 2
        %v4197 = vadd.f32 %v4195, %v4196
        %v4198 = vrot.slane %v4197, 1
        %v4199 = vadd.f32 %v4197, %v4198
        %v4200 = vrot.slane %v4191, 4
        %v4201 = vadd.f32 %v4191, %v4200
        %v4202 = vrot.slane %v4201, 2
        %v4203 = vadd.f32 %v4201, %v4202
        %v4204 = vrot.slane %v4203, 1
        %v4205 = vadd.f32 %v4203, %v4204
        %v4206 = vrot.slane %v4192, 4
        %v4207 = vadd.f32 %v4192, %v4206
        %v4208 = vrot.slane %v4207, 2
        %v4209 = vadd.f32 %v4207, %v4208
        %v4210 = vrot.slane %v4209, 1
        %v4211 = vadd.f32 %v4209, %v4210
        %v4212 = vrot.slane %v4193, 4
        %v4213 = vadd.f32 %v4193, %v4212
        %v4214 = vrot.slane %v4213, 2
        %v4215 = vadd.f32 %v4213, %v4214
        %v4216 = vrot.slane %v4215, 1
        %v4217 = vadd.f32 %v4215, %v4216
        %v4218 = vrcp.pop 8.0
        %v4219 = vmul.f32 %v4199, %v4218
        %v4220 = vmul.f32 %v4205, %v4218
        %v4221 = vmul.f32 %v4211, %v4218
        %v4222 = vmul.f32 %v4217, %v4218
        %v4223 = vld [vmem:[%s5] sm:$0xff]
        %v4224 = vld [vmem:[%s5 + $0x8] sm:$0xff]
        %v4225 = vld [vmem:[%s5 + $0x10] sm:$0xff]
        %v4226 = vld [vmem:[%s5 + $0x18] sm:$0xff]
        %v4227 = vld [vmem:[%s5 + $0x20] sm:$0xff]
        %v4228 = vld [vmem:[%s5 + $0x28] sm:$0xff]
        %v4229 = vld [vmem:[%s5 + $0x30] sm:$0xff]
        %v4230 = vld [vmem:[%s5 + $0x38] sm:$0xff]
        %v4231 = vld [vmem:[%s5 + $0x40] sm:$0xff]
        %v4232 = vld [vmem:[%s5 + $0x48] sm:$0xff]
        %v4233 = vld [vmem:[%s5 + $0x50] sm:$0xff]
        %v4234 = vld [vmem:[%s5 + $0x58] sm:$0xff]
        %v4235 = vld [vmem:[%s5 + $0x60] sm:$0xff]
        %v4236 = vld [vmem:[%s5 + $0x68] sm:$0xff]
        %v4237 = vld [vmem:[%s5 + $0x70] sm:$0xff]
        %v4238 = vld [vmem:[%s5 + $0x78] sm:$0xff]
        %v4239 = vld [vmem:[%s5 + $0x80] sm:$0xff]
        %v4240 = vld [vmem:[%s5 + $0x88] sm:$0xff]
        %v4241 = vld [vmem:[%s5 + $0x90] sm:$0xff]
        %v4242 = vld [vmem:[%s5 + $0x98] sm:$0xff]
        %v4243 = vld [vmem:[%s5 + $0xa0] sm:$0xff]
        %v4244 = vld [vmem:[%s5 + $0xa8] sm:$0xff]
        %v4245 = vld [vmem:[%s5 + $0xb0] sm:$0xff]
        %v4246 = vld [vmem:[%s5 + $0xb8] sm:$0xff]
        %v4247 = vld [vmem:[%s5 + $0xc0] sm:$0xff]
        %v4248 = vld [vmem:[%s5 + $0xc8] sm:$0xff]
        %v4249 = vld [vmem:[%s5 + $0xd0] sm:$0xff]
        %v4250 = vld [vmem:[%s5 + $0xd8] sm:$0xff]
        %v4251 = vld [vmem:[%s5 + $0xe0] sm:$0xff]
        %v4252 = vld [vmem:[%s5 + $0xe8] sm:$0xff]
        %v4253 = vld [vmem:[%s5 + $0xf0] sm:$0xff]
        %v4254 = vld [vmem:[%s5 + $0xf8] sm:$0xff]
        %v4255 = vld [vmem:[%s6 + $0x1] sm:$0x1]
        %v4256 = vlaneseq
        %v4257 = vshrl.u32 %v4256, 7
        %v4258 = vsub.s32 0, %v4257
        %v4259 = vrot.slane %v4255, %v4258
        %vm4264 = vcmask 1041409
        %v4265 = vsel %vm4264, %v4221, %v4219
        %v4266 = vsel %vm4264, %v4222, %v4220
        %4269 = vmatprep.subr.mxu0 0.0
        %4270 = vmatpush1.msra.mxu0 %v4238
        %4271 = vmatprep.subr.mxu0 0.0
        %4272 = vmatpush1.msra.mxu0 %v4237
        %4273 = vmatprep.subr.mxu0 0.0
        %4274 = vmatpush1.msra.mxu0 %v4236
        %4275 = vmatprep.subr.mxu0 0.0
        %4276 = vmatpush1.msra.mxu0 %v4235
        %4277 = vmatprep.subr.mxu0 0.0
        %4278 = vmatpush1.msra.mxu0 %v4234
        %4279 = vmatprep.subr.mxu0 0.0
        %4280 = vmatpush1.msra.mxu0 %v4233
        %4281 = vmatprep.subr.mxu0 0.0
        %4282 = vmatpush1.msra.mxu0 %v4232
        %4283 = vmatprep.subr.mxu0 0.0
        %4284 = vmatpush1.msra.mxu0 %v4231
        %4285 = vmatprep.subr.mxu0 0.0
        %4286 = vmatpush1.msra.mxu0 %v4230
        %4287 = vmatprep.subr.mxu0 0.0
        %4288 = vmatpush1.msra.mxu0 %v4229
        %4289 = vmatprep.subr.mxu0 0.0
        %4290 = vmatpush1.msra.mxu0 %v4228
        %4291 = vmatprep.subr.mxu0 0.0
        %4292 = vmatpush1.msra.mxu0 %v4227
        %4293 = vmatprep.subr.mxu0 0.0
        %4294 = vmatpush1.msra.mxu0 %v4226
        %4295 = vmatprep.subr.mxu0 0.0
        %4296 = vmatpush1.msra.mxu0 %v4225
        %4297 = vmatprep.subr.mxu0 0.0
        %4298 = vmatpush1.msra.mxu0 %v4224
        %4299 = vmatprep.subr.mxu0 0.0
        %4300 = vmatpush1.msra.mxu0 %v4223
        %4301 = vmatprep.subr.mxu0 0.0
        %4302 = vmatpush2.msra.mxu0 %v4254
        %4303 = vmatprep.subr.mxu0 0.0
        %4304 = vmatpush2.msra.mxu0 %v4253
        %4305 = vmatprep.subr.mxu0 0.0
        %4306 = vmatpush2.msra.mxu0 %v4252
        %4307 = vmatprep.subr.mxu0 0.0
        %4308 = vmatpush2.msra.mxu0 %v4251
        %4309 = vmatprep.subr.mxu0 0.0
        %4310 = vmatpush2.msra.mxu0 %v4250
        %4311 = vmatprep.subr.mxu0 0.0
        %4312 = vmatpush2.msra.mxu0 %v4249
        %4313 = vmatprep.subr.mxu0 0.0
        %4314 = vmatpush2.msra.mxu0 %v4248
        %4315 = vmatprep.subr.mxu0 0.0
        %4316 = vmatpush2.msra.mxu0 %v4247
        %4317 = vmatprep.subr.mxu0 0.0
        %4318 = vmatpush2.msra.mxu0 %v4246
        %4319 = vmatprep.subr.mxu0 0.0
        %4320 = vmatpush2.msra.mxu0 %v4245
        %4321 = vmatprep.subr.mxu0 0.0
        %4322 = vmatpush2.msra.mxu0 %v4244
        %4323 = vmatprep.subr.mxu0 0.0
        %4324 = vmatpush2.msra.mxu0 %v4243
        %4325 = vmatprep.subr.mxu0 0.0
        %4326 = vmatpush2.msra.mxu0 %v4242
        %4327 = vmatprep.subr.mxu0 0.0
        %4328 = vmatpush2.msra.mxu0 %v4241
        %4329 = vmatprep.subr.mxu0 0.0
        %4330 = vmatpush2.msra.mxu0 %v4240
        %4331 = vmatprep.subr.mxu0 0.0
        %4332 = vmatpush2.msra.mxu0 %v4239
        %4333 = vmatprep.mubr.f32.mxu0 %v4266
        %4334 = vmatmul.mubr.f32.gmra.mxu0 %v4265
        %v4335 = vpop.f32.mrf.mxu0
        %v4336 = vadd.f32 %v4259, %v4335
        %v4337 = vpop.f32.mrf.mxu0
        %4338 = vdwg.mxu0
        %4339 = vst [vmem:[%s305] sm:$0x3] %v4336
        %s4340 = sand.u32 %s187, 1
        %s4341 = scalar_lea.sflag [#allocation4], %s4340
        %s4342 = sand.u32 %s187, 1
        %s4343 = smul.addr %s4342, 2
        %s4344 = scalar_lea.vmem [#allocation5], %s4343
        // Predicated region
        $region53: #{tpu_custom_call.1} parent=47 // pred_check
          %p4345 = pneg %p197
        $region54: #{tpu_custom_call.1} parent=47 // pred_check_branch
          %4347 = sbr.rel (%p4345) target = $region56
        $region55: #{tpu_custom_call.1} parent=47 // pred_region
          %s4349 = ssub.s32 32, 32
          %4350 = vsyncadd %s4341, %s4349
          %s4351 = smul.addr %s22, 32
          %s4352 = scalar_lea.hbm %s7, %s4351
          %s4354 = sshll.u32 %s4344, 4
          %s4355 = int_to_ptr.vmem [resolvable:$true] %s4354
          %4357 = dma.vmem_to_hbm [thread:$0]  %s4355, 32, %s4352, %s4341
        $region56: #{tpu_custom_call.1} parent=47 // pred_fallthru
          _
      $region48: #{tpu_custom_call.1} parent=5 // pred_fallthru
        _
      %p4358 = scmp.le.s32.totalorder 2, %s17
      // Predicated region
      $region57: #{tpu_custom_call.1} parent=5 // pred_check
        %p4359 = pneg %p4358
      $region58: #{tpu_custom_call.1} parent=5 // pred_check_branch
        %4361 = sbr.rel (%p4359) target = $region60
      $region59: #{tpu_custom_call.1} parent=5 // pred_region
        %s4362 = ssub.s32 %s17, 2
        // Predicated region
        $region61: #{tpu_custom_call.1} parent=59 // pred_check
          %p4363 = pneg %p203
        $region62: #{tpu_custom_call.1} parent=59 // pred_check_branch
          %4365 = sbr.rel (%p4363) target = $region64
        $region63: #{tpu_custom_call.1} parent=59 // pred_region
          %s4366 = sand.u32 %s188, 1
          %s4367 = scalar_lea.sflag [#allocation4], %s4366
          %s4368 = sand.u32 %s188, 1
          %s4369 = smul.addr %s4368, 2
          %s4370 = scalar_lea.vmem [#allocation5], %s4369
          %4371 = dma.done %s4367, 32
        $region64: #{tpu_custom_call.1} parent=59 // pred_fallthru
          _
      $region60: #{tpu_custom_call.1} parent=5 // pred_fallthru
        _
    $region6: #{tpu_custom_call.1} parent=1 // loop_footer
      %s21 = sadd.s32 1, %s17
    $region7: #{tpu_custom_call.1} parent=1 // loop_footer_branch
      %16 = sbr.rel target = $region3
    $region8: #{tpu_custom_call.1} parent=1 // loop_exit
      _
    %4372 = vsyncpa [#allocation3], 1
    %s4373 = scalar_lea.sflag [#allocation3], 1
    %4374 = vsyncpa %s4373, 1
    %4375 = vsyncpa [#allocation4], 1
    %s4376 = scalar_lea.sflag [#allocation4], 1
    %4377 = vsyncpa %s4376, 1

</llo_original>
